<compile_context>
chip_gen: v7x
topology: tpu7x:2x2x1
jax: 0.10.0
libtpu: 0.0.40
codegen_flags: <defaults>
</compile_context>

<pallas_src>
import jax
import jax.numpy as jnp
import numpy as np
from jax.experimental import pallas as pl
from jax.experimental.pallas import tpu as pltpu


# ----------------------------------------------------------------------------
# conv1 im2col gather indices (built once, on the host, with numpy).
#
# Row order: r = k*192 + ph*16 + pw
#   k  = dh*2 + dw           (2x2 max-pool window offset, 4 contiguous blocks)
#   ph = pooled row  (0..11), pw = pooled col (0..11; 12..15 are padding rows
#        so each ph group is 16 rows -> all in-kernel slices stay 8-aligned)
# Column order: t = i*5 + j  (5x5 conv tap), value index = (oh+i)*28 + (ow+j)
# with (oh, ow) = (2*ph + dh, 2*min(pw,11) + dw).
# ----------------------------------------------------------------------------
def _build_conv1_gather_indices():
    idx = np.empty((4, 12, 16, 25), dtype=np.int32)
    for k in range(4):
        dh, dw = divmod(k, 2)
        for ph in range(12):
            for pw in range(16):
                oh = 2 * ph + dh
                ow = 2 * min(pw, 11) + dw
                for t in range(25):
                    i, j = divmod(t, 5)
                    idx[k, ph, pw, t] = (oh + i) * 28 + (ow + j)
    return idx.reshape(768, 25)


_CONV1_IDX = _build_conv1_gather_indices()


# ----------------------------------------------------------------------------
# Fused forward kernel: one grid step = one image.
# ----------------------------------------------------------------------------
def _cnn_fused_kernel(p1_ref, w1_ref, b1_ref, w2_ref, b2_ref, wfc_ref, bfc_ref,
                      out_ref, y1p_s):
    f32 = jnp.float32
    bf16 = jnp.bfloat16

    # ---- conv1 (im2col matmul on MXU, bf16 inputs, f32 accumulation) --------
    x1 = p1_ref[0]                                           # (768, 25) bf16
    z1 = jnp.dot(x1, w1_ref[...], preferred_element_type=f32)
    z1 = jnp.maximum(z1 + b1_ref[...], 0.0)                  # (768, 32) f32

    # ---- pool1: max over the 4 contiguous window-offset blocks --------------
    y1p = jnp.maximum(jnp.maximum(z1[0:192], z1[192:384]),
                      jnp.maximum(z1[384:576], z1[576:768]))  # (192, 32)
    # Scatter rows into the (ph, pw, c) spatial scratch (aligned 16-row slabs).
    for ph in range(12):
        y1p_s[ph, :, :] = y1p[16 * ph:16 * ph + 16, :]

    # ---- conv2: 25-tap accumulation, windows read straight from VMEM --------
    acc2 = jnp.zeros((64, 64), f32)
    for t in range(25):
        i, j = divmod(t, 5)
        xs = y1p_s[i:i + 8, j:j + 8, :]                      # (8, 8, 32) f32
        lhs = xs.reshape(64, 32).astype(bf16)                # row = oh*8 + ow
        acc2 = acc2 + jnp.dot(lhs, w2_ref[t], preferred_element_type=f32)
    z2 = jnp.maximum(acc2 + b2_ref[...], 0.0)                # (64, 64) f32

    # ---- pool2 fused into the fc: one (1,64)@(64,128) dot per pooled pixel --
    logits = jnp.zeros((1, 128), f32)
    for qh in range(4):
        # max over the H pair: rows oh=2qh and oh=2qh+1 (aligned 8-row blocks)
        blk = jnp.maximum(z2[16 * qh:16 * qh + 8, :],
                          z2[16 * qh + 8:16 * qh + 16, :])   # (8, 64) row = ow
        for qw in range(4):
            row = jnp.maximum(blk[2 * qw:2 * qw + 1, :],
                              blk[2 * qw + 1:2 * qw + 2, :])  # (1, 64)
            logits = logits + jnp.dot(row.astype(bf16), wfc_ref[qh * 4 + qw],
                                      preferred_element_type=f32)

    # ---- fc bias + relu + masked, numerically-stable log_softmax ------------
    zf = jnp.maximum(logits + bfc_ref[...], 0.0)             # (1, 128) f32
    col = jax.lax.broadcasted_iota(jnp.int32, (1, 128), 1)
    zf = jnp.where(col < 10, zf, jnp.float32(-1e30))         # mask pad classes
    m = jnp.max(zf, axis=-1, keepdims=True)
    e = jnp.exp(zf - m)
    s = jnp.sum(e, axis=-1, keepdims=True)
    out_ref[0] = zf - m - jnp.log(s)


# ----------------------------------------------------------------------------
# Wrapper: weight re-layout + conv1 patch gather (tiny) in XLA, then one call.
# ----------------------------------------------------------------------------
@jax.jit
def cnn_forward(x_nchw, params):
    """Pallas implementation of CNN.forward.  x_nchw: (B, 1, 28, 28) f32."""
    w1, b1, w2, b2, wfc, bfc = params                        # PyTorch layouts
    B = x_nchw.shape[0]

    xf = x_nchw.reshape(B, 28 * 28).astype(jnp.float32)
    p1 = xf[:, _CONV1_IDX].astype(jnp.bfloat16)              # (B, 768, 25)

    # conv weights as (tap, cin, cout); fc weights as (pixel, cin, cout_pad128)
    w1m = jnp.transpose(w1, (2, 3, 1, 0)).reshape(25, 32).astype(jnp.bfloat16)
    b1r = b1.reshape(1, 32).astype(jnp.float32)
    w2m = jnp.transpose(w2, (2, 3, 1, 0)).reshape(25, 32, 64).astype(jnp.bfloat16)
    b2r = b2.reshape(1, 64).astype(jnp.float32)
    # torch.flatten order is c*16 + p  ->  wfc3[p, c, n] = wfc[n, c*16 + p]
    wfc3 = jnp.transpose(wfc.reshape(10, 64, 16), (2, 1, 0))   # (16, 64, 10)
    wfc3 = jnp.pad(wfc3, ((0, 0), (0, 0), (0, 118))).astype(jnp.bfloat16)
    bfcp = jnp.pad(bfc, (0, 118)).reshape(1, 128).astype(jnp.float32)

    out_pad = pl.pallas_call(
        _cnn_fused_kernel,
        out_shape=jax.ShapeDtypeStruct((B, 1, 128), jnp.float32),
        grid=(B,),
        in_specs=[
            pl.BlockSpec((1, 768, 25), lambda b: (b, 0, 0)),   # per-image patches
            pl.BlockSpec((25, 32), lambda b: (0, 0)),          # conv1 weights
            pl.BlockSpec((1, 32), lambda b: (0, 0)),
            pl.BlockSpec((25, 32, 64), lambda b: (0, 0, 0)),   # conv2 tap weights
            pl.BlockSpec((1, 64), lambda b: (0, 0)),
            pl.BlockSpec((16, 64, 128), lambda b: (0, 0, 0)),  # fc weights (padded)
            pl.BlockSpec((1, 128), lambda b: (0, 0)),
        ],
        out_specs=pl.BlockSpec((1, 1, 128), lambda b: (b, 0, 0)),
        scratch_shapes=[pltpu.VMEM((12, 16, 32), jnp.float32)],  # pooled conv1 act.
        compiler_params=pltpu.CompilerParams(
            dimension_semantics=("parallel",),
            vmem_limit_bytes=32 * 1024 * 1024,
        ),
    )(p1, w1m, b1r, w2m, b2r, wfc3, bfcp)

    return out_pad[:, 0, :10]


# ----------------------------------------------------------------------------
# Pure-JAX reference (f32, highest precision) for the correctness check.
# ----------------------------------------------------------------------------
def cnn_forward_ref(x, params):
    w1, b1, w2, b2, wfc, bfc = params
    dn = ("NCHW", "OIHW", "NCHW")
    prec = jax.lax.Precision.HIGHEST

    def conv(x, w, b):
        y = jax.lax.conv_general_dilated(x, w, (1, 1), "VALID",
                                         dimension_numbers=dn, precision=prec)
        return y + b.reshape(1, -1, 1, 1)

    def pool(x):
        return jax.lax.reduce_window(x, -jnp.inf, jax.lax.max,
                                     (1, 1, 2, 2), (1, 1, 2, 2), "VALID")

    y = pool(jax.nn.relu(conv(x, w1, b1)))
    y = pool(jax.nn.relu(conv(y, w2, b2)))
    y = y.reshape(y.shape[0], -1)
    y = jax.nn.relu(jnp.dot(y, wfc.T, precision=prec) + bfc)
    return jax.nn.log_softmax(y, axis=1)


# ----------------------------------------------------------------------------
# Main
# ----------------------------------------------------------------------------
if __name__ == "__main__":
    key = jax.random.PRNGKey(0)
    kx, k1, k2, k3, k4, k5, k6 = jax.random.split(key, 7)

    B = 2
    x = jax.random.normal(kx, (B, 1, 28, 28), dtype=jnp.float32)

    # Deterministic synthetic parameters (PyTorch layouts/shapes).
    w1 = jax.random.normal(k1, (32, 1, 5, 5), jnp.float32) / np.sqrt(1 * 5 * 5)
    b1 = jax.random.normal(k2, (32,), jnp.float32) * 0.05
    w2 = jax.random.normal(k3, (64, 32, 5, 5), jnp.float32) / np.sqrt(32 * 5 * 5)
    b2 = jax.random.normal(k4, (64,), jnp.float32) * 0.05
    wfc = jax.random.normal(k5, (10, 1024), jnp.float32) / np.sqrt(1024)
    bfc = jax.random.normal(k6, (10,), jnp.float32) * 0.05
    params = (w1, b1, w2, b2, wfc, bfc)

    out = cnn_forward(x, params)
    out = jax.block_until_ready(out)
    assert out.shape == (B, 10) and out.dtype == jnp.float32

    ref = jax.block_until_ready(cnn_forward_ref(x, params))
    # bf16 MXU inputs (per perf guidance) vs. an f32-highest reference:
    # tolerance relaxed accordingly.
    np.testing.assert_allclose(np.asarray(out), np.asarray(ref),
                               atol=5e-2, rtol=5e-2)

    print("KERNEL_OK")
</pallas_src>

<mosaic_0001>
module attributes {stable_mosaic.version = 11 : i64} {
  func.func @_cnn_fused_kernel(%arg0: i32, %arg1: memref<1x768x25xbf16, #tpu.memory_space<vmem>>, %arg2: memref<25x32xbf16, #tpu.memory_space<vmem>>, %arg3: memref<1x32xf32, #tpu.memory_space<vmem>>, %arg4: memref<25x32x64xbf16, #tpu.memory_space<vmem>>, %arg5: memref<1x64xf32, #tpu.memory_space<vmem>>, %arg6: memref<16x64x128xbf16, #tpu.memory_space<vmem>>, %arg7: memref<1x128xf32, #tpu.memory_space<vmem>>, %arg8: memref<1x1x128xf32, #tpu.memory_space<vmem>>, %arg9: memref<12x16x32xf32, #tpu.memory_space<vmem>>) attributes {dimension_semantics = [#tpu.dimension_semantics<parallel>], iteration_bounds = array<i64: 2>, scalar_prefetch = 0 : i64, scratch_operands = 1 : i64, tpu.core_type = #tpu.core_type<tc>, window_params = [{transform_indices = @transform_0, window_bounds = array<i64: 1, 768, 25>}, {pipeline_mode = #tpu.pipeline_mode<synchronous>, transform_indices = @transform_1, window_bounds = array<i64: 25, 32>}, {pipeline_mode = #tpu.pipeline_mode<synchronous>, transform_indices = @transform_2, window_bounds = array<i64: 1, 32>}, {pipeline_mode = #tpu.pipeline_mode<synchronous>, transform_indices = @transform_3, window_bounds = array<i64: 25, 32, 64>}, {pipeline_mode = #tpu.pipeline_mode<synchronous>, transform_indices = @transform_4, window_bounds = array<i64: 1, 64>}, {pipeline_mode = #tpu.pipeline_mode<synchronous>, transform_indices = @transform_5, window_bounds = array<i64: 16, 64, 128>}, {pipeline_mode = #tpu.pipeline_mode<synchronous>, transform_indices = @transform_6, window_bounds = array<i64: 1, 128>}, {transform_indices = @transform_7, window_bounds = array<i64: 1, 1, 128>}]} {
    %c0 = arith.constant 0 : index
    %c0_0 = arith.constant 0 : index
    %c0_1 = arith.constant 0 : index
    %0 = vector.load %arg1[%c0, %c0_0, %c0_1] : memref<1x768x25xbf16, #tpu.memory_space<vmem>>, vector<1x768x25xbf16>
    %1 = vector.shape_cast %0 : vector<1x768x25xbf16> to vector<768x25xbf16>
    %c0_2 = arith.constant 0 : index
    %c0_3 = arith.constant 0 : index
    %2 = vector.load %arg2[%c0_2, %c0_3] : memref<25x32xbf16, #tpu.memory_space<vmem>>, vector<25x32xbf16>
    %cst = arith.constant dense<0.000000e+00> : vector<768x32xf32>
    %3 = tpu.matmul %1, %2, %cst {dimension_numbers = #tpu.dot_dimension_numbers<[1], [0], [0], [1], [0, 0, 1, 1], [], []>} : vector<768x25xbf16>, vector<25x32xbf16>, vector<768x32xf32> -> vector<768x32xf32>
    %c0_4 = arith.constant 0 : index
    %c0_5 = arith.constant 0 : index
    %4 = vector.load %arg3[%c0_4, %c0_5] : memref<1x32xf32, #tpu.memory_space<vmem>>, vector<1x32xf32>
    %5 = vector.broadcast %4 : vector<1x32xf32> to vector<768x32xf32>
    %6 = arith.addf %3, %5 : vector<768x32xf32>
    %cst_6 = arith.constant 0.000000e+00 : f32
    %7 = vector.broadcast %cst_6 : f32 to vector<768x32xf32>
    %8 = arith.maximumf %6, %7 : vector<768x32xf32>
    %9 = vector.extract_strided_slice %8 {offsets = [0, 0], sizes = [192, 32], strides = [1, 1]} : vector<768x32xf32> to vector<192x32xf32>
    %10 = vector.extract_strided_slice %8 {offsets = [192, 0], sizes = [192, 32], strides = [1, 1]} : vector<768x32xf32> to vector<192x32xf32>
    %11 = arith.maximumf %9, %10 : vector<192x32xf32>
    %12 = vector.extract_strided_slice %8 {offsets = [384, 0], sizes = [192, 32], strides = [1, 1]} : vector<768x32xf32> to vector<192x32xf32>
    %13 = vector.extract_strided_slice %8 {offsets = [576, 0], sizes = [192, 32], strides = [1, 1]} : vector<768x32xf32> to vector<192x32xf32>
    %14 = arith.maximumf %12, %13 : vector<192x32xf32>
    %15 = arith.maximumf %11, %14 : vector<192x32xf32>
    %16 = vector.extract_strided_slice %15 {offsets = [0, 0], sizes = [16, 32], strides = [1, 1]} : vector<192x32xf32> to vector<16x32xf32>
    %c0_7 = arith.constant 0 : index
    %c0_8 = arith.constant 0 : index
    %c0_9 = arith.constant 0 : index
    %17 = vector.load %arg9[%c0_7, %c0_8, %c0_9] : memref<12x16x32xf32, #tpu.memory_space<vmem>>, vector<1x16x32xf32>
    %18 = vector.shape_cast %17 : vector<1x16x32xf32> to vector<16x32xf32>
    %19 = vector.shape_cast %16 : vector<16x32xf32> to vector<1x16x32xf32>
    tpu.vector_store %arg9[%c0_7, %c0_8, %c0_9], %19 {strides = array<i32>} : memref<12x16x32xf32, #tpu.memory_space<vmem>>, vector<1x16x32xf32>,
    %20 = vector.extract_strided_slice %15 {offsets = [16, 0], sizes = [16, 32], strides = [1, 1]} : vector<192x32xf32> to vector<16x32xf32>
    %c1 = arith.constant 1 : index
    %c0_10 = arith.constant 0 : index
    %c0_11 = arith.constant 0 : index
    %21 = vector.load %arg9[%c1, %c0_10, %c0_11] : memref<12x16x32xf32, #tpu.memory_space<vmem>>, vector<1x16x32xf32>
    %22 = vector.shape_cast %21 : vector<1x16x32xf32> to vector<16x32xf32>
    %23 = vector.shape_cast %20 : vector<16x32xf32> to vector<1x16x32xf32>
    tpu.vector_store %arg9[%c1, %c0_10, %c0_11], %23 {strides = array<i32>} : memref<12x16x32xf32, #tpu.memory_space<vmem>>, vector<1x16x32xf32>,
    %24 = vector.extract_strided_slice %15 {offsets = [32, 0], sizes = [16, 32], strides = [1, 1]} : vector<192x32xf32> to vector<16x32xf32>
    %c2 = arith.constant 2 : index
    %c0_12 = arith.constant 0 : index
    %c0_13 = arith.constant 0 : index
    %25 = vector.load %arg9[%c2, %c0_12, %c0_13] : memref<12x16x32xf32, #tpu.memory_space<vmem>>, vector<1x16x32xf32>
    %26 = vector.shape_cast %25 : vector<1x16x32xf32> to vector<16x32xf32>
    %27 = vector.shape_cast %24 : vector<16x32xf32> to vector<1x16x32xf32>
    tpu.vector_store %arg9[%c2, %c0_12, %c0_13], %27 {strides = array<i32>} : memref<12x16x32xf32, #tpu.memory_space<vmem>>, vector<1x16x32xf32>,
    %28 = vector.extract_strided_slice %15 {offsets = [48, 0], sizes = [16, 32], strides = [1, 1]} : vector<192x32xf32> to vector<16x32xf32>
    %c3 = arith.constant 3 : index
    %c0_14 = arith.constant 0 : index
    %c0_15 = arith.constant 0 : index
    %29 = vector.load %arg9[%c3, %c0_14, %c0_15] : memref<12x16x32xf32, #tpu.memory_space<vmem>>, vector<1x16x32xf32>
    %30 = vector.shape_cast %29 : vector<1x16x32xf32> to vector<16x32xf32>
    %31 = vector.shape_cast %28 : vector<16x32xf32> to vector<1x16x32xf32>
    tpu.vector_store %arg9[%c3, %c0_14, %c0_15], %31 {strides = array<i32>} : memref<12x16x32xf32, #tpu.memory_space<vmem>>, vector<1x16x32xf32>,
    %32 = vector.extract_strided_slice %15 {offsets = [64, 0], sizes = [16, 32], strides = [1, 1]} : vector<192x32xf32> to vector<16x32xf32>
    %c4 = arith.constant 4 : index
    %c0_16 = arith.constant 0 : index
    %c0_17 = arith.constant 0 : index
    %33 = vector.load %arg9[%c4, %c0_16, %c0_17] : memref<12x16x32xf32, #tpu.memory_space<vmem>>, vector<1x16x32xf32>
    %34 = vector.shape_cast %33 : vector<1x16x32xf32> to vector<16x32xf32>
    %35 = vector.shape_cast %32 : vector<16x32xf32> to vector<1x16x32xf32>
    tpu.vector_store %arg9[%c4, %c0_16, %c0_17], %35 {strides = array<i32>} : memref<12x16x32xf32, #tpu.memory_space<vmem>>, vector<1x16x32xf32>,
    %36 = vector.extract_strided_slice %15 {offsets = [80, 0], sizes = [16, 32], strides = [1, 1]} : vector<192x32xf32> to vector<16x32xf32>
    %c5 = arith.constant 5 : index
    %c0_18 = arith.constant 0 : index
    %c0_19 = arith.constant 0 : index
    %37 = vector.load %arg9[%c5, %c0_18, %c0_19] : memref<12x16x32xf32, #tpu.memory_space<vmem>>, vector<1x16x32xf32>
    %38 = vector.shape_cast %37 : vector<1x16x32xf32> to vector<16x32xf32>
    %39 = vector.shape_cast %36 : vector<16x32xf32> to vector<1x16x32xf32>
    tpu.vector_store %arg9[%c5, %c0_18, %c0_19], %39 {strides = array<i32>} : memref<12x16x32xf32, #tpu.memory_space<vmem>>, vector<1x16x32xf32>,
    %40 = vector.extract_strided_slice %15 {offsets = [96, 0], sizes = [16, 32], strides = [1, 1]} : vector<192x32xf32> to vector<16x32xf32>
    %c6 = arith.constant 6 : index
    %c0_20 = arith.constant 0 : index
    %c0_21 = arith.constant 0 : index
    %41 = vector.load %arg9[%c6, %c0_20, %c0_21] : memref<12x16x32xf32, #tpu.memory_space<vmem>>, vector<1x16x32xf32>
    %42 = vector.shape_cast %41 : vector<1x16x32xf32> to vector<16x32xf32>
    %43 = vector.shape_cast %40 : vector<16x32xf32> to vector<1x16x32xf32>
    tpu.vector_store %arg9[%c6, %c0_20, %c0_21], %43 {strides = array<i32>} : memref<12x16x32xf32, #tpu.memory_space<vmem>>, vector<1x16x32xf32>,
    %44 = vector.extract_strided_slice %15 {offsets = [112, 0], sizes = [16, 32], strides = [1, 1]} : vector<192x32xf32> to vector<16x32xf32>
    %c7 = arith.constant 7 : index
    %c0_22 = arith.constant 0 : index
    %c0_23 = arith.constant 0 : index
    %45 = vector.load %arg9[%c7, %c0_22, %c0_23] : memref<12x16x32xf32, #tpu.memory_space<vmem>>, vector<1x16x32xf32>
    %46 = vector.shape_cast %45 : vector<1x16x32xf32> to vector<16x32xf32>
    %47 = vector.shape_cast %44 : vector<16x32xf32> to vector<1x16x32xf32>
    tpu.vector_store %arg9[%c7, %c0_22, %c0_23], %47 {strides = array<i32>} : memref<12x16x32xf32, #tpu.memory_space<vmem>>, vector<1x16x32xf32>,
    %48 = vector.extract_strided_slice %15 {offsets = [128, 0], sizes = [16, 32], strides = [1, 1]} : vector<192x32xf32> to vector<16x32xf32>
    %c8 = arith.constant 8 : index
    %c0_24 = arith.constant 0 : index
    %c0_25 = arith.constant 0 : index
    %49 = vector.load %arg9[%c8, %c0_24, %c0_25] : memref<12x16x32xf32, #tpu.memory_space<vmem>>, vector<1x16x32xf32>
    %50 = vector.shape_cast %49 : vector<1x16x32xf32> to vector<16x32xf32>
    %51 = vector.shape_cast %48 : vector<16x32xf32> to vector<1x16x32xf32>
    tpu.vector_store %arg9[%c8, %c0_24, %c0_25], %51 {strides = array<i32>} : memref<12x16x32xf32, #tpu.memory_space<vmem>>, vector<1x16x32xf32>,
    %52 = vector.extract_strided_slice %15 {offsets = [144, 0], sizes = [16, 32], strides = [1, 1]} : vector<192x32xf32> to vector<16x32xf32>
    %c9 = arith.constant 9 : index
    %c0_26 = arith.constant 0 : index
    %c0_27 = arith.constant 0 : index
    %53 = vector.load %arg9[%c9, %c0_26, %c0_27] : memref<12x16x32xf32, #tpu.memory_space<vmem>>, vector<1x16x32xf32>
    %54 = vector.shape_cast %53 : vector<1x16x32xf32> to vector<16x32xf32>
    %55 = vector.shape_cast %52 : vector<16x32xf32> to vector<1x16x32xf32>
    tpu.vector_store %arg9[%c9, %c0_26, %c0_27], %55 {strides = array<i32>} : memref<12x16x32xf32, #tpu.memory_space<vmem>>, vector<1x16x32xf32>,
    %56 = vector.extract_strided_slice %15 {offsets = [160, 0], sizes = [16, 32], strides = [1, 1]} : vector<192x32xf32> to vector<16x32xf32>
    %c10 = arith.constant 10 : index
    %c0_28 = arith.constant 0 : index
    %c0_29 = arith.constant 0 : index
    %57 = vector.load %arg9[%c10, %c0_28, %c0_29] : memref<12x16x32xf32, #tpu.memory_space<vmem>>, vector<1x16x32xf32>
    %58 = vector.shape_cast %57 : vector<1x16x32xf32> to vector<16x32xf32>
    %59 = vector.shape_cast %56 : vector<16x32xf32> to vector<1x16x32xf32>
    tpu.vector_store %arg9[%c10, %c0_28, %c0_29], %59 {strides = array<i32>} : memref<12x16x32xf32, #tpu.memory_space<vmem>>, vector<1x16x32xf32>,
    %60 = vector.extract_strided_slice %15 {offsets = [176, 0], sizes = [16, 32], strides = [1, 1]} : vector<192x32xf32> to vector<16x32xf32>
    %c11 = arith.constant 11 : index
    %c0_30 = arith.constant 0 : index
    %c0_31 = arith.constant 0 : index
    %61 = vector.load %arg9[%c11, %c0_30, %c0_31] : memref<12x16x32xf32, #tpu.memory_space<vmem>>, vector<1x16x32xf32>
    %62 = vector.shape_cast %61 : vector<1x16x32xf32> to vector<16x32xf32>
    %63 = vector.shape_cast %60 : vector<16x32xf32> to vector<1x16x32xf32>
    tpu.vector_store %arg9[%c11, %c0_30, %c0_31], %63 {strides = array<i32>} : memref<12x16x32xf32, #tpu.memory_space<vmem>>, vector<1x16x32xf32>,
    %cst_32 = arith.constant 0.000000e+00 : f32
    %64 = vector.broadcast %cst_32 : f32 to vector<64x64xf32>
    %c0_33 = arith.constant 0 : index
    %c0_34 = arith.constant 0 : index
    %c0_35 = arith.constant 0 : index
    %65 = vector.load %arg9[%c0_33, %c0_34, %c0_35] : memref<12x16x32xf32, #tpu.memory_space<vmem>>, vector<8x8x32xf32>
    %66 = vector.shape_cast %65 : vector<8x8x32xf32> to vector<64x32xf32>
    %67 = arith.truncf %66 : vector<64x32xf32> to vector<64x32xbf16>
    %c0_36 = arith.constant 0 : index
    %c0_37 = arith.constant 0 : index
    %c0_38 = arith.constant 0 : index
    %68 = vector.load %arg4[%c0_36, %c0_37, %c0_38] : memref<25x32x64xbf16, #tpu.memory_space<vmem>>, vector<1x32x64xbf16>
    %69 = vector.shape_cast %68 : vector<1x32x64xbf16> to vector<32x64xbf16>
    %cst_39 = arith.constant dense<0.000000e+00> : vector<64x64xf32>
    %70 = tpu.matmul %67, %69, %cst_39 {dimension_numbers = #tpu.dot_dimension_numbers<[1], [0], [0], [1], [0, 0, 1, 1], [], []>} : vector<64x32xbf16>, vector<32x64xbf16>, vector<64x64xf32> -> vector<64x64xf32>
    %71 = arith.addf %64, %70 : vector<64x64xf32>
    %c0_40 = arith.constant 0 : index
    %c1_41 = arith.constant 1 : index
    %c0_42 = arith.constant 0 : index
    %72 = vector.load %arg9[%c0_40, %c1_41, %c0_42] : memref<12x16x32xf32, #tpu.memory_space<vmem>>, vector<8x8x32xf32>
    %73 = vector.shape_cast %72 : vector<8x8x32xf32> to vector<64x32xf32>
    %74 = arith.truncf %73 : vector<64x32xf32> to vector<64x32xbf16>
    %c1_43 = arith.constant 1 : index
    %c0_44 = arith.constant 0 : index
    %c0_45 = arith.constant 0 : index
    %75 = vector.load %arg4[%c1_43, %c0_44, %c0_45] : memref<25x32x64xbf16, #tpu.memory_space<vmem>>, vector<1x32x64xbf16>
    %76 = vector.shape_cast %75 : vector<1x32x64xbf16> to vector<32x64xbf16>
    %cst_46 = arith.constant dense<0.000000e+00> : vector<64x64xf32>
    %77 = tpu.matmul %74, %76, %cst_46 {dimension_numbers = #tpu.dot_dimension_numbers<[1], [0], [0], [1], [0, 0, 1, 1], [], []>} : vector<64x32xbf16>, vector<32x64xbf16>, vector<64x64xf32> -> vector<64x64xf32>
    %78 = arith.addf %71, %77 : vector<64x64xf32>
    %c0_47 = arith.constant 0 : index
    %c2_48 = arith.constant 2 : index
    %c0_49 = arith.constant 0 : index
    %79 = vector.load %arg9[%c0_47, %c2_48, %c0_49] : memref<12x16x32xf32, #tpu.memory_space<vmem>>, vector<8x8x32xf32>
    %80 = vector.shape_cast %79 : vector<8x8x32xf32> to vector<64x32xf32>
    %81 = arith.truncf %80 : vector<64x32xf32> to vector<64x32xbf16>
    %c2_50 = arith.constant 2 : index
    %c0_51 = arith.constant 0 : index
    %c0_52 = arith.constant 0 : index
    %82 = vector.load %arg4[%c2_50, %c0_51, %c0_52] : memref<25x32x64xbf16, #tpu.memory_space<vmem>>, vector<1x32x64xbf16>
    %83 = vector.shape_cast %82 : vector<1x32x64xbf16> to vector<32x64xbf16>
    %cst_53 = arith.constant dense<0.000000e+00> : vector<64x64xf32>
    %84 = tpu.matmul %81, %83, %cst_53 {dimension_numbers = #tpu.dot_dimension_numbers<[1], [0], [0], [1], [0, 0, 1, 1], [], []>} : vector<64x32xbf16>, vector<32x64xbf16>, vector<64x64xf32> -> vector<64x64xf32>
    %85 = arith.addf %78, %84 : vector<64x64xf32>
    %c0_54 = arith.constant 0 : index
    %c3_55 = arith.constant 3 : index
    %c0_56 = arith.constant 0 : index
    %86 = vector.load %arg9[%c0_54, %c3_55, %c0_56] : memref<12x16x32xf32, #tpu.memory_space<vmem>>, vector<8x8x32xf32>
    %87 = vector.shape_cast %86 : vector<8x8x32xf32> to vector<64x32xf32>
    %88 = arith.truncf %87 : vector<64x32xf32> to vector<64x32xbf16>
    %c3_57 = arith.constant 3 : index
    %c0_58 = arith.constant 0 : index
    %c0_59 = arith.constant 0 : index
    %89 = vector.load %arg4[%c3_57, %c0_58, %c0_59] : memref<25x32x64xbf16, #tpu.memory_space<vmem>>, vector<1x32x64xbf16>
    %90 = vector.shape_cast %89 : vector<1x32x64xbf16> to vector<32x64xbf16>
    %cst_60 = arith.constant dense<0.000000e+00> : vector<64x64xf32>
    %91 = tpu.matmul %88, %90, %cst_60 {dimension_numbers = #tpu.dot_dimension_numbers<[1], [0], [0], [1], [0, 0, 1, 1], [], []>} : vector<64x32xbf16>, vector<32x64xbf16>, vector<64x64xf32> -> vector<64x64xf32>
    %92 = arith.addf %85, %91 : vector<64x64xf32>
    %c0_61 = arith.constant 0 : index
    %c4_62 = arith.constant 4 : index
    %c0_63 = arith.constant 0 : index
    %93 = vector.load %arg9[%c0_61, %c4_62, %c0_63] : memref<12x16x32xf32, #tpu.memory_space<vmem>>, vector<8x8x32xf32>
    %94 = vector.shape_cast %93 : vector<8x8x32xf32> to vector<64x32xf32>
    %95 = arith.truncf %94 : vector<64x32xf32> to vector<64x32xbf16>
    %c4_64 = arith.constant 4 : index
    %c0_65 = arith.constant 0 : index
    %c0_66 = arith.constant 0 : index
    %96 = vector.load %arg4[%c4_64, %c0_65, %c0_66] : memref<25x32x64xbf16, #tpu.memory_space<vmem>>, vector<1x32x64xbf16>
    %97 = vector.shape_cast %96 : vector<1x32x64xbf16> to vector<32x64xbf16>
    %cst_67 = arith.constant dense<0.000000e+00> : vector<64x64xf32>
    %98 = tpu.matmul %95, %97, %cst_67 {dimension_numbers = #tpu.dot_dimension_numbers<[1], [0], [0], [1], [0, 0, 1, 1], [], []>} : vector<64x32xbf16>, vector<32x64xbf16>, vector<64x64xf32> -> vector<64x64xf32>
    %99 = arith.addf %92, %98 : vector<64x64xf32>
    %c1_68 = arith.constant 1 : index
    %c0_69 = arith.constant 0 : index
    %c0_70 = arith.constant 0 : index
    %100 = vector.load %arg9[%c1_68, %c0_69, %c0_70] : memref<12x16x32xf32, #tpu.memory_space<vmem>>, vector<8x8x32xf32>
    %101 = vector.shape_cast %100 : vector<8x8x32xf32> to vector<64x32xf32>
    %102 = arith.truncf %101 : vector<64x32xf32> to vector<64x32xbf16>
    %c5_71 = arith.constant 5 : index
    %c0_72 = arith.constant 0 : index
    %c0_73 = arith.constant 0 : index
    %103 = vector.load %arg4[%c5_71, %c0_72, %c0_73] : memref<25x32x64xbf16, #tpu.memory_space<vmem>>, vector<1x32x64xbf16>
    %104 = vector.shape_cast %103 : vector<1x32x64xbf16> to vector<32x64xbf16>
    %cst_74 = arith.constant dense<0.000000e+00> : vector<64x64xf32>
    %105 = tpu.matmul %102, %104, %cst_74 {dimension_numbers = #tpu.dot_dimension_numbers<[1], [0], [0], [1], [0, 0, 1, 1], [], []>} : vector<64x32xbf16>, vector<32x64xbf16>, vector<64x64xf32> -> vector<64x64xf32>
    %106 = arith.addf %99, %105 : vector<64x64xf32>
    %c1_75 = arith.constant 1 : index
    %c1_76 = arith.constant 1 : index
    %c0_77 = arith.constant 0 : index
    %107 = vector.load %arg9[%c1_75, %c1_76, %c0_77] : memref<12x16x32xf32, #tpu.memory_space<vmem>>, vector<8x8x32xf32>
    %108 = vector.shape_cast %107 : vector<8x8x32xf32> to vector<64x32xf32>
    %109 = arith.truncf %108 : vector<64x32xf32> to vector<64x32xbf16>
    %c6_78 = arith.constant 6 : index
    %c0_79 = arith.constant 0 : index
    %c0_80 = arith.constant 0 : index
    %110 = vector.load %arg4[%c6_78, %c0_79, %c0_80] : memref<25x32x64xbf16, #tpu.memory_space<vmem>>, vector<1x32x64xbf16>
    %111 = vector.shape_cast %110 : vector<1x32x64xbf16> to vector<32x64xbf16>
    %cst_81 = arith.constant dense<0.000000e+00> : vector<64x64xf32>
    %112 = tpu.matmul %109, %111, %cst_81 {dimension_numbers = #tpu.dot_dimension_numbers<[1], [0], [0], [1], [0, 0, 1, 1], [], []>} : vector<64x32xbf16>, vector<32x64xbf16>, vector<64x64xf32> -> vector<64x64xf32>
    %113 = arith.addf %106, %112 : vector<64x64xf32>
    %c1_82 = arith.constant 1 : index
    %c2_83 = arith.constant 2 : index
    %c0_84 = arith.constant 0 : index
    %114 = vector.load %arg9[%c1_82, %c2_83, %c0_84] : memref<12x16x32xf32, #tpu.memory_space<vmem>>, vector<8x8x32xf32>
    %115 = vector.shape_cast %114 : vector<8x8x32xf32> to vector<64x32xf32>
    %116 = arith.truncf %115 : vector<64x32xf32> to vector<64x32xbf16>
    %c7_85 = arith.constant 7 : index
    %c0_86 = arith.constant 0 : index
    %c0_87 = arith.constant 0 : index
    %117 = vector.load %arg4[%c7_85, %c0_86, %c0_87] : memref<25x32x64xbf16, #tpu.memory_space<vmem>>, vector<1x32x64xbf16>
    %118 = vector.shape_cast %117 : vector<1x32x64xbf16> to vector<32x64xbf16>
    %cst_88 = arith.constant dense<0.000000e+00> : vector<64x64xf32>
    %119 = tpu.matmul %116, %118, %cst_88 {dimension_numbers = #tpu.dot_dimension_numbers<[1], [0], [0], [1], [0, 0, 1, 1], [], []>} : vector<64x32xbf16>, vector<32x64xbf16>, vector<64x64xf32> -> vector<64x64xf32>
    %120 = arith.addf %113, %119 : vector<64x64xf32>
    %c1_89 = arith.constant 1 : index
    %c3_90 = arith.constant 3 : index
    %c0_91 = arith.constant 0 : index
    %121 = vector.load %arg9[%c1_89, %c3_90, %c0_91] : memref<12x16x32xf32, #tpu.memory_space<vmem>>, vector<8x8x32xf32>
    %122 = vector.shape_cast %121 : vector<8x8x32xf32> to vector<64x32xf32>
    %123 = arith.truncf %122 : vector<64x32xf32> to vector<64x32xbf16>
    %c8_92 = arith.constant 8 : index
    %c0_93 = arith.constant 0 : index
    %c0_94 = arith.constant 0 : index
    %124 = vector.load %arg4[%c8_92, %c0_93, %c0_94] : memref<25x32x64xbf16, #tpu.memory_space<vmem>>, vector<1x32x64xbf16>
    %125 = vector.shape_cast %124 : vector<1x32x64xbf16> to vector<32x64xbf16>
    %cst_95 = arith.constant dense<0.000000e+00> : vector<64x64xf32>
    %126 = tpu.matmul %123, %125, %cst_95 {dimension_numbers = #tpu.dot_dimension_numbers<[1], [0], [0], [1], [0, 0, 1, 1], [], []>} : vector<64x32xbf16>, vector<32x64xbf16>, vector<64x64xf32> -> vector<64x64xf32>
    %127 = arith.addf %120, %126 : vector<64x64xf32>
    %c1_96 = arith.constant 1 : index
    %c4_97 = arith.constant 4 : index
    %c0_98 = arith.constant 0 : index
    %128 = vector.load %arg9[%c1_96, %c4_97, %c0_98] : memref<12x16x32xf32, #tpu.memory_space<vmem>>, vector<8x8x32xf32>
    %129 = vector.shape_cast %128 : vector<8x8x32xf32> to vector<64x32xf32>
    %130 = arith.truncf %129 : vector<64x32xf32> to vector<64x32xbf16>
    %c9_99 = arith.constant 9 : index
    %c0_100 = arith.constant 0 : index
    %c0_101 = arith.constant 0 : index
    %131 = vector.load %arg4[%c9_99, %c0_100, %c0_101] : memref<25x32x64xbf16, #tpu.memory_space<vmem>>, vector<1x32x64xbf16>
    %132 = vector.shape_cast %131 : vector<1x32x64xbf16> to vector<32x64xbf16>
    %cst_102 = arith.constant dense<0.000000e+00> : vector<64x64xf32>
    %133 = tpu.matmul %130, %132, %cst_102 {dimension_numbers = #tpu.dot_dimension_numbers<[1], [0], [0], [1], [0, 0, 1, 1], [], []>} : vector<64x32xbf16>, vector<32x64xbf16>, vector<64x64xf32> -> vector<64x64xf32>
    %134 = arith.addf %127, %133 : vector<64x64xf32>
    %c2_103 = arith.constant 2 : index
    %c0_104 = arith.constant 0 : index
    %c0_105 = arith.constant 0 : index
    %135 = vector.load %arg9[%c2_103, %c0_104, %c0_105] : memref<12x16x32xf32, #tpu.memory_space<vmem>>, vector<8x8x32xf32>
    %136 = vector.shape_cast %135 : vector<8x8x32xf32> to vector<64x32xf32>
    %137 = arith.truncf %136 : vector<64x32xf32> to vector<64x32xbf16>
    %c10_106 = arith.constant 10 : index
    %c0_107 = arith.constant 0 : index
    %c0_108 = arith.constant 0 : index
    %138 = vector.load %arg4[%c10_106, %c0_107, %c0_108] : memref<25x32x64xbf16, #tpu.memory_space<vmem>>, vector<1x32x64xbf16>
    %139 = vector.shape_cast %138 : vector<1x32x64xbf16> to vector<32x64xbf16>
    %cst_109 = arith.constant dense<0.000000e+00> : vector<64x64xf32>
    %140 = tpu.matmul %137, %139, %cst_109 {dimension_numbers = #tpu.dot_dimension_numbers<[1], [0], [0], [1], [0, 0, 1, 1], [], []>} : vector<64x32xbf16>, vector<32x64xbf16>, vector<64x64xf32> -> vector<64x64xf32>
    %141 = arith.addf %134, %140 : vector<64x64xf32>
    %c2_110 = arith.constant 2 : index
    %c1_111 = arith.constant 1 : index
    %c0_112 = arith.constant 0 : index
    %142 = vector.load %arg9[%c2_110, %c1_111, %c0_112] : memref<12x16x32xf32, #tpu.memory_space<vmem>>, vector<8x8x32xf32>
    %143 = vector.shape_cast %142 : vector<8x8x32xf32> to vector<64x32xf32>
    %144 = arith.truncf %143 : vector<64x32xf32> to vector<64x32xbf16>
    %c11_113 = arith.constant 11 : index
    %c0_114 = arith.constant 0 : index
    %c0_115 = arith.constant 0 : index
    %145 = vector.load %arg4[%c11_113, %c0_114, %c0_115] : memref<25x32x64xbf16, #tpu.memory_space<vmem>>, vector<1x32x64xbf16>
    %146 = vector.shape_cast %145 : vector<1x32x64xbf16> to vector<32x64xbf16>
    %cst_116 = arith.constant dense<0.000000e+00> : vector<64x64xf32>
    %147 = tpu.matmul %144, %146, %cst_116 {dimension_numbers = #tpu.dot_dimension_numbers<[1], [0], [0], [1], [0, 0, 1, 1], [], []>} : vector<64x32xbf16>, vector<32x64xbf16>, vector<64x64xf32> -> vector<64x64xf32>
    %148 = arith.addf %141, %147 : vector<64x64xf32>
    %c2_117 = arith.constant 2 : index
    %c2_118 = arith.constant 2 : index
    %c0_119 = arith.constant 0 : index
    %149 = vector.load %arg9[%c2_117, %c2_118, %c0_119] : memref<12x16x32xf32, #tpu.memory_space<vmem>>, vector<8x8x32xf32>
    %150 = vector.shape_cast %149 : vector<8x8x32xf32> to vector<64x32xf32>
    %151 = arith.truncf %150 : vector<64x32xf32> to vector<64x32xbf16>
    %c12 = arith.constant 12 : index
    %c0_120 = arith.constant 0 : index
    %c0_121 = arith.constant 0 : index
    %152 = vector.load %arg4[%c12, %c0_120, %c0_121] : memref<25x32x64xbf16, #tpu.memory_space<vmem>>, vector<1x32x64xbf16>
    %153 = vector.shape_cast %152 : vector<1x32x64xbf16> to vector<32x64xbf16>
    %cst_122 = arith.constant dense<0.000000e+00> : vector<64x64xf32>
    %154 = tpu.matmul %151, %153, %cst_122 {dimension_numbers = #tpu.dot_dimension_numbers<[1], [0], [0], [1], [0, 0, 1, 1], [], []>} : vector<64x32xbf16>, vector<32x64xbf16>, vector<64x64xf32> -> vector<64x64xf32>
    %155 = arith.addf %148, %154 : vector<64x64xf32>
    %c2_123 = arith.constant 2 : index
    %c3_124 = arith.constant 3 : index
    %c0_125 = arith.constant 0 : index
    %156 = vector.load %arg9[%c2_123, %c3_124, %c0_125] : memref<12x16x32xf32, #tpu.memory_space<vmem>>, vector<8x8x32xf32>
    %157 = vector.shape_cast %156 : vector<8x8x32xf32> to vector<64x32xf32>
    %158 = arith.truncf %157 : vector<64x32xf32> to vector<64x32xbf16>
    %c13 = arith.constant 13 : index
    %c0_126 = arith.constant 0 : index
    %c0_127 = arith.constant 0 : index
    %159 = vector.load %arg4[%c13, %c0_126, %c0_127] : memref<25x32x64xbf16, #tpu.memory_space<vmem>>, vector<1x32x64xbf16>
    %160 = vector.shape_cast %159 : vector<1x32x64xbf16> to vector<32x64xbf16>
    %cst_128 = arith.constant dense<0.000000e+00> : vector<64x64xf32>
    %161 = tpu.matmul %158, %160, %cst_128 {dimension_numbers = #tpu.dot_dimension_numbers<[1], [0], [0], [1], [0, 0, 1, 1], [], []>} : vector<64x32xbf16>, vector<32x64xbf16>, vector<64x64xf32> -> vector<64x64xf32>
    %162 = arith.addf %155, %161 : vector<64x64xf32>
    %c2_129 = arith.constant 2 : index
    %c4_130 = arith.constant 4 : index
    %c0_131 = arith.constant 0 : index
    %163 = vector.load %arg9[%c2_129, %c4_130, %c0_131] : memref<12x16x32xf32, #tpu.memory_space<vmem>>, vector<8x8x32xf32>
    %164 = vector.shape_cast %163 : vector<8x8x32xf32> to vector<64x32xf32>
    %165 = arith.truncf %164 : vector<64x32xf32> to vector<64x32xbf16>
    %c14 = arith.constant 14 : index
    %c0_132 = arith.constant 0 : index
    %c0_133 = arith.constant 0 : index
    %166 = vector.load %arg4[%c14, %c0_132, %c0_133] : memref<25x32x64xbf16, #tpu.memory_space<vmem>>, vector<1x32x64xbf16>
    %167 = vector.shape_cast %166 : vector<1x32x64xbf16> to vector<32x64xbf16>
    %cst_134 = arith.constant dense<0.000000e+00> : vector<64x64xf32>
    %168 = tpu.matmul %165, %167, %cst_134 {dimension_numbers = #tpu.dot_dimension_numbers<[1], [0], [0], [1], [0, 0, 1, 1], [], []>} : vector<64x32xbf16>, vector<32x64xbf16>, vector<64x64xf32> -> vector<64x64xf32>
    %169 = arith.addf %162, %168 : vector<64x64xf32>
    %c3_135 = arith.constant 3 : index
    %c0_136 = arith.constant 0 : index
    %c0_137 = arith.constant 0 : index
    %170 = vector.load %arg9[%c3_135, %c0_136, %c0_137] : memref<12x16x32xf32, #tpu.memory_space<vmem>>, vector<8x8x32xf32>
    %171 = vector.shape_cast %170 : vector<8x8x32xf32> to vector<64x32xf32>
    %172 = arith.truncf %171 : vector<64x32xf32> to vector<64x32xbf16>
    %c15 = arith.constant 15 : index
    %c0_138 = arith.constant 0 : index
    %c0_139 = arith.constant 0 : index
    %173 = vector.load %arg4[%c15, %c0_138, %c0_139] : memref<25x32x64xbf16, #tpu.memory_space<vmem>>, vector<1x32x64xbf16>
    %174 = vector.shape_cast %173 : vector<1x32x64xbf16> to vector<32x64xbf16>
    %cst_140 = arith.constant dense<0.000000e+00> : vector<64x64xf32>
    %175 = tpu.matmul %172, %174, %cst_140 {dimension_numbers = #tpu.dot_dimension_numbers<[1], [0], [0], [1], [0, 0, 1, 1], [], []>} : vector<64x32xbf16>, vector<32x64xbf16>, vector<64x64xf32> -> vector<64x64xf32>
    %176 = arith.addf %169, %175 : vector<64x64xf32>
    %c3_141 = arith.constant 3 : index
    %c1_142 = arith.constant 1 : index
    %c0_143 = arith.constant 0 : index
    %177 = vector.load %arg9[%c3_141, %c1_142, %c0_143] : memref<12x16x32xf32, #tpu.memory_space<vmem>>, vector<8x8x32xf32>
    %178 = vector.shape_cast %177 : vector<8x8x32xf32> to vector<64x32xf32>
    %179 = arith.truncf %178 : vector<64x32xf32> to vector<64x32xbf16>
    %c16 = arith.constant 16 : index
    %c0_144 = arith.constant 0 : index
    %c0_145 = arith.constant 0 : index
    %180 = vector.load %arg4[%c16, %c0_144, %c0_145] : memref<25x32x64xbf16, #tpu.memory_space<vmem>>, vector<1x32x64xbf16>
    %181 = vector.shape_cast %180 : vector<1x32x64xbf16> to vector<32x64xbf16>
    %cst_146 = arith.constant dense<0.000000e+00> : vector<64x64xf32>
    %182 = tpu.matmul %179, %181, %cst_146 {dimension_numbers = #tpu.dot_dimension_numbers<[1], [0], [0], [1], [0, 0, 1, 1], [], []>} : vector<64x32xbf16>, vector<32x64xbf16>, vector<64x64xf32> -> vector<64x64xf32>
    %183 = arith.addf %176, %182 : vector<64x64xf32>
    %c3_147 = arith.constant 3 : index
    %c2_148 = arith.constant 2 : index
    %c0_149 = arith.constant 0 : index
    %184 = vector.load %arg9[%c3_147, %c2_148, %c0_149] : memref<12x16x32xf32, #tpu.memory_space<vmem>>, vector<8x8x32xf32>
    %185 = vector.shape_cast %184 : vector<8x8x32xf32> to vector<64x32xf32>
    %186 = arith.truncf %185 : vector<64x32xf32> to vector<64x32xbf16>
    %c17 = arith.constant 17 : index
    %c0_150 = arith.constant 0 : index
    %c0_151 = arith.constant 0 : index
    %187 = vector.load %arg4[%c17, %c0_150, %c0_151] : memref<25x32x64xbf16, #tpu.memory_space<vmem>>, vector<1x32x64xbf16>
    %188 = vector.shape_cast %187 : vector<1x32x64xbf16> to vector<32x64xbf16>
    %cst_152 = arith.constant dense<0.000000e+00> : vector<64x64xf32>
    %189 = tpu.matmul %186, %188, %cst_152 {dimension_numbers = #tpu.dot_dimension_numbers<[1], [0], [0], [1], [0, 0, 1, 1], [], []>} : vector<64x32xbf16>, vector<32x64xbf16>, vector<64x64xf32> -> vector<64x64xf32>
    %190 = arith.addf %183, %189 : vector<64x64xf32>
    %c3_153 = arith.constant 3 : index
    %c3_154 = arith.constant 3 : index
    %c0_155 = arith.constant 0 : index
    %191 = vector.load %arg9[%c3_153, %c3_154, %c0_155] : memref<12x16x32xf32, #tpu.memory_space<vmem>>, vector<8x8x32xf32>
    %192 = vector.shape_cast %191 : vector<8x8x32xf32> to vector<64x32xf32>
    %193 = arith.truncf %192 : vector<64x32xf32> to vector<64x32xbf16>
    %c18 = arith.constant 18 : index
    %c0_156 = arith.constant 0 : index
    %c0_157 = arith.constant 0 : index
    %194 = vector.load %arg4[%c18, %c0_156, %c0_157] : memref<25x32x64xbf16, #tpu.memory_space<vmem>>, vector<1x32x64xbf16>
    %195 = vector.shape_cast %194 : vector<1x32x64xbf16> to vector<32x64xbf16>
    %cst_158 = arith.constant dense<0.000000e+00> : vector<64x64xf32>
    %196 = tpu.matmul %193, %195, %cst_158 {dimension_numbers = #tpu.dot_dimension_numbers<[1], [0], [0], [1], [0, 0, 1, 1], [], []>} : vector<64x32xbf16>, vector<32x64xbf16>, vector<64x64xf32> -> vector<64x64xf32>
    %197 = arith.addf %190, %196 : vector<64x64xf32>
    %c3_159 = arith.constant 3 : index
    %c4_160 = arith.constant 4 : index
    %c0_161 = arith.constant 0 : index
    %198 = vector.load %arg9[%c3_159, %c4_160, %c0_161] : memref<12x16x32xf32, #tpu.memory_space<vmem>>, vector<8x8x32xf32>
    %199 = vector.shape_cast %198 : vector<8x8x32xf32> to vector<64x32xf32>
    %200 = arith.truncf %199 : vector<64x32xf32> to vector<64x32xbf16>
    %c19 = arith.constant 19 : index
    %c0_162 = arith.constant 0 : index
    %c0_163 = arith.constant 0 : index
    %201 = vector.load %arg4[%c19, %c0_162, %c0_163] : memref<25x32x64xbf16, #tpu.memory_space<vmem>>, vector<1x32x64xbf16>
    %202 = vector.shape_cast %201 : vector<1x32x64xbf16> to vector<32x64xbf16>
    %cst_164 = arith.constant dense<0.000000e+00> : vector<64x64xf32>
    %203 = tpu.matmul %200, %202, %cst_164 {dimension_numbers = #tpu.dot_dimension_numbers<[1], [0], [0], [1], [0, 0, 1, 1], [], []>} : vector<64x32xbf16>, vector<32x64xbf16>, vector<64x64xf32> -> vector<64x64xf32>
    %204 = arith.addf %197, %203 : vector<64x64xf32>
    %c4_165 = arith.constant 4 : index
    %c0_166 = arith.constant 0 : index
    %c0_167 = arith.constant 0 : index
    %205 = vector.load %arg9[%c4_165, %c0_166, %c0_167] : memref<12x16x32xf32, #tpu.memory_space<vmem>>, vector<8x8x32xf32>
    %206 = vector.shape_cast %205 : vector<8x8x32xf32> to vector<64x32xf32>
    %207 = arith.truncf %206 : vector<64x32xf32> to vector<64x32xbf16>
    %c20 = arith.constant 20 : index
    %c0_168 = arith.constant 0 : index
    %c0_169 = arith.constant 0 : index
    %208 = vector.load %arg4[%c20, %c0_168, %c0_169] : memref<25x32x64xbf16, #tpu.memory_space<vmem>>, vector<1x32x64xbf16>
    %209 = vector.shape_cast %208 : vector<1x32x64xbf16> to vector<32x64xbf16>
    %cst_170 = arith.constant dense<0.000000e+00> : vector<64x64xf32>
    %210 = tpu.matmul %207, %209, %cst_170 {dimension_numbers = #tpu.dot_dimension_numbers<[1], [0], [0], [1], [0, 0, 1, 1], [], []>} : vector<64x32xbf16>, vector<32x64xbf16>, vector<64x64xf32> -> vector<64x64xf32>
    %211 = arith.addf %204, %210 : vector<64x64xf32>
    %c4_171 = arith.constant 4 : index
    %c1_172 = arith.constant 1 : index
    %c0_173 = arith.constant 0 : index
    %212 = vector.load %arg9[%c4_171, %c1_172, %c0_173] : memref<12x16x32xf32, #tpu.memory_space<vmem>>, vector<8x8x32xf32>
    %213 = vector.shape_cast %212 : vector<8x8x32xf32> to vector<64x32xf32>
    %214 = arith.truncf %213 : vector<64x32xf32> to vector<64x32xbf16>
    %c21 = arith.constant 21 : index
    %c0_174 = arith.constant 0 : index
    %c0_175 = arith.constant 0 : index
    %215 = vector.load %arg4[%c21, %c0_174, %c0_175] : memref<25x32x64xbf16, #tpu.memory_space<vmem>>, vector<1x32x64xbf16>
    %216 = vector.shape_cast %215 : vector<1x32x64xbf16> to vector<32x64xbf16>
    %cst_176 = arith.constant dense<0.000000e+00> : vector<64x64xf32>
    %217 = tpu.matmul %214, %216, %cst_176 {dimension_numbers = #tpu.dot_dimension_numbers<[1], [0], [0], [1], [0, 0, 1, 1], [], []>} : vector<64x32xbf16>, vector<32x64xbf16>, vector<64x64xf32> -> vector<64x64xf32>
    %218 = arith.addf %211, %217 : vector<64x64xf32>
    %c4_177 = arith.constant 4 : index
    %c2_178 = arith.constant 2 : index
    %c0_179 = arith.constant 0 : index
    %219 = vector.load %arg9[%c4_177, %c2_178, %c0_179] : memref<12x16x32xf32, #tpu.memory_space<vmem>>, vector<8x8x32xf32>
    %220 = vector.shape_cast %219 : vector<8x8x32xf32> to vector<64x32xf32>
    %221 = arith.truncf %220 : vector<64x32xf32> to vector<64x32xbf16>
    %c22 = arith.constant 22 : index
    %c0_180 = arith.constant 0 : index
    %c0_181 = arith.constant 0 : index
    %222 = vector.load %arg4[%c22, %c0_180, %c0_181] : memref<25x32x64xbf16, #tpu.memory_space<vmem>>, vector<1x32x64xbf16>
    %223 = vector.shape_cast %222 : vector<1x32x64xbf16> to vector<32x64xbf16>
    %cst_182 = arith.constant dense<0.000000e+00> : vector<64x64xf32>
    %224 = tpu.matmul %221, %223, %cst_182 {dimension_numbers = #tpu.dot_dimension_numbers<[1], [0], [0], [1], [0, 0, 1, 1], [], []>} : vector<64x32xbf16>, vector<32x64xbf16>, vector<64x64xf32> -> vector<64x64xf32>
    %225 = arith.addf %218, %224 : vector<64x64xf32>
    %c4_183 = arith.constant 4 : index
    %c3_184 = arith.constant 3 : index
    %c0_185 = arith.constant 0 : index
    %226 = vector.load %arg9[%c4_183, %c3_184, %c0_185] : memref<12x16x32xf32, #tpu.memory_space<vmem>>, vector<8x8x32xf32>
    %227 = vector.shape_cast %226 : vector<8x8x32xf32> to vector<64x32xf32>
    %228 = arith.truncf %227 : vector<64x32xf32> to vector<64x32xbf16>
    %c23 = arith.constant 23 : index
    %c0_186 = arith.constant 0 : index
    %c0_187 = arith.constant 0 : index
    %229 = vector.load %arg4[%c23, %c0_186, %c0_187] : memref<25x32x64xbf16, #tpu.memory_space<vmem>>, vector<1x32x64xbf16>
    %230 = vector.shape_cast %229 : vector<1x32x64xbf16> to vector<32x64xbf16>
    %cst_188 = arith.constant dense<0.000000e+00> : vector<64x64xf32>
    %231 = tpu.matmul %228, %230, %cst_188 {dimension_numbers = #tpu.dot_dimension_numbers<[1], [0], [0], [1], [0, 0, 1, 1], [], []>} : vector<64x32xbf16>, vector<32x64xbf16>, vector<64x64xf32> -> vector<64x64xf32>
    %232 = arith.addf %225, %231 : vector<64x64xf32>
    %c4_189 = arith.constant 4 : index
    %c4_190 = arith.constant 4 : index
    %c0_191 = arith.constant 0 : index
    %233 = vector.load %arg9[%c4_189, %c4_190, %c0_191] : memref<12x16x32xf32, #tpu.memory_space<vmem>>, vector<8x8x32xf32>
    %234 = vector.shape_cast %233 : vector<8x8x32xf32> to vector<64x32xf32>
    %235 = arith.truncf %234 : vector<64x32xf32> to vector<64x32xbf16>
    %c24 = arith.constant 24 : index
    %c0_192 = arith.constant 0 : index
    %c0_193 = arith.constant 0 : index
    %236 = vector.load %arg4[%c24, %c0_192, %c0_193] : memref<25x32x64xbf16, #tpu.memory_space<vmem>>, vector<1x32x64xbf16>
    %237 = vector.shape_cast %236 : vector<1x32x64xbf16> to vector<32x64xbf16>
    %cst_194 = arith.constant dense<0.000000e+00> : vector<64x64xf32>
    %238 = tpu.matmul %235, %237, %cst_194 {dimension_numbers = #tpu.dot_dimension_numbers<[1], [0], [0], [1], [0, 0, 1, 1], [], []>} : vector<64x32xbf16>, vector<32x64xbf16>, vector<64x64xf32> -> vector<64x64xf32>
    %239 = arith.addf %232, %238 : vector<64x64xf32>
    %c0_195 = arith.constant 0 : index
    %c0_196 = arith.constant 0 : index
    %240 = vector.load %arg5[%c0_195, %c0_196] : memref<1x64xf32, #tpu.memory_space<vmem>>, vector<1x64xf32>
    %241 = vector.broadcast %240 : vector<1x64xf32> to vector<64x64xf32>
    %242 = arith.addf %239, %241 : vector<64x64xf32>
    %cst_197 = arith.constant 0.000000e+00 : f32
    %243 = vector.broadcast %cst_197 : f32 to vector<64x64xf32>
    %244 = arith.maximumf %242, %243 : vector<64x64xf32>
    %cst_198 = arith.constant 0.000000e+00 : f32
    %245 = vector.broadcast %cst_198 : f32 to vector<1x128xf32>
    %246 = vector.extract_strided_slice %244 {offsets = [0, 0], sizes = [8, 64], strides = [1, 1]} : vector<64x64xf32> to vector<8x64xf32>
    %247 = vector.extract_strided_slice %244 {offsets = [8, 0], sizes = [8, 64], strides = [1, 1]} : vector<64x64xf32> to vector<8x64xf32>
    %248 = arith.maximumf %246, %247 : vector<8x64xf32>
    %249 = vector.extract_strided_slice %248 {offsets = [0, 0], sizes = [1, 64], strides = [1, 1]} : vector<8x64xf32> to vector<1x64xf32>
    %250 = vector.extract_strided_slice %248 {offsets = [1, 0], sizes = [1, 64], strides = [1, 1]} : vector<8x64xf32> to vector<1x64xf32>
    %251 = arith.maximumf %249, %250 : vector<1x64xf32>
    %252 = arith.truncf %251 : vector<1x64xf32> to vector<1x64xbf16>
    %c0_199 = arith.constant 0 : index
    %c0_200 = arith.constant 0 : index
    %c0_201 = arith.constant 0 : index
    %253 = vector.load %arg6[%c0_199, %c0_200, %c0_201] : memref<16x64x128xbf16, #tpu.memory_space<vmem>>, vector<1x64x128xbf16>
    %254 = vector.shape_cast %253 : vector<1x64x128xbf16> to vector<64x128xbf16>
    %cst_202 = arith.constant dense<0.000000e+00> : vector<1x128xf32>
    %255 = tpu.matmul %252, %254, %cst_202 {dimension_numbers = #tpu.dot_dimension_numbers<[1], [0], [0], [1], [0, 0, 1, 1], [], []>} : vector<1x64xbf16>, vector<64x128xbf16>, vector<1x128xf32> -> vector<1x128xf32>
    %256 = arith.addf %245, %255 : vector<1x128xf32>
    %257 = vector.extract_strided_slice %248 {offsets = [2, 0], sizes = [1, 64], strides = [1, 1]} : vector<8x64xf32> to vector<1x64xf32>
    %258 = vector.extract_strided_slice %248 {offsets = [3, 0], sizes = [1, 64], strides = [1, 1]} : vector<8x64xf32> to vector<1x64xf32>
    %259 = arith.maximumf %257, %258 : vector<1x64xf32>
    %260 = arith.truncf %259 : vector<1x64xf32> to vector<1x64xbf16>
    %c1_203 = arith.constant 1 : index
    %c0_204 = arith.constant 0 : index
    %c0_205 = arith.constant 0 : index
    %261 = vector.load %arg6[%c1_203, %c0_204, %c0_205] : memref<16x64x128xbf16, #tpu.memory_space<vmem>>, vector<1x64x128xbf16>
    %262 = vector.shape_cast %261 : vector<1x64x128xbf16> to vector<64x128xbf16>
    %cst_206 = arith.constant dense<0.000000e+00> : vector<1x128xf32>
    %263 = tpu.matmul %260, %262, %cst_206 {dimension_numbers = #tpu.dot_dimension_numbers<[1], [0], [0], [1], [0, 0, 1, 1], [], []>} : vector<1x64xbf16>, vector<64x128xbf16>, vector<1x128xf32> -> vector<1x128xf32>
    %264 = arith.addf %256, %263 : vector<1x128xf32>
    %265 = vector.extract_strided_slice %248 {offsets = [4, 0], sizes = [1, 64], strides = [1, 1]} : vector<8x64xf32> to vector<1x64xf32>
    %266 = vector.extract_strided_slice %248 {offsets = [5, 0], sizes = [1, 64], strides = [1, 1]} : vector<8x64xf32> to vector<1x64xf32>
    %267 = arith.maximumf %265, %266 : vector<1x64xf32>
    %268 = arith.truncf %267 : vector<1x64xf32> to vector<1x64xbf16>
    %c2_207 = arith.constant 2 : index
    %c0_208 = arith.constant 0 : index
    %c0_209 = arith.constant 0 : index
    %269 = vector.load %arg6[%c2_207, %c0_208, %c0_209] : memref<16x64x128xbf16, #tpu.memory_space<vmem>>, vector<1x64x128xbf16>
    %270 = vector.shape_cast %269 : vector<1x64x128xbf16> to vector<64x128xbf16>
    %cst_210 = arith.constant dense<0.000000e+00> : vector<1x128xf32>
    %271 = tpu.matmul %268, %270, %cst_210 {dimension_numbers = #tpu.dot_dimension_numbers<[1], [0], [0], [1], [0, 0, 1, 1], [], []>} : vector<1x64xbf16>, vector<64x128xbf16>, vector<1x128xf32> -> vector<1x128xf32>
    %272 = arith.addf %264, %271 : vector<1x128xf32>
    %273 = vector.extract_strided_slice %248 {offsets = [6, 0], sizes = [1, 64], strides = [1, 1]} : vector<8x64xf32> to vector<1x64xf32>
    %274 = vector.extract_strided_slice %248 {offsets = [7, 0], sizes = [1, 64], strides = [1, 1]} : vector<8x64xf32> to vector<1x64xf32>
    %275 = arith.maximumf %273, %274 : vector<1x64xf32>
    %276 = arith.truncf %275 : vector<1x64xf32> to vector<1x64xbf16>
    %c3_211 = arith.constant 3 : index
    %c0_212 = arith.constant 0 : index
    %c0_213 = arith.constant 0 : index
    %277 = vector.load %arg6[%c3_211, %c0_212, %c0_213] : memref<16x64x128xbf16, #tpu.memory_space<vmem>>, vector<1x64x128xbf16>
    %278 = vector.shape_cast %277 : vector<1x64x128xbf16> to vector<64x128xbf16>
    %cst_214 = arith.constant dense<0.000000e+00> : vector<1x128xf32>
    %279 = tpu.matmul %276, %278, %cst_214 {dimension_numbers = #tpu.dot_dimension_numbers<[1], [0], [0], [1], [0, 0, 1, 1], [], []>} : vector<1x64xbf16>, vector<64x128xbf16>, vector<1x128xf32> -> vector<1x128xf32>
    %280 = arith.addf %272, %279 : vector<1x128xf32>
    %281 = vector.extract_strided_slice %244 {offsets = [16, 0], sizes = [8, 64], strides = [1, 1]} : vector<64x64xf32> to vector<8x64xf32>
    %282 = vector.extract_strided_slice %244 {offsets = [24, 0], sizes = [8, 64], strides = [1, 1]} : vector<64x64xf32> to vector<8x64xf32>
    %283 = arith.maximumf %281, %282 : vector<8x64xf32>
    %284 = vector.extract_strided_slice %283 {offsets = [0, 0], sizes = [1, 64], strides = [1, 1]} : vector<8x64xf32> to vector<1x64xf32>
    %285 = vector.extract_strided_slice %283 {offsets = [1, 0], sizes = [1, 64], strides = [1, 1]} : vector<8x64xf32> to vector<1x64xf32>
    %286 = arith.maximumf %284, %285 : vector<1x64xf32>
    %287 = arith.truncf %286 : vector<1x64xf32> to vector<1x64xbf16>
    %c4_215 = arith.constant 4 : index
    %c0_216 = arith.constant 0 : index
    %c0_217 = arith.constant 0 : index
    %288 = vector.load %arg6[%c4_215, %c0_216, %c0_217] : memref<16x64x128xbf16, #tpu.memory_space<vmem>>, vector<1x64x128xbf16>
    %289 = vector.shape_cast %288 : vector<1x64x128xbf16> to vector<64x128xbf16>
    %cst_218 = arith.constant dense<0.000000e+00> : vector<1x128xf32>
    %290 = tpu.matmul %287, %289, %cst_218 {dimension_numbers = #tpu.dot_dimension_numbers<[1], [0], [0], [1], [0, 0, 1, 1], [], []>} : vector<1x64xbf16>, vector<64x128xbf16>, vector<1x128xf32> -> vector<1x128xf32>
    %291 = arith.addf %280, %290 : vector<1x128xf32>
    %292 = vector.extract_strided_slice %283 {offsets = [2, 0], sizes = [1, 64], strides = [1, 1]} : vector<8x64xf32> to vector<1x64xf32>
    %293 = vector.extract_strided_slice %283 {offsets = [3, 0], sizes = [1, 64], strides = [1, 1]} : vector<8x64xf32> to vector<1x64xf32>
    %294 = arith.maximumf %292, %293 : vector<1x64xf32>
    %295 = arith.truncf %294 : vector<1x64xf32> to vector<1x64xbf16>
    %c5_219 = arith.constant 5 : index
    %c0_220 = arith.constant 0 : index
    %c0_221 = arith.constant 0 : index
    %296 = vector.load %arg6[%c5_219, %c0_220, %c0_221] : memref<16x64x128xbf16, #tpu.memory_space<vmem>>, vector<1x64x128xbf16>
    %297 = vector.shape_cast %296 : vector<1x64x128xbf16> to vector<64x128xbf16>
    %cst_222 = arith.constant dense<0.000000e+00> : vector<1x128xf32>
    %298 = tpu.matmul %295, %297, %cst_222 {dimension_numbers = #tpu.dot_dimension_numbers<[1], [0], [0], [1], [0, 0, 1, 1], [], []>} : vector<1x64xbf16>, vector<64x128xbf16>, vector<1x128xf32> -> vector<1x128xf32>
    %299 = arith.addf %291, %298 : vector<1x128xf32>
    %300 = vector.extract_strided_slice %283 {offsets = [4, 0], sizes = [1, 64], strides = [1, 1]} : vector<8x64xf32> to vector<1x64xf32>
    %301 = vector.extract_strided_slice %283 {offsets = [5, 0], sizes = [1, 64], strides = [1, 1]} : vector<8x64xf32> to vector<1x64xf32>
    %302 = arith.maximumf %300, %301 : vector<1x64xf32>
    %303 = arith.truncf %302 : vector<1x64xf32> to vector<1x64xbf16>
    %c6_223 = arith.constant 6 : index
    %c0_224 = arith.constant 0 : index
    %c0_225 = arith.constant 0 : index
    %304 = vector.load %arg6[%c6_223, %c0_224, %c0_225] : memref<16x64x128xbf16, #tpu.memory_space<vmem>>, vector<1x64x128xbf16>
    %305 = vector.shape_cast %304 : vector<1x64x128xbf16> to vector<64x128xbf16>
    %cst_226 = arith.constant dense<0.000000e+00> : vector<1x128xf32>
    %306 = tpu.matmul %303, %305, %cst_226 {dimension_numbers = #tpu.dot_dimension_numbers<[1], [0], [0], [1], [0, 0, 1, 1], [], []>} : vector<1x64xbf16>, vector<64x128xbf16>, vector<1x128xf32> -> vector<1x128xf32>
    %307 = arith.addf %299, %306 : vector<1x128xf32>
    %308 = vector.extract_strided_slice %283 {offsets = [6, 0], sizes = [1, 64], strides = [1, 1]} : vector<8x64xf32> to vector<1x64xf32>
    %309 = vector.extract_strided_slice %283 {offsets = [7, 0], sizes = [1, 64], strides = [1, 1]} : vector<8x64xf32> to vector<1x64xf32>
    %310 = arith.maximumf %308, %309 : vector<1x64xf32>
    %311 = arith.truncf %310 : vector<1x64xf32> to vector<1x64xbf16>
    %c7_227 = arith.constant 7 : index
    %c0_228 = arith.constant 0 : index
    %c0_229 = arith.constant 0 : index
    %312 = vector.load %arg6[%c7_227, %c0_228, %c0_229] : memref<16x64x128xbf16, #tpu.memory_space<vmem>>, vector<1x64x128xbf16>
    %313 = vector.shape_cast %312 : vector<1x64x128xbf16> to vector<64x128xbf16>
    %cst_230 = arith.constant dense<0.000000e+00> : vector<1x128xf32>
    %314 = tpu.matmul %311, %313, %cst_230 {dimension_numbers = #tpu.dot_dimension_numbers<[1], [0], [0], [1], [0, 0, 1, 1], [], []>} : vector<1x64xbf16>, vector<64x128xbf16>, vector<1x128xf32> -> vector<1x128xf32>
    %315 = arith.addf %307, %314 : vector<1x128xf32>
    %316 = vector.extract_strided_slice %244 {offsets = [32, 0], sizes = [8, 64], strides = [1, 1]} : vector<64x64xf32> to vector<8x64xf32>
    %317 = vector.extract_strided_slice %244 {offsets = [40, 0], sizes = [8, 64], strides = [1, 1]} : vector<64x64xf32> to vector<8x64xf32>
    %318 = arith.maximumf %316, %317 : vector<8x64xf32>
    %319 = vector.extract_strided_slice %318 {offsets = [0, 0], sizes = [1, 64], strides = [1, 1]} : vector<8x64xf32> to vector<1x64xf32>
    %320 = vector.extract_strided_slice %318 {offsets = [1, 0], sizes = [1, 64], strides = [1, 1]} : vector<8x64xf32> to vector<1x64xf32>
    %321 = arith.maximumf %319, %320 : vector<1x64xf32>
    %322 = arith.truncf %321 : vector<1x64xf32> to vector<1x64xbf16>
    %c8_231 = arith.constant 8 : index
    %c0_232 = arith.constant 0 : index
    %c0_233 = arith.constant 0 : index
    %323 = vector.load %arg6[%c8_231, %c0_232, %c0_233] : memref<16x64x128xbf16, #tpu.memory_space<vmem>>, vector<1x64x128xbf16>
    %324 = vector.shape_cast %323 : vector<1x64x128xbf16> to vector<64x128xbf16>
    %cst_234 = arith.constant dense<0.000000e+00> : vector<1x128xf32>
    %325 = tpu.matmul %322, %324, %cst_234 {dimension_numbers = #tpu.dot_dimension_numbers<[1], [0], [0], [1], [0, 0, 1, 1], [], []>} : vector<1x64xbf16>, vector<64x128xbf16>, vector<1x128xf32> -> vector<1x128xf32>
    %326 = arith.addf %315, %325 : vector<1x128xf32>
    %327 = vector.extract_strided_slice %318 {offsets = [2, 0], sizes = [1, 64], strides = [1, 1]} : vector<8x64xf32> to vector<1x64xf32>
    %328 = vector.extract_strided_slice %318 {offsets = [3, 0], sizes = [1, 64], strides = [1, 1]} : vector<8x64xf32> to vector<1x64xf32>
    %329 = arith.maximumf %327, %328 : vector<1x64xf32>
    %330 = arith.truncf %329 : vector<1x64xf32> to vector<1x64xbf16>
    %c9_235 = arith.constant 9 : index
    %c0_236 = arith.constant 0 : index
    %c0_237 = arith.constant 0 : index
    %331 = vector.load %arg6[%c9_235, %c0_236, %c0_237] : memref<16x64x128xbf16, #tpu.memory_space<vmem>>, vector<1x64x128xbf16>
    %332 = vector.shape_cast %331 : vector<1x64x128xbf16> to vector<64x128xbf16>
    %cst_238 = arith.constant dense<0.000000e+00> : vector<1x128xf32>
    %333 = tpu.matmul %330, %332, %cst_238 {dimension_numbers = #tpu.dot_dimension_numbers<[1], [0], [0], [1], [0, 0, 1, 1], [], []>} : vector<1x64xbf16>, vector<64x128xbf16>, vector<1x128xf32> -> vector<1x128xf32>
    %334 = arith.addf %326, %333 : vector<1x128xf32>
    %335 = vector.extract_strided_slice %318 {offsets = [4, 0], sizes = [1, 64], strides = [1, 1]} : vector<8x64xf32> to vector<1x64xf32>
    %336 = vector.extract_strided_slice %318 {offsets = [5, 0], sizes = [1, 64], strides = [1, 1]} : vector<8x64xf32> to vector<1x64xf32>
    %337 = arith.maximumf %335, %336 : vector<1x64xf32>
    %338 = arith.truncf %337 : vector<1x64xf32> to vector<1x64xbf16>
    %c10_239 = arith.constant 10 : index
    %c0_240 = arith.constant 0 : index
    %c0_241 = arith.constant 0 : index
    %339 = vector.load %arg6[%c10_239, %c0_240, %c0_241] : memref<16x64x128xbf16, #tpu.memory_space<vmem>>, vector<1x64x128xbf16>
    %340 = vector.shape_cast %339 : vector<1x64x128xbf16> to vector<64x128xbf16>
    %cst_242 = arith.constant dense<0.000000e+00> : vector<1x128xf32>
    %341 = tpu.matmul %338, %340, %cst_242 {dimension_numbers = #tpu.dot_dimension_numbers<[1], [0], [0], [1], [0, 0, 1, 1], [], []>} : vector<1x64xbf16>, vector<64x128xbf16>, vector<1x128xf32> -> vector<1x128xf32>
    %342 = arith.addf %334, %341 : vector<1x128xf32>
    %343 = vector.extract_strided_slice %318 {offsets = [6, 0], sizes = [1, 64], strides = [1, 1]} : vector<8x64xf32> to vector<1x64xf32>
    %344 = vector.extract_strided_slice %318 {offsets = [7, 0], sizes = [1, 64], strides = [1, 1]} : vector<8x64xf32> to vector<1x64xf32>
    %345 = arith.maximumf %343, %344 : vector<1x64xf32>
    %346 = arith.truncf %345 : vector<1x64xf32> to vector<1x64xbf16>
    %c11_243 = arith.constant 11 : index
    %c0_244 = arith.constant 0 : index
    %c0_245 = arith.constant 0 : index
    %347 = vector.load %arg6[%c11_243, %c0_244, %c0_245] : memref<16x64x128xbf16, #tpu.memory_space<vmem>>, vector<1x64x128xbf16>
    %348 = vector.shape_cast %347 : vector<1x64x128xbf16> to vector<64x128xbf16>
    %cst_246 = arith.constant dense<0.000000e+00> : vector<1x128xf32>
    %349 = tpu.matmul %346, %348, %cst_246 {dimension_numbers = #tpu.dot_dimension_numbers<[1], [0], [0], [1], [0, 0, 1, 1], [], []>} : vector<1x64xbf16>, vector<64x128xbf16>, vector<1x128xf32> -> vector<1x128xf32>
    %350 = arith.addf %342, %349 : vector<1x128xf32>
    %351 = vector.extract_strided_slice %244 {offsets = [48, 0], sizes = [8, 64], strides = [1, 1]} : vector<64x64xf32> to vector<8x64xf32>
    %352 = vector.extract_strided_slice %244 {offsets = [56, 0], sizes = [8, 64], strides = [1, 1]} : vector<64x64xf32> to vector<8x64xf32>
    %353 = arith.maximumf %351, %352 : vector<8x64xf32>
    %354 = vector.extract_strided_slice %353 {offsets = [0, 0], sizes = [1, 64], strides = [1, 1]} : vector<8x64xf32> to vector<1x64xf32>
    %355 = vector.extract_strided_slice %353 {offsets = [1, 0], sizes = [1, 64], strides = [1, 1]} : vector<8x64xf32> to vector<1x64xf32>
    %356 = arith.maximumf %354, %355 : vector<1x64xf32>
    %357 = arith.truncf %356 : vector<1x64xf32> to vector<1x64xbf16>
    %c12_247 = arith.constant 12 : index
    %c0_248 = arith.constant 0 : index
    %c0_249 = arith.constant 0 : index
    %358 = vector.load %arg6[%c12_247, %c0_248, %c0_249] : memref<16x64x128xbf16, #tpu.memory_space<vmem>>, vector<1x64x128xbf16>
    %359 = vector.shape_cast %358 : vector<1x64x128xbf16> to vector<64x128xbf16>
    %cst_250 = arith.constant dense<0.000000e+00> : vector<1x128xf32>
    %360 = tpu.matmul %357, %359, %cst_250 {dimension_numbers = #tpu.dot_dimension_numbers<[1], [0], [0], [1], [0, 0, 1, 1], [], []>} : vector<1x64xbf16>, vector<64x128xbf16>, vector<1x128xf32> -> vector<1x128xf32>
    %361 = arith.addf %350, %360 : vector<1x128xf32>
    %362 = vector.extract_strided_slice %353 {offsets = [2, 0], sizes = [1, 64], strides = [1, 1]} : vector<8x64xf32> to vector<1x64xf32>
    %363 = vector.extract_strided_slice %353 {offsets = [3, 0], sizes = [1, 64], strides = [1, 1]} : vector<8x64xf32> to vector<1x64xf32>
    %364 = arith.maximumf %362, %363 : vector<1x64xf32>
    %365 = arith.truncf %364 : vector<1x64xf32> to vector<1x64xbf16>
    %c13_251 = arith.constant 13 : index
    %c0_252 = arith.constant 0 : index
    %c0_253 = arith.constant 0 : index
    %366 = vector.load %arg6[%c13_251, %c0_252, %c0_253] : memref<16x64x128xbf16, #tpu.memory_space<vmem>>, vector<1x64x128xbf16>
    %367 = vector.shape_cast %366 : vector<1x64x128xbf16> to vector<64x128xbf16>
    %cst_254 = arith.constant dense<0.000000e+00> : vector<1x128xf32>
    %368 = tpu.matmul %365, %367, %cst_254 {dimension_numbers = #tpu.dot_dimension_numbers<[1], [0], [0], [1], [0, 0, 1, 1], [], []>} : vector<1x64xbf16>, vector<64x128xbf16>, vector<1x128xf32> -> vector<1x128xf32>
    %369 = arith.addf %361, %368 : vector<1x128xf32>
    %370 = vector.extract_strided_slice %353 {offsets = [4, 0], sizes = [1, 64], strides = [1, 1]} : vector<8x64xf32> to vector<1x64xf32>
    %371 = vector.extract_strided_slice %353 {offsets = [5, 0], sizes = [1, 64], strides = [1, 1]} : vector<8x64xf32> to vector<1x64xf32>
    %372 = arith.maximumf %370, %371 : vector<1x64xf32>
    %373 = arith.truncf %372 : vector<1x64xf32> to vector<1x64xbf16>
    %c14_255 = arith.constant 14 : index
    %c0_256 = arith.constant 0 : index
    %c0_257 = arith.constant 0 : index
    %374 = vector.load %arg6[%c14_255, %c0_256, %c0_257] : memref<16x64x128xbf16, #tpu.memory_space<vmem>>, vector<1x64x128xbf16>
    %375 = vector.shape_cast %374 : vector<1x64x128xbf16> to vector<64x128xbf16>
    %cst_258 = arith.constant dense<0.000000e+00> : vector<1x128xf32>
    %376 = tpu.matmul %373, %375, %cst_258 {dimension_numbers = #tpu.dot_dimension_numbers<[1], [0], [0], [1], [0, 0, 1, 1], [], []>} : vector<1x64xbf16>, vector<64x128xbf16>, vector<1x128xf32> -> vector<1x128xf32>
    %377 = arith.addf %369, %376 : vector<1x128xf32>
    %378 = vector.extract_strided_slice %353 {offsets = [6, 0], sizes = [1, 64], strides = [1, 1]} : vector<8x64xf32> to vector<1x64xf32>
    %379 = vector.extract_strided_slice %353 {offsets = [7, 0], sizes = [1, 64], strides = [1, 1]} : vector<8x64xf32> to vector<1x64xf32>
    %380 = arith.maximumf %378, %379 : vector<1x64xf32>
    %381 = arith.truncf %380 : vector<1x64xf32> to vector<1x64xbf16>
    %c15_259 = arith.constant 15 : index
    %c0_260 = arith.constant 0 : index
    %c0_261 = arith.constant 0 : index
    %382 = vector.load %arg6[%c15_259, %c0_260, %c0_261] : memref<16x64x128xbf16, #tpu.memory_space<vmem>>, vector<1x64x128xbf16>
    %383 = vector.shape_cast %382 : vector<1x64x128xbf16> to vector<64x128xbf16>
    %cst_262 = arith.constant dense<0.000000e+00> : vector<1x128xf32>
    %384 = tpu.matmul %381, %383, %cst_262 {dimension_numbers = #tpu.dot_dimension_numbers<[1], [0], [0], [1], [0, 0, 1, 1], [], []>} : vector<1x64xbf16>, vector<64x128xbf16>, vector<1x128xf32> -> vector<1x128xf32>
    %385 = arith.addf %377, %384 : vector<1x128xf32>
    %c0_263 = arith.constant 0 : index
    %c0_264 = arith.constant 0 : index
    %386 = vector.load %arg7[%c0_263, %c0_264] : memref<1x128xf32, #tpu.memory_space<vmem>>, vector<1x128xf32>
    %387 = arith.addf %385, %386 : vector<1x128xf32>
    %cst_265 = arith.constant 0.000000e+00 : f32
    %388 = vector.broadcast %cst_265 : f32 to vector<1x128xf32>
    %389 = arith.maximumf %387, %388 : vector<1x128xf32>
    %390 = tpu.iota {dimensions = array<i32: 1>} : vector<1x128xi32>
    %c10_i32 = arith.constant 10 : i32
    %391 = vector.broadcast %c10_i32 : i32 to vector<1x128xi32>
    %392 = arith.cmpi slt, %390, %391 : vector<1x128xi32>
    %cst_266 = arith.constant -1.000000e+30 : f32
    %393 = vector.broadcast %cst_266 : f32 to vector<1x128xf32>
    %394 = arith.select %392, %389, %393 : vector<1x128xi1>, vector<1x128xf32>
    %cst_267 = arith.constant dense<0xFF800000> : vector<1xf32>
    %395 = vector.multi_reduction <maximumf>, %394, %cst_267 [1] : vector<1x128xf32> to vector<1xf32>
    %396 = vector.shape_cast %395 : vector<1xf32> to vector<1x1xf32>
    %397 = vector.broadcast %396 : vector<1x1xf32> to vector<1x128xf32>
    %398 = arith.subf %394, %397 : vector<1x128xf32>
    %399 = math.exp %398 : vector<1x128xf32>
    %cst_268 = arith.constant dense<0.000000e+00> : vector<1xf32>
    %400 = vector.multi_reduction <add>, %399, %cst_268 [1] : vector<1x128xf32> to vector<1xf32>
    %401 = vector.shape_cast %400 : vector<1xf32> to vector<1x1xf32>
    %402 = vector.broadcast %396 : vector<1x1xf32> to vector<1x128xf32>
    %403 = arith.subf %394, %402 : vector<1x128xf32>
    %404 = math.log %401 : vector<1x1xf32>
    %405 = vector.broadcast %404 : vector<1x1xf32> to vector<1x128xf32>
    %406 = arith.subf %403, %405 : vector<1x128xf32>
    %c0_269 = arith.constant 0 : index
    %c0_270 = arith.constant 0 : index
    %c0_271 = arith.constant 0 : index
    %407 = vector.load %arg8[%c0_269, %c0_270, %c0_271] : memref<1x1x128xf32, #tpu.memory_space<vmem>>, vector<1x1x128xf32>
    %408 = vector.shape_cast %407 : vector<1x1x128xf32> to vector<1x128xf32>
    %409 = vector.shape_cast %406 : vector<1x128xf32> to vector<1x1x128xf32>
    tpu.vector_store %arg8[%c0_269, %c0_270, %c0_271], %409 {strides = array<i32>} : memref<1x1x128xf32, #tpu.memory_space<vmem>>, vector<1x1x128xf32>,
    return
  }
  func.func @transform_0(%arg0: i32) -> (i32, i32, i32) {
    %c0_i32 = arith.constant 0 : i32
    %c0_i32_0 = arith.constant 0 : i32
    %c0_i32_1 = arith.constant 0 : i32
    return %arg0, %c0_i32, %c0_i32_0 : i32, i32, i32
  }
  func.func @transform_1(%arg0: i32) -> (i32, i32) {
    %c0_i32 = arith.constant 0 : i32
    %c0_i32_0 = arith.constant 0 : i32
    %c0_i32_1 = arith.constant 0 : i32
    return %c0_i32, %c0_i32_0 : i32, i32
  }
  func.func @transform_2(%arg0: i32) -> (i32, i32) {
    %c0_i32 = arith.constant 0 : i32
    %c0_i32_0 = arith.constant 0 : i32
    %c0_i32_1 = arith.constant 0 : i32
    return %c0_i32, %c0_i32_0 : i32, i32
  }
  func.func @transform_3(%arg0: i32) -> (i32, i32, i32) {
    %c0_i32 = arith.constant 0 : i32
    %c0_i32_0 = arith.constant 0 : i32
    %c0_i32_1 = arith.constant 0 : i32
    %c0_i32_2 = arith.constant 0 : i32
    return %c0_i32, %c0_i32_0, %c0_i32_1 : i32, i32, i32
  }
  func.func @transform_4(%arg0: i32) -> (i32, i32) {
    %c0_i32 = arith.constant 0 : i32
    %c0_i32_0 = arith.constant 0 : i32
    %c0_i32_1 = arith.constant 0 : i32
    return %c0_i32, %c0_i32_0 : i32, i32
  }
  func.func @transform_5(%arg0: i32) -> (i32, i32, i32) {
    %c0_i32 = arith.constant 0 : i32
    %c0_i32_0 = arith.constant 0 : i32
    %c0_i32_1 = arith.constant 0 : i32
    %c0_i32_2 = arith.constant 0 : i32
    return %c0_i32, %c0_i32_0, %c0_i32_1 : i32, i32, i32
  }
  func.func @transform_6(%arg0: i32) -> (i32, i32) {
    %c0_i32 = arith.constant 0 : i32
    %c0_i32_0 = arith.constant 0 : i32
    %c0_i32_1 = arith.constant 0 : i32
    return %c0_i32, %c0_i32_0 : i32, i32
  }
  func.func @transform_7(%arg0: i32) -> (i32, i32, i32) {
    %c0_i32 = arith.constant 0 : i32
    %c0_i32_0 = arith.constant 0 : i32
    %c0_i32_1 = arith.constant 0 : i32
    return %arg0, %c0_i32, %c0_i32_0 : i32, i32, i32
  }
}

</mosaic_0001>

<llo_original>
// kernel: cnn_forward.1
$region0: #{cnn_forward.1}
  #allocation0 [shape = 'u32[]', space=smem, size = 0x4, offset = 0x4, fixed_abs, tag = 'smem constant byte address 0x4 - core index']
  #allocation1 [shape = 'u32[144,128]{1,0:T(1,128)}', space=vmem, size = 0x12000, scoped, tag = 'internal scratch']
  #allocation2 [shape = 'f32[12,16,32]{2,1,0:T(8,128)}', space=vmem, size = 0x18000, scoped, tag = 'scratch operand']
  %s0 = inlined_call_operand.vmem [shape: bf16[2,768,25], index: 0, kind: input, shape index: {}]
  %s1 = inlined_call_operand.vmem [shape: bf16[25,32], index: 1, kind: input, shape index: {}]
  %s2 = inlined_call_operand.vmem [shape: f32[1,32], index: 2, kind: input, shape index: {}]
  %s3 = inlined_call_operand.vmem [shape: bf16[25,32,64], index: 3, kind: input, shape index: {}]
  %s4 = inlined_call_operand.vmem [shape: f32[1,64], index: 4, kind: input, shape index: {}]
  %s5 = inlined_call_operand.vmem [shape: bf16[16,64,128], index: 5, kind: input, shape index: {}]
  %s6 = inlined_call_operand.vmem [shape: f32[1,128], index: 6, kind: input, shape index: {}]
  %s7 = inlined_call_operand.hbm [shape: f32[2,1,128], index: 7, kind: output, shape index: {}]
  %s8 = sld [smem:[#allocation0]]
  $region61: #{cnn_forward.1} parent=0
    _
  %s10 = ssub.s32 1, %s8
  %s11 = scalar_select 0, %s10, %s8
  $region1: #{cnn_forward.1} parent=0
    #allocation3 [shape = 'u8[1024]{0}', space=vmem, size = 0x400, scoped, tag = 'output window, operand 0']
    #allocation4 [shape = 's32[2]{0}', space=sflag, size = 0x8, scoped, tag = 'scoped memory for cnn_forward.1']
    %12 = vsyncpa [#allocation4], 0
    %s13 = scalar_lea.sflag [#allocation4], 1
    %14 = vsyncpa %s13, 0
    loop: start=0, step=1, limit=4
    $region2: #{cnn_forward.1} parent=1 // loop_pre_header
      _
    $region3: #{cnn_forward.1} parent=1 // loop_header
      %s16 = sphi 0, %s20
      %p17 = scmp.ge.s32.totalorder %s16, 4
      %s26 = sphi 0, %s28
      %s29 = sphi 0, %s26
      %s30 = sphi 0, %s29
      %s46 = sphi 0, %s30
      %s50 = sphi 0, %s50
      %s52 = sphi 0, %s50
      %s53 = sphi 0, %s52
      %s67 = sphi 0, %s53
      %s71 = sphi 0, %s71
      %s73 = sphi 0, %s71
      %s74 = sphi 0, %s73
      %s88 = sphi 0, %s74
      %s92 = sphi 0, %s92
      %s94 = sphi 0, %s92
      %s95 = sphi 0, %s94
      %s109 = sphi 0, %s95
      %s113 = sphi 0, %s113
      %s115 = sphi 0, %s113
      %s116 = sphi 0, %s115
      %s130 = sphi 0, %s116
      %s134 = sphi 0, %s134
      %s136 = sphi 0, %s134
      %s137 = sphi 0, %s136
      %s151 = sphi 0, %s137
      %s155 = sphi 0, %s155
      %s157 = sphi 0, %s155
      %s158 = sphi 0, %s157
      %s172 = sphi 0, %s158
      %s178 = sphi 0, %s180
      %s181 = sphi 0, %s178
      %s182 = sphi 0, %s181
      %s198 = sphi 0, %s182
    $region4: #{cnn_forward.1} parent=1 // loop_header_branch
      %19 = sbr.rel (%p17) target = $region8
    $region5: #{cnn_forward.1} parent=1 // loop_body
      %s21 = ssub.s32 %s16, 1
      %s22 = ssub.s32 %s16, 2
      %s23 = sadd.s32 %s16, 1
      %s24 = ssub.s32 %s16, %s23
      %p25 = scmp.eq.s32.totalorder %s24, 0
      %s27 = sadd.s32 %s26, 1
      %s28 = scalar_select %p25, %s26, %s27
      %p31 = pneg %p25
      %p32 = scmp.eq.s32.totalorder %s16, 1
      %p33 = por %p31, %p32
      %p34 = scmp.ne.s32.totalorder %s26, %s29
      %p35 = scmp.eq.s32.totalorder %s16, 0
      %p36 = por %p34, %p35
      %p37 = scmp.ne.s32.totalorder %s26, %s29
      %p38 = scmp.eq.s32.totalorder %s21, 1
      %p39 = por %p37, %p38
      %p40 = scmp.ne.s32.totalorder %s29, %s30
      %p41 = scmp.eq.s32.totalorder %s21, 0
      %p42 = por %p40, %p41
      %p43 = scmp.ne.s32.totalorder %s29, %s30
      %p44 = scmp.eq.s32.totalorder %s22, 1
      %p45 = por %p43, %p44
      %p47 = scmp.ne.s32.totalorder %s30, %s46
      %p48 = scmp.eq.s32.totalorder %s22, 0
      %p49 = por %p47, %p48
      %s51 = sadd.s32 %s50, 1
      %p54 = scmp.eq.s32.totalorder %s16, 1
      %p55 = scmp.ne.s32.totalorder %s50, %s52
      %p56 = scmp.eq.s32.totalorder %s16, 0
      %p57 = por %p55, %p56
      %p58 = scmp.ne.s32.totalorder %s50, %s52
      %p59 = scmp.eq.s32.totalorder %s21, 1
      %p60 = por %p58, %p59
      %p61 = scmp.ne.s32.totalorder %s52, %s53
      %p62 = scmp.eq.s32.totalorder %s21, 0
      %p63 = por %p61, %p62
      %p64 = scmp.ne.s32.totalorder %s52, %s53
      %p65 = scmp.eq.s32.totalorder %s22, 1
      %p66 = por %p64, %p65
      %p68 = scmp.ne.s32.totalorder %s53, %s67
      %p69 = scmp.eq.s32.totalorder %s22, 0
      %p70 = por %p68, %p69
      %s72 = sadd.s32 %s71, 1
      %p75 = scmp.eq.s32.totalorder %s16, 1
      %p76 = scmp.ne.s32.totalorder %s71, %s73
      %p77 = scmp.eq.s32.totalorder %s16, 0
      %p78 = por %p76, %p77
      %p79 = scmp.ne.s32.totalorder %s71, %s73
      %p80 = scmp.eq.s32.totalorder %s21, 1
      %p81 = por %p79, %p80
      %p82 = scmp.ne.s32.totalorder %s73, %s74
      %p83 = scmp.eq.s32.totalorder %s21, 0
      %p84 = por %p82, %p83
      %p85 = scmp.ne.s32.totalorder %s73, %s74
      %p86 = scmp.eq.s32.totalorder %s22, 1
      %p87 = por %p85, %p86
      %p89 = scmp.ne.s32.totalorder %s74, %s88
      %p90 = scmp.eq.s32.totalorder %s22, 0
      %p91 = por %p89, %p90
      %s93 = sadd.s32 %s92, 1
      %p96 = scmp.eq.s32.totalorder %s16, 1
      %p97 = scmp.ne.s32.totalorder %s92, %s94
      %p98 = scmp.eq.s32.totalorder %s16, 0
      %p99 = por %p97, %p98
      %p100 = scmp.ne.s32.totalorder %s92, %s94
      %p101 = scmp.eq.s32.totalorder %s21, 1
      %p102 = por %p100, %p101
      %p103 = scmp.ne.s32.totalorder %s94, %s95
      %p104 = scmp.eq.s32.totalorder %s21, 0
      %p105 = por %p103, %p104
      %p106 = scmp.ne.s32.totalorder %s94, %s95
      %p107 = scmp.eq.s32.totalorder %s22, 1
      %p108 = por %p106, %p107
      %p110 = scmp.ne.s32.totalorder %s95, %s109
      %p111 = scmp.eq.s32.totalorder %s22, 0
      %p112 = por %p110, %p111
      %s114 = sadd.s32 %s113, 1
      %p117 = scmp.eq.s32.totalorder %s16, 1
      %p118 = scmp.ne.s32.totalorder %s113, %s115
      %p119 = scmp.eq.s32.totalorder %s16, 0
      %p120 = por %p118, %p119
      %p121 = scmp.ne.s32.totalorder %s113, %s115
      %p122 = scmp.eq.s32.totalorder %s21, 1
      %p123 = por %p121, %p122
      %p124 = scmp.ne.s32.totalorder %s115, %s116
      %p125 = scmp.eq.s32.totalorder %s21, 0
      %p126 = por %p124, %p125
      %p127 = scmp.ne.s32.totalorder %s115, %s116
      %p128 = scmp.eq.s32.totalorder %s22, 1
      %p129 = por %p127, %p128
      %p131 = scmp.ne.s32.totalorder %s116, %s130
      %p132 = scmp.eq.s32.totalorder %s22, 0
      %p133 = por %p131, %p132
      %s135 = sadd.s32 %s134, 1
      %p138 = scmp.eq.s32.totalorder %s16, 1
      %p139 = scmp.ne.s32.totalorder %s134, %s136
      %p140 = scmp.eq.s32.totalorder %s16, 0
      %p141 = por %p139, %p140
      %p142 = scmp.ne.s32.totalorder %s134, %s136
      %p143 = scmp.eq.s32.totalorder %s21, 1
      %p144 = por %p142, %p143
      %p145 = scmp.ne.s32.totalorder %s136, %s137
      %p146 = scmp.eq.s32.totalorder %s21, 0
      %p147 = por %p145, %p146
      %p148 = scmp.ne.s32.totalorder %s136, %s137
      %p149 = scmp.eq.s32.totalorder %s22, 1
      %p150 = por %p148, %p149
      %p152 = scmp.ne.s32.totalorder %s137, %s151
      %p153 = scmp.eq.s32.totalorder %s22, 0
      %p154 = por %p152, %p153
      %s156 = sadd.s32 %s155, 1
      %p159 = scmp.eq.s32.totalorder %s16, 1
      %p160 = scmp.ne.s32.totalorder %s155, %s157
      %p161 = scmp.eq.s32.totalorder %s16, 0
      %p162 = por %p160, %p161
      %p163 = scmp.ne.s32.totalorder %s155, %s157
      %p164 = scmp.eq.s32.totalorder %s21, 1
      %p165 = por %p163, %p164
      %p166 = scmp.ne.s32.totalorder %s157, %s158
      %p167 = scmp.eq.s32.totalorder %s21, 0
      %p168 = por %p166, %p167
      %p169 = scmp.ne.s32.totalorder %s157, %s158
      %p170 = scmp.eq.s32.totalorder %s22, 1
      %p171 = por %p169, %p170
      %p173 = scmp.ne.s32.totalorder %s158, %s172
      %p174 = scmp.eq.s32.totalorder %s22, 0
      %p175 = por %p173, %p174
      %s176 = ssub.s32 %s16, %s23
      %p177 = scmp.eq.s32.totalorder %s176, 0
      %s179 = sadd.s32 %s178, 1
      %s180 = scalar_select %p177, %s178, %s179
      %p183 = pneg %p177
      %p184 = scmp.eq.s32.totalorder %s16, 1
      %p185 = por %p183, %p184
      %p186 = scmp.ne.s32.totalorder %s178, %s181
      %p187 = scmp.eq.s32.totalorder %s16, 0
      %p188 = por %p186, %p187
      %p189 = scmp.ne.s32.totalorder %s178, %s181
      %p190 = scmp.eq.s32.totalorder %s21, 1
      %p191 = por %p189, %p190
      %p192 = scmp.ne.s32.totalorder %s181, %s182
      %p193 = scmp.eq.s32.totalorder %s21, 0
      %p194 = por %p192, %p193
      %p195 = scmp.ne.s32.totalorder %s181, %s182
      %p196 = scmp.eq.s32.totalorder %s22, 1
      %p197 = por %p195, %p196
      %p199 = scmp.ne.s32.totalorder %s182, %s198
      %p200 = scmp.eq.s32.totalorder %s22, 0
      %p201 = por %p199, %p200
      %p202 = scmp.le.s32.totalorder 1, %s16
      %p203 = scmp.lt.s32.totalorder %s16, 3
      %p204 = pnand %p202, %p203
      %p205 = pneg %p204
      // Predicated region
      $region9: #{cnn_forward.1} parent=5 // pred_check
        _
      $region10: #{cnn_forward.1} parent=5 // pred_check_branch
        %207 = sbr.rel (%p204) target = $region12
      $region11: #{cnn_forward.1} parent=5 // pred_region
        %s208 = ssub.s32 %s16, 1
        // Predicated region
        $region13: #{cnn_forward.1} parent=11 // pred_check
          %p209 = pneg %p63
        $region14: #{cnn_forward.1} parent=11 // pred_check_branch
          %211 = sbr.rel (%p209) target = $region16
        $region15: #{cnn_forward.1} parent=11 // pred_region
          _
        $region16: #{cnn_forward.1} parent=11 // pred_fallthru
          _
        // Predicated region
        $region17: #{cnn_forward.1} parent=11 // pred_check
          %p212 = pneg %p84
        $region18: #{cnn_forward.1} parent=11 // pred_check_branch
          %214 = sbr.rel (%p212) target = $region20
        $region19: #{cnn_forward.1} parent=11 // pred_region
          _
        $region20: #{cnn_forward.1} parent=11 // pred_fallthru
          _
        // Predicated region
        $region21: #{cnn_forward.1} parent=11 // pred_check
          %p215 = pneg %p105
        $region22: #{cnn_forward.1} parent=11 // pred_check_branch
          %217 = sbr.rel (%p215) target = $region24
        $region23: #{cnn_forward.1} parent=11 // pred_region
          _
        $region24: #{cnn_forward.1} parent=11 // pred_fallthru
          _
        // Predicated region
        $region25: #{cnn_forward.1} parent=11 // pred_check
          %p218 = pneg %p126
        $region26: #{cnn_forward.1} parent=11 // pred_check_branch
          %220 = sbr.rel (%p218) target = $region28
        $region27: #{cnn_forward.1} parent=11 // pred_region
          _
        $region28: #{cnn_forward.1} parent=11 // pred_fallthru
          _
        // Predicated region
        $region29: #{cnn_forward.1} parent=11 // pred_check
          %p221 = pneg %p147
        $region30: #{cnn_forward.1} parent=11 // pred_check_branch
          %223 = sbr.rel (%p221) target = $region32
        $region31: #{cnn_forward.1} parent=11 // pred_region
          _
        $region32: #{cnn_forward.1} parent=11 // pred_fallthru
          _
        // Predicated region
        $region33: #{cnn_forward.1} parent=11 // pred_check
          %p224 = pneg %p168
        $region34: #{cnn_forward.1} parent=11 // pred_check_branch
          %226 = sbr.rel (%p224) target = $region36
        $region35: #{cnn_forward.1} parent=11 // pred_region
          _
        $region36: #{cnn_forward.1} parent=11 // pred_fallthru
          _
      $region12: #{cnn_forward.1} parent=5 // pred_fallthru
        _
      %p227 = scmp.lt.s32.totalorder %s16, 2
      // Predicated region
      $region37: #{cnn_forward.1} parent=5 // pred_check
        %p228 = pneg %p227
      $region38: #{cnn_forward.1} parent=5 // pred_check_branch
        %230 = sbr.rel (%p228) target = $region40
      $region39: #{cnn_forward.1} parent=5 // pred_region
        // Predicated region
        $region41: #{cnn_forward.1} parent=39 // pred_check
          %p231 = pneg %p36
        $region42: #{cnn_forward.1} parent=39 // pred_check_branch
          %233 = sbr.rel (%p231) target = $region44
        $region43: #{cnn_forward.1} parent=39 // pred_region
          %p234 = scmp.lt.s32.totalorder %s16, 1
          %s235 = scalar_select %p234, %s16, 1
          %s236 = smul.addr %s235, 96
          %s237 = smul.addr %s236, 4
          %s238 = scalar_lea.vmem %s0, %s237
        $region44: #{cnn_forward.1} parent=39 // pred_fallthru
          _
      $region40: #{cnn_forward.1} parent=5 // pred_fallthru
        _
      %p239 = scmp.le.s32.totalorder 1, %s16
      %p240 = scmp.lt.s32.totalorder %s16, 3
      %p241 = pnand %p239, %p240
      %p242 = pneg %p241
      // Predicated region
      $region45: #{cnn_forward.1} parent=5 // pred_check
        _
      $region46: #{cnn_forward.1} parent=5 // pred_check_branch
        %244 = sbr.rel (%p241) target = $region48
      $region47: #{cnn_forward.1} parent=5 // pred_region
        %s245 = ssub.s32 %s16, 1
        %p246 = scmp.lt.s32.totalorder %s21, 1
        %s247 = scalar_select %p246, %s21, 1
        %s248 = smul.addr %s247, 96
        %s249 = smul.addr %s248, 4
        %s250 = scalar_lea.vmem %s0, %s249
        %p251 = pneg %p42
        %p252 = pneg %p39
        %p253 = pneg %p63
        %p254 = pneg %p60
        %p255 = pneg %p84
        %p256 = pneg %p81
        %p257 = pneg %p105
        %p258 = pneg %p102
        %p259 = pneg %p126
        %p260 = pneg %p123
        %p261 = pneg %p147
        %p262 = pneg %p144
        %p263 = pneg %p168
        %p264 = pneg %p165
        %p265 = pneg %p194
        %p266 = pneg %p191
        %s267 = sand.u32 %s181, 1
        %s268 = scalar_lea.sflag [#allocation4], %s267
        %s269 = sand.u32 %s181, 1
        %s270 = scalar_lea.vmem [#allocation3], %s269
        %p271 = scmp.lt.s32.totalorder %s21, 1
        %s272 = scalar_select %p271, %s21, 1
        %s273 = smul.addr %s272, 96
        %s274 = smul.addr %s273, 4
        %s275 = scalar_lea.vmem %s0, %s274
        %v277 = vld [vmem:[%s275] sm:$0xf]
        %v278 = vld [vmem:[%s275 + $0x4] sm:$0xf]
        %v279 = vld [vmem:[%s275 + $0x8] sm:$0xf]
        %v280 = vld [vmem:[%s275 + $0xc] sm:$0xf]
        %v281 = vld [vmem:[%s275 + $0x10] sm:$0xf]
        %v282 = vld [vmem:[%s275 + $0x14] sm:$0xf]
        %v283 = vld [vmem:[%s275 + $0x18] sm:$0xf]
        %v284 = vld [vmem:[%s275 + $0x1c] sm:$0xf]
        %v285 = vld [vmem:[%s275 + $0x20] sm:$0xf]
        %v286 = vld [vmem:[%s275 + $0x24] sm:$0xf]
        %v287 = vld [vmem:[%s275 + $0x28] sm:$0xf]
        %v288 = vld [vmem:[%s275 + $0x2c] sm:$0xf]
        %v289 = vld [vmem:[%s275 + $0x30] sm:$0xf]
        %v290 = vld [vmem:[%s275 + $0x34] sm:$0xf]
        %v291 = vld [vmem:[%s275 + $0x38] sm:$0xf]
        %v292 = vld [vmem:[%s275 + $0x3c] sm:$0xf]
        %v293 = vld [vmem:[%s275 + $0x40] sm:$0xf]
        %v294 = vld [vmem:[%s275 + $0x44] sm:$0xf]
        %v295 = vld [vmem:[%s275 + $0x48] sm:$0xf]
        %v296 = vld [vmem:[%s275 + $0x4c] sm:$0xf]
        %v297 = vld [vmem:[%s275 + $0x50] sm:$0xf]
        %v298 = vld [vmem:[%s275 + $0x54] sm:$0xf]
        %v299 = vld [vmem:[%s275 + $0x58] sm:$0xf]
        %v300 = vld [vmem:[%s275 + $0x5c] sm:$0xf]
        %v301 = vld [vmem:[%s275 + $0x60] sm:$0xf]
        %v302 = vld [vmem:[%s275 + $0x64] sm:$0xf]
        %v303 = vld [vmem:[%s275 + $0x68] sm:$0xf]
        %v304 = vld [vmem:[%s275 + $0x6c] sm:$0xf]
        %v305 = vld [vmem:[%s275 + $0x70] sm:$0xf]
        %v306 = vld [vmem:[%s275 + $0x74] sm:$0xf]
        %v307 = vld [vmem:[%s275 + $0x78] sm:$0xf]
        %v308 = vld [vmem:[%s275 + $0x7c] sm:$0xf]
        %v309 = vld [vmem:[%s275 + $0x80] sm:$0xf]
        %v310 = vld [vmem:[%s275 + $0x84] sm:$0xf]
        %v311 = vld [vmem:[%s275 + $0x88] sm:$0xf]
        %v312 = vld [vmem:[%s275 + $0x8c] sm:$0xf]
        %v313 = vld [vmem:[%s275 + $0x90] sm:$0xf]
        %v314 = vld [vmem:[%s275 + $0x94] sm:$0xf]
        %v315 = vld [vmem:[%s275 + $0x98] sm:$0xf]
        %v316 = vld [vmem:[%s275 + $0x9c] sm:$0xf]
        %v317 = vld [vmem:[%s275 + $0xa0] sm:$0xf]
        %v318 = vld [vmem:[%s275 + $0xa4] sm:$0xf]
        %v319 = vld [vmem:[%s275 + $0xa8] sm:$0xf]
        %v320 = vld [vmem:[%s275 + $0xac] sm:$0xf]
        %v321 = vld [vmem:[%s275 + $0xb0] sm:$0xf]
        %v322 = vld [vmem:[%s275 + $0xb4] sm:$0xf]
        %v323 = vld [vmem:[%s275 + $0xb8] sm:$0xf]
        %v324 = vld [vmem:[%s275 + $0xbc] sm:$0xf]
        %v325 = vld [vmem:[%s275 + $0xc0] sm:$0xf]
        %v326 = vld [vmem:[%s275 + $0xc4] sm:$0xf]
        %v327 = vld [vmem:[%s275 + $0xc8] sm:$0xf]
        %v328 = vld [vmem:[%s275 + $0xcc] sm:$0xf]
        %v329 = vld [vmem:[%s275 + $0xd0] sm:$0xf]
        %v330 = vld [vmem:[%s275 + $0xd4] sm:$0xf]
        %v331 = vld [vmem:[%s275 + $0xd8] sm:$0xf]
        %v332 = vld [vmem:[%s275 + $0xdc] sm:$0xf]
        %v333 = vld [vmem:[%s275 + $0xe0] sm:$0xf]
        %v334 = vld [vmem:[%s275 + $0xe4] sm:$0xf]
        %v335 = vld [vmem:[%s275 + $0xe8] sm:$0xf]
        %v336 = vld [vmem:[%s275 + $0xec] sm:$0xf]
        %v337 = vld [vmem:[%s275 + $0xf0] sm:$0xf]
        %v338 = vld [vmem:[%s275 + $0xf4] sm:$0xf]
        %v339 = vld [vmem:[%s275 + $0xf8] sm:$0xf]
        %v340 = vld [vmem:[%s275 + $0xfc] sm:$0xf]
        %v341 = vld [vmem:[%s275 + $0x100] sm:$0xf]
        %v342 = vld [vmem:[%s275 + $0x104] sm:$0xf]
        %v343 = vld [vmem:[%s275 + $0x108] sm:$0xf]
        %v344 = vld [vmem:[%s275 + $0x10c] sm:$0xf]
        %v345 = vld [vmem:[%s275 + $0x110] sm:$0xf]
        %v346 = vld [vmem:[%s275 + $0x114] sm:$0xf]
        %v347 = vld [vmem:[%s275 + $0x118] sm:$0xf]
        %v348 = vld [vmem:[%s275 + $0x11c] sm:$0xf]
        %v349 = vld [vmem:[%s275 + $0x120] sm:$0xf]
        %v350 = vld [vmem:[%s275 + $0x124] sm:$0xf]
        %v351 = vld [vmem:[%s275 + $0x128] sm:$0xf]
        %v352 = vld [vmem:[%s275 + $0x12c] sm:$0xf]
        %v353 = vld [vmem:[%s275 + $0x130] sm:$0xf]
        %v354 = vld [vmem:[%s275 + $0x134] sm:$0xf]
        %v355 = vld [vmem:[%s275 + $0x138] sm:$0xf]
        %v356 = vld [vmem:[%s275 + $0x13c] sm:$0xf]
        %v357 = vld [vmem:[%s275 + $0x140] sm:$0xf]
        %v358 = vld [vmem:[%s275 + $0x144] sm:$0xf]
        %v359 = vld [vmem:[%s275 + $0x148] sm:$0xf]
        %v360 = vld [vmem:[%s275 + $0x14c] sm:$0xf]
        %v361 = vld [vmem:[%s275 + $0x150] sm:$0xf]
        %v362 = vld [vmem:[%s275 + $0x154] sm:$0xf]
        %v363 = vld [vmem:[%s275 + $0x158] sm:$0xf]
        %v364 = vld [vmem:[%s275 + $0x15c] sm:$0xf]
        %v365 = vld [vmem:[%s275 + $0x160] sm:$0xf]
        %v366 = vld [vmem:[%s275 + $0x164] sm:$0xf]
        %v367 = vld [vmem:[%s275 + $0x168] sm:$0xf]
        %v368 = vld [vmem:[%s275 + $0x16c] sm:$0xf]
        %v369 = vld [vmem:[%s275 + $0x170] sm:$0xf]
        %v370 = vld [vmem:[%s275 + $0x174] sm:$0xf]
        %v371 = vld [vmem:[%s275 + $0x178] sm:$0xf]
        %v372 = vld [vmem:[%s275 + $0x17c] sm:$0xf]
        %v373 = vld [vmem:[%s1] sm:$0xf]
        %v374 = vld [vmem:[%s1 + $0x4] sm:$0xf]
        %v375 = vld [vmem:[%s1 + $0x8] sm:$0xf]
        %v376 = vld [vmem:[%s1 + $0xc] sm:$0x1]
        %v377 = vld [vmem:[%s2] sm:$0x1]
        %v379 = vlaneseq
        %v380 = vshrl.u32 %v379, 7
        %v381 = vsub.s32 0, %v380
        %v382 = vrot.slane %v377, %v381
        %v480 = vunpack.c.l.b16 %v277
        %v481 = vunpack.c.l.b16 %v278
        %v482 = vunpack.c.l.b16 %v279
        %v483 = vunpack.c.l.b16 %v280
        %v484 = vunpack.c.l.b16 %v281
        %v485 = vunpack.c.l.b16 %v282
        %v486 = vunpack.c.l.b16 %v283
        %v487 = vunpack.c.l.b16 %v284
        %v488 = vunpack.c.l.b16 %v285
        %v489 = vunpack.c.l.b16 %v286
        %v490 = vunpack.c.l.b16 %v287
        %v491 = vunpack.c.l.b16 %v288
        %v492 = vunpack.c.l.b16 %v289
        %v493 = vunpack.c.l.b16 %v290
        %v494 = vunpack.c.l.b16 %v291
        %v495 = vunpack.c.l.b16 %v292
        %v496 = vunpack.c.l.b16 %v293
        %v497 = vunpack.c.l.b16 %v294
        %v498 = vunpack.c.l.b16 %v295
        %v499 = vunpack.c.l.b16 %v296
        %v500 = vunpack.c.l.b16 %v297
        %v501 = vunpack.c.l.b16 %v298
        %v502 = vunpack.c.l.b16 %v299
        %v503 = vunpack.c.l.b16 %v300
        %v504 = vunpack.c.l.b16 %v301
        %v505 = vunpack.c.l.b16 %v302
        %v506 = vunpack.c.l.b16 %v303
        %v507 = vunpack.c.l.b16 %v304
        %v508 = vunpack.c.l.b16 %v305
        %v509 = vunpack.c.l.b16 %v306
        %v510 = vunpack.c.l.b16 %v307
        %v511 = vunpack.c.l.b16 %v308
        %v512 = vunpack.c.l.b16 %v309
        %v513 = vunpack.c.l.b16 %v310
        %v514 = vunpack.c.l.b16 %v311
        %v515 = vunpack.c.l.b16 %v312
        %v516 = vunpack.c.l.b16 %v313
        %v517 = vunpack.c.l.b16 %v314
        %v518 = vunpack.c.l.b16 %v315
        %v519 = vunpack.c.l.b16 %v316
        %v520 = vunpack.c.l.b16 %v317
        %v521 = vunpack.c.l.b16 %v318
        %v522 = vunpack.c.l.b16 %v319
        %v523 = vunpack.c.l.b16 %v320
        %v524 = vunpack.c.l.b16 %v321
        %v525 = vunpack.c.l.b16 %v322
        %v526 = vunpack.c.l.b16 %v323
        %v527 = vunpack.c.l.b16 %v324
        %v528 = vunpack.c.l.b16 %v325
        %v529 = vunpack.c.l.b16 %v326
        %v530 = vunpack.c.l.b16 %v327
        %v531 = vunpack.c.l.b16 %v328
        %v532 = vunpack.c.l.b16 %v329
        %v533 = vunpack.c.l.b16 %v330
        %v534 = vunpack.c.l.b16 %v331
        %v535 = vunpack.c.l.b16 %v332
        %v536 = vunpack.c.l.b16 %v333
        %v537 = vunpack.c.l.b16 %v334
        %v538 = vunpack.c.l.b16 %v335
        %v539 = vunpack.c.l.b16 %v336
        %v540 = vunpack.c.l.b16 %v337
        %v541 = vunpack.c.l.b16 %v338
        %v542 = vunpack.c.l.b16 %v339
        %v543 = vunpack.c.l.b16 %v340
        %v544 = vunpack.c.l.b16 %v341
        %v545 = vunpack.c.l.b16 %v342
        %v546 = vunpack.c.l.b16 %v343
        %v547 = vunpack.c.l.b16 %v344
        %v548 = vunpack.c.l.b16 %v345
        %v549 = vunpack.c.l.b16 %v346
        %v550 = vunpack.c.l.b16 %v347
        %v551 = vunpack.c.l.b16 %v348
        %v552 = vunpack.c.l.b16 %v349
        %v553 = vunpack.c.l.b16 %v350
        %v554 = vunpack.c.l.b16 %v351
        %v555 = vunpack.c.l.b16 %v352
        %v556 = vunpack.c.l.b16 %v353
        %v557 = vunpack.c.l.b16 %v354
        %v558 = vunpack.c.l.b16 %v355
        %v559 = vunpack.c.l.b16 %v356
        %v560 = vunpack.c.l.b16 %v357
        %v561 = vunpack.c.l.b16 %v358
        %v562 = vunpack.c.l.b16 %v359
        %v563 = vunpack.c.l.b16 %v360
        %v564 = vunpack.c.l.b16 %v361
        %v565 = vunpack.c.l.b16 %v362
        %v566 = vunpack.c.l.b16 %v363
        %v567 = vunpack.c.l.b16 %v364
        %v568 = vunpack.c.l.b16 %v365
        %v569 = vunpack.c.l.b16 %v366
        %v570 = vunpack.c.l.b16 %v367
        %v571 = vunpack.c.l.b16 %v368
        %v572 = vunpack.c.l.b16 %v369
        %v573 = vunpack.c.l.b16 %v370
        %v574 = vunpack.c.l.b16 %v371
        %v575 = vunpack.c.l.b16 %v372
        %v576 = vpack.c.b16 %v481, %v480
        %v577 = vpack.c.b16 %v483, %v482
        %v578 = vpack.c.b16 %v485, %v484
        %v579 = vpack.c.b16 %v487, %v486
        %v580 = vpack.c.b16 %v489, %v488
        %v581 = vpack.c.b16 %v491, %v490
        %v582 = vpack.c.b16 %v493, %v492
        %v583 = vpack.c.b16 %v495, %v494
        %v584 = vpack.c.b16 %v497, %v496
        %v585 = vpack.c.b16 %v499, %v498
        %v586 = vpack.c.b16 %v501, %v500
        %v587 = vpack.c.b16 %v503, %v502
        %v588 = vpack.c.b16 %v505, %v504
        %v589 = vpack.c.b16 %v507, %v506
        %v590 = vpack.c.b16 %v509, %v508
        %v591 = vpack.c.b16 %v511, %v510
        %v592 = vpack.c.b16 %v513, %v512
        %v593 = vpack.c.b16 %v515, %v514
        %v594 = vpack.c.b16 %v517, %v516
        %v595 = vpack.c.b16 %v519, %v518
        %v596 = vpack.c.b16 %v521, %v520
        %v597 = vpack.c.b16 %v523, %v522
        %v598 = vpack.c.b16 %v525, %v524
        %v599 = vpack.c.b16 %v527, %v526
        %v600 = vpack.c.b16 %v529, %v528
        %v601 = vpack.c.b16 %v531, %v530
        %v602 = vpack.c.b16 %v533, %v532
        %v603 = vpack.c.b16 %v535, %v534
        %v604 = vpack.c.b16 %v537, %v536
        %v605 = vpack.c.b16 %v539, %v538
        %v606 = vpack.c.b16 %v541, %v540
        %v607 = vpack.c.b16 %v543, %v542
        %v608 = vpack.c.b16 %v545, %v544
        %v609 = vpack.c.b16 %v547, %v546
        %v610 = vpack.c.b16 %v549, %v548
        %v611 = vpack.c.b16 %v551, %v550
        %v612 = vpack.c.b16 %v553, %v552
        %v613 = vpack.c.b16 %v555, %v554
        %v614 = vpack.c.b16 %v557, %v556
        %v615 = vpack.c.b16 %v559, %v558
        %v616 = vpack.c.b16 %v561, %v560
        %v617 = vpack.c.b16 %v563, %v562
        %v618 = vpack.c.b16 %v565, %v564
        %v619 = vpack.c.b16 %v567, %v566
        %v620 = vpack.c.b16 %v569, %v568
        %v621 = vpack.c.b16 %v571, %v570
        %v622 = vpack.c.b16 %v573, %v572
        %v623 = vpack.c.b16 %v575, %v574
        %v628 = vunpack.c.l.b16 %v373
        %v629 = vunpack.c.l.b16 %v374
        %v630 = vunpack.c.l.b16 %v375
        %v631 = vunpack.c.l.b16 %v376
        %v632 = vpack.c.b16 %v629, %v628
        %v633 = vpack.c.b16 %v631, %v630
        %vm635 = vcmask 203776
        %v637 = vsel %vm635, %v576, 0
        %v640 = vsel %vm635, %v577, 0
        %v643 = vsel %vm635, %v578, 0
        %v646 = vsel %vm635, %v579, 0
        %v649 = vsel %vm635, %v580, 0
        %v652 = vsel %vm635, %v581, 0
        %v655 = vsel %vm635, %v582, 0
        %v658 = vsel %vm635, %v583, 0
        %v661 = vsel %vm635, %v584, 0
        %v664 = vsel %vm635, %v585, 0
        %v667 = vsel %vm635, %v586, 0
        %v670 = vsel %vm635, %v587, 0
        %v673 = vsel %vm635, %v588, 0
        %v676 = vsel %vm635, %v589, 0
        %v679 = vsel %vm635, %v590, 0
        %v682 = vsel %vm635, %v591, 0
        %v685 = vsel %vm635, %v592, 0
        %v688 = vsel %vm635, %v593, 0
        %v691 = vsel %vm635, %v594, 0
        %v694 = vsel %vm635, %v595, 0
        %v697 = vsel %vm635, %v596, 0
        %v700 = vsel %vm635, %v597, 0
        %v703 = vsel %vm635, %v598, 0
        %v706 = vsel %vm635, %v599, 0
        %v709 = vsel %vm635, %v600, 0
        %v712 = vsel %vm635, %v601, 0
        %v715 = vsel %vm635, %v602, 0
        %v718 = vsel %vm635, %v603, 0
        %v721 = vsel %vm635, %v604, 0
        %v724 = vsel %vm635, %v605, 0
        %v727 = vsel %vm635, %v606, 0
        %v730 = vsel %vm635, %v607, 0
        %v733 = vsel %vm635, %v608, 0
        %v736 = vsel %vm635, %v609, 0
        %v739 = vsel %vm635, %v610, 0
        %v742 = vsel %vm635, %v611, 0
        %v745 = vsel %vm635, %v612, 0
        %v748 = vsel %vm635, %v613, 0
        %v751 = vsel %vm635, %v614, 0
        %v754 = vsel %vm635, %v615, 0
        %v757 = vsel %vm635, %v616, 0
        %v760 = vsel %vm635, %v617, 0
        %v763 = vsel %vm635, %v618, 0
        %v766 = vsel %vm635, %v619, 0
        %v769 = vsel %vm635, %v620, 0
        %v772 = vsel %vm635, %v621, 0
        %v775 = vsel %vm635, %v622, 0
        %v778 = vsel %vm635, %v623, 0
        %vm780 = vcmask 1043456
        %vm781 = vcmask 1044480
        %v782 = vsel %vm780, 4294967295, 65535
        %v783 = vsel %vm781, %v782, 0
        %v785 = vand.u32 %v633, %v783
        %787 = vmatprep.subr.bf16.mxu0 0
        %788 = vmatpush1.bf16.msra.mxu0 %v632
        %789 = vmatprep.subr.bf16.mxu0 0
        %790 = vmatpush1.bf16.msra.mxu0 %v785
        %791 = vmatprep.subr.bf16.mxu0 0
        %792 = vmatpush1.bf16.msra.mxu0 0
        %793 = vmatprep.subr.bf16.mxu0 0
        %794 = vmatpush1.bf16.msra.mxu0 0
        %795 = vmatprep.subr.bf16.mxu0 0
        %796 = vmatpush1.bf16.msra.mxu0 0
        %797 = vmatprep.subr.bf16.mxu0 0
        %798 = vmatpush1.bf16.msra.mxu0 0
        %799 = vmatprep.subr.bf16.mxu0 0
        %800 = vmatpush1.bf16.msra.mxu0 0
        %801 = vmatprep.subr.bf16.mxu0 0
        %802 = vmatpush1.bf16.msra.mxu0 0
        %803 = vmatprep.subr.bf16.mxu0 0
        %804 = vmatpush1.bf16.msra.mxu0 0
        %805 = vmatprep.subr.bf16.mxu0 0
        %806 = vmatpush1.bf16.msra.mxu0 0
        %807 = vmatprep.subr.bf16.mxu0 0
        %808 = vmatpush1.bf16.msra.mxu0 0
        %809 = vmatprep.subr.bf16.mxu0 0
        %810 = vmatpush1.bf16.msra.mxu0 0
        %811 = vmatprep.subr.bf16.mxu0 0
        %812 = vmatpush1.bf16.msra.mxu0 0
        %813 = vmatprep.subr.bf16.mxu0 0
        %814 = vmatpush1.bf16.msra.mxu0 0
        %815 = vmatprep.subr.bf16.mxu0 0
        %816 = vmatpush1.bf16.msra.mxu0 0
        %817 = vmatprep.subr.bf16.mxu0 0
        %818 = vmatpush1.bf16.msra.mxu0 0
        %819 = vmatprep.mubr.bf16.mxu0 0
        %820 = vmatmul.mubr.bf16.gmra.mrb[0].mxu0 %v637
        %v821 = vpop.f32.mrb[0].mxu0
        %v822 = vadd.f32 %v382, %v821
        %v823 = vpop.f32.mrb[0].mxu0
        %v824 = vpop.f32.mrb[0].mxu0
        %v825 = vadd.f32 %v382, %v824
        %v826 = vpop.f32.mrb[0].mxu0
        %827 = vmatprep.mubr.bf16.mxu0 0
        %828 = vmatmul.mubr.bf16.gmra.mrb[0].mxu0 %v640
        %v829 = vpop.f32.mrb[0].mxu0
        %v830 = vadd.f32 %v382, %v829
        %v831 = vpop.f32.mrb[0].mxu0
        %v832 = vpop.f32.mrb[0].mxu0
        %v833 = vadd.f32 %v382, %v832
        %v834 = vpop.f32.mrb[0].mxu0
        %835 = vmatprep.mubr.bf16.mxu0 0
        %836 = vmatmul.mubr.bf16.gmra.mrb[0].mxu0 %v643
        %v837 = vpop.f32.mrb[0].mxu0
        %v838 = vadd.f32 %v382, %v837
        %v839 = vpop.f32.mrb[0].mxu0
        %v840 = vpop.f32.mrb[0].mxu0
        %v841 = vadd.f32 %v382, %v840
        %v842 = vpop.f32.mrb[0].mxu0
        %843 = vmatprep.mubr.bf16.mxu0 0
        %844 = vmatmul.mubr.bf16.gmra.mrb[0].mxu0 %v646
        %v845 = vpop.f32.mrb[0].mxu0
        %v846 = vadd.f32 %v382, %v845
        %v847 = vpop.f32.mrb[0].mxu0
        %v848 = vpop.f32.mrb[0].mxu0
        %v849 = vadd.f32 %v382, %v848
        %v850 = vpop.f32.mrb[0].mxu0
        %851 = vmatprep.mubr.bf16.mxu0 0
        %852 = vmatmul.mubr.bf16.gmra.mrb[0].mxu0 %v649
        %v853 = vpop.f32.mrb[0].mxu0
        %v854 = vadd.f32 %v382, %v853
        %v855 = vpop.f32.mrb[0].mxu0
        %v856 = vpop.f32.mrb[0].mxu0
        %v857 = vadd.f32 %v382, %v856
        %v858 = vpop.f32.mrb[0].mxu0
        %859 = vmatprep.mubr.bf16.mxu0 0
        %860 = vmatmul.mubr.bf16.gmra.mrb[0].mxu0 %v652
        %v861 = vpop.f32.mrb[0].mxu0
        %v862 = vadd.f32 %v382, %v861
        %v863 = vpop.f32.mrb[0].mxu0
        %v864 = vpop.f32.mrb[0].mxu0
        %v865 = vadd.f32 %v382, %v864
        %v866 = vpop.f32.mrb[0].mxu0
        %867 = vmatprep.mubr.bf16.mxu0 0
        %868 = vmatmul.mubr.bf16.gmra.mrb[0].mxu0 %v655
        %v869 = vpop.f32.mrb[0].mxu0
        %v870 = vadd.f32 %v382, %v869
        %v871 = vpop.f32.mrb[0].mxu0
        %v872 = vpop.f32.mrb[0].mxu0
        %v873 = vadd.f32 %v382, %v872
        %v874 = vpop.f32.mrb[0].mxu0
        %875 = vmatprep.mubr.bf16.mxu0 0
        %876 = vmatmul.mubr.bf16.gmra.mrb[0].mxu0 %v658
        %v877 = vpop.f32.mrb[0].mxu0
        %v878 = vadd.f32 %v382, %v877
        %v879 = vpop.f32.mrb[0].mxu0
        %v880 = vpop.f32.mrb[0].mxu0
        %v881 = vadd.f32 %v382, %v880
        %v882 = vpop.f32.mrb[0].mxu0
        %883 = vmatprep.mubr.bf16.mxu0 0
        %884 = vmatmul.mubr.bf16.gmra.mrb[0].mxu0 %v661
        %v885 = vpop.f32.mrb[0].mxu0
        %v886 = vadd.f32 %v382, %v885
        %v887 = vpop.f32.mrb[0].mxu0
        %v888 = vpop.f32.mrb[0].mxu0
        %v889 = vadd.f32 %v382, %v888
        %v890 = vpop.f32.mrb[0].mxu0
        %891 = vmatprep.mubr.bf16.mxu0 0
        %892 = vmatmul.mubr.bf16.gmra.mrb[0].mxu0 %v664
        %v893 = vpop.f32.mrb[0].mxu0
        %v894 = vadd.f32 %v382, %v893
        %v895 = vpop.f32.mrb[0].mxu0
        %v896 = vpop.f32.mrb[0].mxu0
        %v897 = vadd.f32 %v382, %v896
        %v898 = vpop.f32.mrb[0].mxu0
        %899 = vmatprep.mubr.bf16.mxu0 0
        %900 = vmatmul.mubr.bf16.gmra.mrb[0].mxu0 %v667
        %v901 = vpop.f32.mrb[0].mxu0
        %v902 = vadd.f32 %v382, %v901
        %v903 = vpop.f32.mrb[0].mxu0
        %v904 = vpop.f32.mrb[0].mxu0
        %v905 = vadd.f32 %v382, %v904
        %v906 = vpop.f32.mrb[0].mxu0
        %907 = vmatprep.mubr.bf16.mxu0 0
        %908 = vmatmul.mubr.bf16.gmra.mrb[0].mxu0 %v670
        %v909 = vpop.f32.mrb[0].mxu0
        %v910 = vadd.f32 %v382, %v909
        %v911 = vpop.f32.mrb[0].mxu0
        %v912 = vpop.f32.mrb[0].mxu0
        %v913 = vadd.f32 %v382, %v912
        %v914 = vpop.f32.mrb[0].mxu0
        %915 = vmatprep.mubr.bf16.mxu0 0
        %916 = vmatmul.mubr.bf16.gmra.mrb[0].mxu0 %v673
        %v917 = vpop.f32.mrb[0].mxu0
        %v918 = vadd.f32 %v382, %v917
        %v919 = vpop.f32.mrb[0].mxu0
        %v920 = vpop.f32.mrb[0].mxu0
        %v921 = vadd.f32 %v382, %v920
        %v922 = vpop.f32.mrb[0].mxu0
        %923 = vmatprep.mubr.bf16.mxu0 0
        %924 = vmatmul.mubr.bf16.gmra.mrb[0].mxu0 %v676
        %v925 = vpop.f32.mrb[0].mxu0
        %v926 = vadd.f32 %v382, %v925
        %v927 = vpop.f32.mrb[0].mxu0
        %v928 = vpop.f32.mrb[0].mxu0
        %v929 = vadd.f32 %v382, %v928
        %v930 = vpop.f32.mrb[0].mxu0
        %931 = vmatprep.mubr.bf16.mxu0 0
        %932 = vmatmul.mubr.bf16.gmra.mrb[0].mxu0 %v679
        %v933 = vpop.f32.mrb[0].mxu0
        %v934 = vadd.f32 %v382, %v933
        %v935 = vpop.f32.mrb[0].mxu0
        %v936 = vpop.f32.mrb[0].mxu0
        %v937 = vadd.f32 %v382, %v936
        %v938 = vpop.f32.mrb[0].mxu0
        %939 = vmatprep.mubr.bf16.mxu0 0
        %940 = vmatmul.mubr.bf16.gmra.mrb[0].mxu0 %v682
        %v941 = vpop.f32.mrb[0].mxu0
        %v942 = vadd.f32 %v382, %v941
        %v943 = vpop.f32.mrb[0].mxu0
        %v944 = vpop.f32.mrb[0].mxu0
        %v945 = vadd.f32 %v382, %v944
        %v946 = vpop.f32.mrb[0].mxu0
        %947 = vmatprep.mubr.bf16.mxu0 0
        %948 = vmatmul.mubr.bf16.gmra.mrb[0].mxu0 %v685
        %v949 = vpop.f32.mrb[0].mxu0
        %v950 = vadd.f32 %v382, %v949
        %v951 = vpop.f32.mrb[0].mxu0
        %v952 = vpop.f32.mrb[0].mxu0
        %v953 = vadd.f32 %v382, %v952
        %v954 = vpop.f32.mrb[0].mxu0
        %955 = vmatprep.mubr.bf16.mxu0 0
        %956 = vmatmul.mubr.bf16.gmra.mrb[0].mxu0 %v688
        %v957 = vpop.f32.mrb[0].mxu0
        %v958 = vadd.f32 %v382, %v957
        %v959 = vpop.f32.mrb[0].mxu0
        %v960 = vpop.f32.mrb[0].mxu0
        %v961 = vadd.f32 %v382, %v960
        %v962 = vpop.f32.mrb[0].mxu0
        %963 = vmatprep.mubr.bf16.mxu0 0
        %964 = vmatmul.mubr.bf16.gmra.mrb[0].mxu0 %v691
        %v965 = vpop.f32.mrb[0].mxu0
        %v966 = vadd.f32 %v382, %v965
        %v967 = vpop.f32.mrb[0].mxu0
        %v968 = vpop.f32.mrb[0].mxu0
        %v969 = vadd.f32 %v382, %v968
        %v970 = vpop.f32.mrb[0].mxu0
        %971 = vmatprep.mubr.bf16.mxu0 0
        %972 = vmatmul.mubr.bf16.gmra.mrb[0].mxu0 %v694
        %v973 = vpop.f32.mrb[0].mxu0
        %v974 = vadd.f32 %v382, %v973
        %v975 = vpop.f32.mrb[0].mxu0
        %v976 = vpop.f32.mrb[0].mxu0
        %v977 = vadd.f32 %v382, %v976
        %v978 = vpop.f32.mrb[0].mxu0
        %979 = vmatprep.mubr.bf16.mxu0 0
        %980 = vmatmul.mubr.bf16.gmra.mrb[0].mxu0 %v697
        %v981 = vpop.f32.mrb[0].mxu0
        %v982 = vadd.f32 %v382, %v981
        %v983 = vpop.f32.mrb[0].mxu0
        %v984 = vpop.f32.mrb[0].mxu0
        %v985 = vadd.f32 %v382, %v984
        %v986 = vpop.f32.mrb[0].mxu0
        %987 = vmatprep.mubr.bf16.mxu0 0
        %988 = vmatmul.mubr.bf16.gmra.mrb[0].mxu0 %v700
        %v989 = vpop.f32.mrb[0].mxu0
        %v990 = vadd.f32 %v382, %v989
        %v991 = vpop.f32.mrb[0].mxu0
        %v992 = vpop.f32.mrb[0].mxu0
        %v993 = vadd.f32 %v382, %v992
        %v994 = vpop.f32.mrb[0].mxu0
        %995 = vmatprep.mubr.bf16.mxu0 0
        %996 = vmatmul.mubr.bf16.gmra.mrb[0].mxu0 %v703
        %v997 = vpop.f32.mrb[0].mxu0
        %v998 = vadd.f32 %v382, %v997
        %v999 = vpop.f32.mrb[0].mxu0
        %v1000 = vpop.f32.mrb[0].mxu0
        %v1001 = vadd.f32 %v382, %v1000
        %v1002 = vpop.f32.mrb[0].mxu0
        %1003 = vmatprep.mubr.bf16.mxu0 0
        %1004 = vmatmul.mubr.bf16.gmra.mrb[0].mxu0 %v706
        %v1005 = vpop.f32.mrb[0].mxu0
        %v1006 = vadd.f32 %v382, %v1005
        %v1007 = vpop.f32.mrb[0].mxu0
        %v1008 = vpop.f32.mrb[0].mxu0
        %v1009 = vadd.f32 %v382, %v1008
        %v1010 = vpop.f32.mrb[0].mxu0
        %1011 = vmatprep.mubr.bf16.mxu0 0
        %1012 = vmatmul.mubr.bf16.gmra.mrb[0].mxu0 %v709
        %v1013 = vpop.f32.mrb[0].mxu0
        %v1014 = vadd.f32 %v382, %v1013
        %v1015 = vpop.f32.mrb[0].mxu0
        %v1016 = vpop.f32.mrb[0].mxu0
        %v1017 = vadd.f32 %v382, %v1016
        %v1018 = vpop.f32.mrb[0].mxu0
        %1019 = vmatprep.mubr.bf16.mxu0 0
        %1020 = vmatmul.mubr.bf16.gmra.mrb[0].mxu0 %v712
        %v1021 = vpop.f32.mrb[0].mxu0
        %v1022 = vadd.f32 %v382, %v1021
        %v1023 = vpop.f32.mrb[0].mxu0
        %v1024 = vpop.f32.mrb[0].mxu0
        %v1025 = vadd.f32 %v382, %v1024
        %v1026 = vpop.f32.mrb[0].mxu0
        %1027 = vmatprep.mubr.bf16.mxu0 0
        %1028 = vmatmul.mubr.bf16.gmra.mrb[0].mxu0 %v715
        %v1029 = vpop.f32.mrb[0].mxu0
        %v1030 = vadd.f32 %v382, %v1029
        %v1031 = vpop.f32.mrb[0].mxu0
        %v1032 = vpop.f32.mrb[0].mxu0
        %v1033 = vadd.f32 %v382, %v1032
        %v1034 = vpop.f32.mrb[0].mxu0
        %1035 = vmatprep.mubr.bf16.mxu0 0
        %1036 = vmatmul.mubr.bf16.gmra.mrb[0].mxu0 %v718
        %v1037 = vpop.f32.mrb[0].mxu0
        %v1038 = vadd.f32 %v382, %v1037
        %v1039 = vpop.f32.mrb[0].mxu0
        %v1040 = vpop.f32.mrb[0].mxu0
        %v1041 = vadd.f32 %v382, %v1040
        %v1042 = vpop.f32.mrb[0].mxu0
        %1043 = vmatprep.mubr.bf16.mxu0 0
        %1044 = vmatmul.mubr.bf16.gmra.mrb[0].mxu0 %v721
        %v1045 = vpop.f32.mrb[0].mxu0
        %v1046 = vadd.f32 %v382, %v1045
        %v1047 = vpop.f32.mrb[0].mxu0
        %v1048 = vpop.f32.mrb[0].mxu0
        %v1049 = vadd.f32 %v382, %v1048
        %v1050 = vpop.f32.mrb[0].mxu0
        %1051 = vmatprep.mubr.bf16.mxu0 0
        %1052 = vmatmul.mubr.bf16.gmra.mrb[0].mxu0 %v724
        %v1053 = vpop.f32.mrb[0].mxu0
        %v1054 = vadd.f32 %v382, %v1053
        %v1055 = vpop.f32.mrb[0].mxu0
        %v1056 = vpop.f32.mrb[0].mxu0
        %v1057 = vadd.f32 %v382, %v1056
        %v1058 = vpop.f32.mrb[0].mxu0
        %1059 = vmatprep.mubr.bf16.mxu0 0
        %1060 = vmatmul.mubr.bf16.gmra.mrb[0].mxu0 %v727
        %v1061 = vpop.f32.mrb[0].mxu0
        %v1062 = vadd.f32 %v382, %v1061
        %v1063 = vpop.f32.mrb[0].mxu0
        %v1064 = vpop.f32.mrb[0].mxu0
        %v1065 = vadd.f32 %v382, %v1064
        %v1066 = vpop.f32.mrb[0].mxu0
        %1067 = vmatprep.mubr.bf16.mxu0 0
        %1068 = vmatmul.mubr.bf16.gmra.mrb[0].mxu0 %v730
        %v1069 = vpop.f32.mrb[0].mxu0
        %v1070 = vadd.f32 %v382, %v1069
        %v1071 = vpop.f32.mrb[0].mxu0
        %v1072 = vpop.f32.mrb[0].mxu0
        %v1073 = vadd.f32 %v382, %v1072
        %v1074 = vpop.f32.mrb[0].mxu0
        %1075 = vmatprep.mubr.bf16.mxu0 0
        %1076 = vmatmul.mubr.bf16.gmra.mrb[0].mxu0 %v733
        %v1077 = vpop.f32.mrb[0].mxu0
        %v1078 = vadd.f32 %v382, %v1077
        %v1079 = vpop.f32.mrb[0].mxu0
        %v1080 = vpop.f32.mrb[0].mxu0
        %v1081 = vadd.f32 %v382, %v1080
        %v1082 = vpop.f32.mrb[0].mxu0
        %1083 = vmatprep.mubr.bf16.mxu0 0
        %1084 = vmatmul.mubr.bf16.gmra.mrb[0].mxu0 %v736
        %v1085 = vpop.f32.mrb[0].mxu0
        %v1086 = vadd.f32 %v382, %v1085
        %v1087 = vpop.f32.mrb[0].mxu0
        %v1088 = vpop.f32.mrb[0].mxu0
        %v1089 = vadd.f32 %v382, %v1088
        %v1090 = vpop.f32.mrb[0].mxu0
        %1091 = vmatprep.mubr.bf16.mxu0 0
        %1092 = vmatmul.mubr.bf16.gmra.mrb[0].mxu0 %v739
        %v1093 = vpop.f32.mrb[0].mxu0
        %v1094 = vadd.f32 %v382, %v1093
        %v1095 = vpop.f32.mrb[0].mxu0
        %v1096 = vpop.f32.mrb[0].mxu0
        %v1097 = vadd.f32 %v382, %v1096
        %v1098 = vpop.f32.mrb[0].mxu0
        %1099 = vmatprep.mubr.bf16.mxu0 0
        %1100 = vmatmul.mubr.bf16.gmra.mrb[0].mxu0 %v742
        %v1101 = vpop.f32.mrb[0].mxu0
        %v1102 = vadd.f32 %v382, %v1101
        %v1103 = vpop.f32.mrb[0].mxu0
        %v1104 = vpop.f32.mrb[0].mxu0
        %v1105 = vadd.f32 %v382, %v1104
        %v1106 = vpop.f32.mrb[0].mxu0
        %1107 = vmatprep.mubr.bf16.mxu0 0
        %1108 = vmatmul.mubr.bf16.gmra.mrb[0].mxu0 %v745
        %v1109 = vpop.f32.mrb[0].mxu0
        %v1110 = vadd.f32 %v382, %v1109
        %v1111 = vpop.f32.mrb[0].mxu0
        %v1112 = vpop.f32.mrb[0].mxu0
        %v1113 = vadd.f32 %v382, %v1112
        %v1114 = vpop.f32.mrb[0].mxu0
        %1115 = vmatprep.mubr.bf16.mxu0 0
        %1116 = vmatmul.mubr.bf16.gmra.mrb[0].mxu0 %v748
        %v1117 = vpop.f32.mrb[0].mxu0
        %v1118 = vadd.f32 %v382, %v1117
        %v1119 = vpop.f32.mrb[0].mxu0
        %v1120 = vpop.f32.mrb[0].mxu0
        %v1121 = vadd.f32 %v382, %v1120
        %v1122 = vpop.f32.mrb[0].mxu0
        %1123 = vmatprep.mubr.bf16.mxu0 0
        %1124 = vmatmul.mubr.bf16.gmra.mrb[0].mxu0 %v751
        %v1125 = vpop.f32.mrb[0].mxu0
        %v1126 = vadd.f32 %v382, %v1125
        %v1127 = vpop.f32.mrb[0].mxu0
        %v1128 = vpop.f32.mrb[0].mxu0
        %v1129 = vadd.f32 %v382, %v1128
        %v1130 = vpop.f32.mrb[0].mxu0
        %1131 = vmatprep.mubr.bf16.mxu0 0
        %1132 = vmatmul.mubr.bf16.gmra.mrb[0].mxu0 %v754
        %v1133 = vpop.f32.mrb[0].mxu0
        %v1134 = vadd.f32 %v382, %v1133
        %v1135 = vpop.f32.mrb[0].mxu0
        %v1136 = vpop.f32.mrb[0].mxu0
        %v1137 = vadd.f32 %v382, %v1136
        %v1138 = vpop.f32.mrb[0].mxu0
        %1139 = vmatprep.mubr.bf16.mxu0 0
        %1140 = vmatmul.mubr.bf16.gmra.mrb[0].mxu0 %v757
        %v1141 = vpop.f32.mrb[0].mxu0
        %v1142 = vadd.f32 %v382, %v1141
        %v1143 = vpop.f32.mrb[0].mxu0
        %v1144 = vpop.f32.mrb[0].mxu0
        %v1145 = vadd.f32 %v382, %v1144
        %v1146 = vpop.f32.mrb[0].mxu0
        %1147 = vmatprep.mubr.bf16.mxu0 0
        %1148 = vmatmul.mubr.bf16.gmra.mrb[0].mxu0 %v760
        %v1149 = vpop.f32.mrb[0].mxu0
        %v1150 = vadd.f32 %v382, %v1149
        %v1151 = vpop.f32.mrb[0].mxu0
        %v1152 = vpop.f32.mrb[0].mxu0
        %v1153 = vadd.f32 %v382, %v1152
        %v1154 = vpop.f32.mrb[0].mxu0
        %1155 = vmatprep.mubr.bf16.mxu0 0
        %1156 = vmatmul.mubr.bf16.gmra.mrb[0].mxu0 %v763
        %v1157 = vpop.f32.mrb[0].mxu0
        %v1158 = vadd.f32 %v382, %v1157
        %v1159 = vpop.f32.mrb[0].mxu0
        %v1160 = vpop.f32.mrb[0].mxu0
        %v1161 = vadd.f32 %v382, %v1160
        %v1162 = vpop.f32.mrb[0].mxu0
        %1163 = vmatprep.mubr.bf16.mxu0 0
        %1164 = vmatmul.mubr.bf16.gmra.mrb[0].mxu0 %v766
        %v1165 = vpop.f32.mrb[0].mxu0
        %v1166 = vadd.f32 %v382, %v1165
        %v1167 = vpop.f32.mrb[0].mxu0
        %v1168 = vpop.f32.mrb[0].mxu0
        %v1169 = vadd.f32 %v382, %v1168
        %v1170 = vpop.f32.mrb[0].mxu0
        %1171 = vmatprep.mubr.bf16.mxu0 0
        %1172 = vmatmul.mubr.bf16.gmra.mrb[0].mxu0 %v769
        %v1173 = vpop.f32.mrb[0].mxu0
        %v1174 = vadd.f32 %v382, %v1173
        %v1175 = vpop.f32.mrb[0].mxu0
        %v1176 = vpop.f32.mrb[0].mxu0
        %v1177 = vadd.f32 %v382, %v1176
        %v1178 = vpop.f32.mrb[0].mxu0
        %1179 = vmatprep.mubr.bf16.mxu0 0
        %1180 = vmatmul.mubr.bf16.gmra.mrb[0].mxu0 %v772
        %v1181 = vpop.f32.mrb[0].mxu0
        %v1182 = vadd.f32 %v382, %v1181
        %v1183 = vpop.f32.mrb[0].mxu0
        %v1184 = vpop.f32.mrb[0].mxu0
        %v1185 = vadd.f32 %v382, %v1184
        %v1186 = vpop.f32.mrb[0].mxu0
        %1187 = vmatprep.mubr.bf16.mxu0 0
        %1188 = vmatmul.mubr.bf16.gmra.mrb[0].mxu0 %v775
        %v1189 = vpop.f32.mrb[0].mxu0
        %v1190 = vadd.f32 %v382, %v1189
        %v1191 = vpop.f32.mrb[0].mxu0
        %v1192 = vpop.f32.mrb[0].mxu0
        %v1193 = vadd.f32 %v382, %v1192
        %v1194 = vpop.f32.mrb[0].mxu0
        %1195 = vmatprep.mubr.bf16.mxu0 0
        %1196 = vmatmul.mubr.bf16.gmra.mrb[0].mxu0 %v778
        %v1197 = vpop.f32.mrb[0].mxu0
        %v1198 = vadd.f32 %v382, %v1197
        %v1199 = vpop.f32.mrb[0].mxu0
        %v1200 = vpop.f32.mrb[0].mxu0
        %v1201 = vadd.f32 %v382, %v1200
        %v1202 = vpop.f32.mrb[0].mxu0
        %1203 = vdwg.mxu0
        %v1204 = vmax.f32 %v822, 0.0
        %v1205 = vmax.f32 %v825, 0.0
        %v1206 = vmax.f32 %v830, 0.0
        %v1207 = vmax.f32 %v833, 0.0
        %v1208 = vmax.f32 %v838, 0.0
        %v1209 = vmax.f32 %v841, 0.0
        %v1210 = vmax.f32 %v846, 0.0
        %v1211 = vmax.f32 %v849, 0.0
        %v1212 = vmax.f32 %v854, 0.0
        %v1213 = vmax.f32 %v857, 0.0
        %v1214 = vmax.f32 %v862, 0.0
        %v1215 = vmax.f32 %v865, 0.0
        %v1216 = vmax.f32 %v870, 0.0
        %v1217 = vmax.f32 %v873, 0.0
        %v1218 = vmax.f32 %v878, 0.0
        %v1219 = vmax.f32 %v881, 0.0
        %v1220 = vmax.f32 %v886, 0.0
        %v1221 = vmax.f32 %v889, 0.0
        %v1222 = vmax.f32 %v894, 0.0
        %v1223 = vmax.f32 %v897, 0.0
        %v1224 = vmax.f32 %v902, 0.0
        %v1225 = vmax.f32 %v905, 0.0
        %v1226 = vmax.f32 %v910, 0.0
        %v1227 = vmax.f32 %v913, 0.0
        %v1228 = vmax.f32 %v918, 0.0
        %v1229 = vmax.f32 %v921, 0.0
        %v1230 = vmax.f32 %v926, 0.0
        %v1231 = vmax.f32 %v929, 0.0
        %v1232 = vmax.f32 %v934, 0.0
        %v1233 = vmax.f32 %v937, 0.0
        %v1234 = vmax.f32 %v942, 0.0
        %v1235 = vmax.f32 %v945, 0.0
        %v1236 = vmax.f32 %v950, 0.0
        %v1237 = vmax.f32 %v953, 0.0
        %v1238 = vmax.f32 %v958, 0.0
        %v1239 = vmax.f32 %v961, 0.0
        %v1240 = vmax.f32 %v966, 0.0
        %v1241 = vmax.f32 %v969, 0.0
        %v1242 = vmax.f32 %v974, 0.0
        %v1243 = vmax.f32 %v977, 0.0
        %v1244 = vmax.f32 %v982, 0.0
        %v1245 = vmax.f32 %v985, 0.0
        %v1246 = vmax.f32 %v990, 0.0
        %v1247 = vmax.f32 %v993, 0.0
        %v1248 = vmax.f32 %v998, 0.0
        %v1249 = vmax.f32 %v1001, 0.0
        %v1250 = vmax.f32 %v1006, 0.0
        %v1251 = vmax.f32 %v1009, 0.0
        %v1252 = vmax.f32 %v1014, 0.0
        %v1253 = vmax.f32 %v1017, 0.0
        %v1254 = vmax.f32 %v1022, 0.0
        %v1255 = vmax.f32 %v1025, 0.0
        %v1256 = vmax.f32 %v1030, 0.0
        %v1257 = vmax.f32 %v1033, 0.0
        %v1258 = vmax.f32 %v1038, 0.0
        %v1259 = vmax.f32 %v1041, 0.0
        %v1260 = vmax.f32 %v1046, 0.0
        %v1261 = vmax.f32 %v1049, 0.0
        %v1262 = vmax.f32 %v1054, 0.0
        %v1263 = vmax.f32 %v1057, 0.0
        %v1264 = vmax.f32 %v1062, 0.0
        %v1265 = vmax.f32 %v1065, 0.0
        %v1266 = vmax.f32 %v1070, 0.0
        %v1267 = vmax.f32 %v1073, 0.0
        %v1268 = vmax.f32 %v1078, 0.0
        %v1269 = vmax.f32 %v1081, 0.0
        %v1270 = vmax.f32 %v1086, 0.0
        %v1271 = vmax.f32 %v1089, 0.0
        %v1272 = vmax.f32 %v1094, 0.0
        %v1273 = vmax.f32 %v1097, 0.0
        %v1274 = vmax.f32 %v1102, 0.0
        %v1275 = vmax.f32 %v1105, 0.0
        %v1276 = vmax.f32 %v1110, 0.0
        %v1277 = vmax.f32 %v1113, 0.0
        %v1278 = vmax.f32 %v1118, 0.0
        %v1279 = vmax.f32 %v1121, 0.0
        %v1280 = vmax.f32 %v1126, 0.0
        %v1281 = vmax.f32 %v1129, 0.0
        %v1282 = vmax.f32 %v1134, 0.0
        %v1283 = vmax.f32 %v1137, 0.0
        %v1284 = vmax.f32 %v1142, 0.0
        %v1285 = vmax.f32 %v1145, 0.0
        %v1286 = vmax.f32 %v1150, 0.0
        %v1287 = vmax.f32 %v1153, 0.0
        %v1288 = vmax.f32 %v1158, 0.0
        %v1289 = vmax.f32 %v1161, 0.0
        %v1290 = vmax.f32 %v1166, 0.0
        %v1291 = vmax.f32 %v1169, 0.0
        %v1292 = vmax.f32 %v1174, 0.0
        %v1293 = vmax.f32 %v1177, 0.0
        %v1294 = vmax.f32 %v1182, 0.0
        %v1295 = vmax.f32 %v1185, 0.0
        %v1296 = vmax.f32 %v1190, 0.0
        %v1297 = vmax.f32 %v1193, 0.0
        %v1298 = vmax.f32 %v1198, 0.0
        %v1299 = vmax.f32 %v1201, 0.0
        %v1300 = vmax.f32 %v1204, %v1228
        %v1301 = vmax.f32 %v1205, %v1229
        %v1302 = vmax.f32 %v1206, %v1230
        %v1303 = vmax.f32 %v1207, %v1231
        %v1304 = vmax.f32 %v1208, %v1232
        %v1305 = vmax.f32 %v1209, %v1233
        %v1306 = vmax.f32 %v1210, %v1234
        %v1307 = vmax.f32 %v1211, %v1235
        %v1308 = vmax.f32 %v1212, %v1236
        %v1309 = vmax.f32 %v1213, %v1237
        %v1310 = vmax.f32 %v1214, %v1238
        %v1311 = vmax.f32 %v1215, %v1239
        %v1312 = vmax.f32 %v1216, %v1240
        %v1313 = vmax.f32 %v1217, %v1241
        %v1314 = vmax.f32 %v1218, %v1242
        %v1315 = vmax.f32 %v1219, %v1243
        %v1316 = vmax.f32 %v1220, %v1244
        %v1317 = vmax.f32 %v1221, %v1245
        %v1318 = vmax.f32 %v1222, %v1246
        %v1319 = vmax.f32 %v1223, %v1247
        %v1320 = vmax.f32 %v1224, %v1248
        %v1321 = vmax.f32 %v1225, %v1249
        %v1322 = vmax.f32 %v1226, %v1250
        %v1323 = vmax.f32 %v1227, %v1251
        %v1324 = vmax.f32 %v1252, %v1276
        %v1325 = vmax.f32 %v1253, %v1277
        %v1326 = vmax.f32 %v1254, %v1278
        %v1327 = vmax.f32 %v1255, %v1279
        %v1328 = vmax.f32 %v1256, %v1280
        %v1329 = vmax.f32 %v1257, %v1281
        %v1330 = vmax.f32 %v1258, %v1282
        %v1331 = vmax.f32 %v1259, %v1283
        %v1332 = vmax.f32 %v1260, %v1284
        %v1333 = vmax.f32 %v1261, %v1285
        %v1334 = vmax.f32 %v1262, %v1286
        %v1335 = vmax.f32 %v1263, %v1287
        %v1336 = vmax.f32 %v1264, %v1288
        %v1337 = vmax.f32 %v1265, %v1289
        %v1338 = vmax.f32 %v1266, %v1290
        %v1339 = vmax.f32 %v1267, %v1291
        %v1340 = vmax.f32 %v1268, %v1292
        %v1341 = vmax.f32 %v1269, %v1293
        %v1342 = vmax.f32 %v1270, %v1294
        %v1343 = vmax.f32 %v1271, %v1295
        %v1344 = vmax.f32 %v1272, %v1296
        %v1345 = vmax.f32 %v1273, %v1297
        %v1346 = vmax.f32 %v1274, %v1298
        %v1347 = vmax.f32 %v1275, %v1299
        %v1348 = vmax.f32 %v1300, %v1324
        %v1349 = vmax.f32 %v1301, %v1325
        %v1350 = vmax.f32 %v1302, %v1326
        %v1351 = vmax.f32 %v1303, %v1327
        %v1352 = vmax.f32 %v1304, %v1328
        %v1353 = vmax.f32 %v1305, %v1329
        %v1354 = vmax.f32 %v1306, %v1330
        %v1355 = vmax.f32 %v1307, %v1331
        %v1356 = vmax.f32 %v1308, %v1332
        %v1357 = vmax.f32 %v1309, %v1333
        %v1358 = vmax.f32 %v1310, %v1334
        %v1359 = vmax.f32 %v1311, %v1335
        %v1360 = vmax.f32 %v1312, %v1336
        %v1361 = vmax.f32 %v1313, %v1337
        %v1362 = vmax.f32 %v1314, %v1338
        %v1363 = vmax.f32 %v1315, %v1339
        %v1364 = vmax.f32 %v1316, %v1340
        %v1365 = vmax.f32 %v1317, %v1341
        %v1366 = vmax.f32 %v1318, %v1342
        %v1367 = vmax.f32 %v1319, %v1343
        %v1368 = vmax.f32 %v1320, %v1344
        %v1369 = vmax.f32 %v1321, %v1345
        %v1370 = vmax.f32 %v1322, %v1346
        %v1371 = vmax.f32 %v1323, %v1347
        %vm1372 = vcmask 261120
        %1373 = vst.msk [vmem:[#allocation2] sm:$0xff] %vm1372, %v1348
        %1374 = vst.msk [vmem:[#allocation2 + $0x8] sm:$0xff] %vm1372, %v1349
        %s1375 = scalar_lea.vmem [#allocation2], 16
        %1376 = vst.msk [vmem:[%s1375] sm:$0xff] %vm1372, %v1350
        %1377 = vst.msk [vmem:[%s1375 + $0x8] sm:$0xff] %vm1372, %v1351
        %s1378 = scalar_lea.vmem [#allocation2], 32
        %1379 = vst.msk [vmem:[%s1378] sm:$0xff] %vm1372, %v1352
        %1380 = vst.msk [vmem:[%s1378 + $0x8] sm:$0xff] %vm1372, %v1353
        %s1381 = scalar_lea.vmem [#allocation2], 48
        %1382 = vst.msk [vmem:[%s1381] sm:$0xff] %vm1372, %v1354
        %1383 = vst.msk [vmem:[%s1381 + $0x8] sm:$0xff] %vm1372, %v1355
        %s1384 = scalar_lea.vmem [#allocation2], 64
        %1385 = vst.msk [vmem:[%s1384] sm:$0xff] %vm1372, %v1356
        %1386 = vst.msk [vmem:[%s1384 + $0x8] sm:$0xff] %vm1372, %v1357
        %s1387 = scalar_lea.vmem [#allocation2], 80
        %1388 = vst.msk [vmem:[%s1387] sm:$0xff] %vm1372, %v1358
        %1389 = vst.msk [vmem:[%s1387 + $0x8] sm:$0xff] %vm1372, %v1359
        %s1390 = scalar_lea.vmem [#allocation2], 96
        %1391 = vst.msk [vmem:[%s1390] sm:$0xff] %vm1372, %v1360
        %1392 = vst.msk [vmem:[%s1390 + $0x8] sm:$0xff] %vm1372, %v1361
        %s1393 = scalar_lea.vmem [#allocation2], 112
        %1394 = vst.msk [vmem:[%s1393] sm:$0xff] %vm1372, %v1362
        %1395 = vst.msk [vmem:[%s1393 + $0x8] sm:$0xff] %vm1372, %v1363
        %s1396 = scalar_lea.vmem [#allocation2], 128
        %1397 = vst.msk [vmem:[%s1396] sm:$0xff] %vm1372, %v1364
        %1398 = vst.msk [vmem:[%s1396 + $0x8] sm:$0xff] %vm1372, %v1365
        %s1399 = scalar_lea.vmem [#allocation2], 144
        %1400 = vst.msk [vmem:[%s1399] sm:$0xff] %vm1372, %v1366
        %1401 = vst.msk [vmem:[%s1399 + $0x8] sm:$0xff] %vm1372, %v1367
        %s1402 = scalar_lea.vmem [#allocation2], 160
        %1403 = vst.msk [vmem:[%s1402] sm:$0xff] %vm1372, %v1368
        %1404 = vst.msk [vmem:[%s1402 + $0x8] sm:$0xff] %vm1372, %v1369
        %s1405 = scalar_lea.vmem [#allocation2], 176
        %1406 = vst.msk [vmem:[%s1405] sm:$0xff] %vm1372, %v1370
        %1407 = vst.msk [vmem:[%s1405 + $0x8] sm:$0xff] %vm1372, %v1371
        %v1408 = vld [vmem:[#allocation2] sm:$0xff]
        %v1409 = vld [vmem:[#allocation2 + $0x10] sm:$0xff]
        %v1410 = vld [vmem:[#allocation2 + $0x20] sm:$0xff]
        %v1411 = vld [vmem:[#allocation2 + $0x30] sm:$0xff]
        %v1412 = vld [vmem:[#allocation2 + $0x40] sm:$0xff]
        %v1413 = vld [vmem:[#allocation2 + $0x50] sm:$0xff]
        %v1414 = vld [vmem:[#allocation2 + $0x60] sm:$0xff]
        %v1415 = vld [vmem:[#allocation2 + $0x70] sm:$0xff]
        %v1416 = vpack.c.bf16 %v1409, %v1408
        %v1417 = vpack.c.bf16 %v1411, %v1410
        %v1418 = vpack.c.bf16 %v1413, %v1412
        %v1419 = vpack.c.bf16 %v1415, %v1414
        %v1420 = vld [vmem:[%s3] sm:$0xf]
        %v1421 = vld [vmem:[%s3 + $0x4] sm:$0xf]
        %v1422 = vld [vmem:[%s3 + $0x8] sm:$0xf]
        %v1423 = vld [vmem:[%s3 + $0xc] sm:$0xf]
        %v1424 = vld [vmem:[#allocation2 + $0x1] sm:$0xff]
        %v1425 = vld [vmem:[#allocation2 + $0x11] sm:$0xff]
        %v1426 = vld [vmem:[#allocation2 + $0x21] sm:$0xff]
        %v1427 = vld [vmem:[#allocation2 + $0x31] sm:$0xff]
        %v1428 = vld [vmem:[#allocation2 + $0x41] sm:$0xff]
        %v1429 = vld [vmem:[#allocation2 + $0x51] sm:$0xff]
        %v1430 = vld [vmem:[#allocation2 + $0x61] sm:$0xff]
        %v1431 = vld [vmem:[#allocation2 + $0x71] sm:$0xff]
        %v1432 = vpack.c.bf16 %v1425, %v1424
        %v1433 = vpack.c.bf16 %v1427, %v1426
        %v1434 = vpack.c.bf16 %v1429, %v1428
        %v1435 = vpack.c.bf16 %v1431, %v1430
        %s1436 = scalar_lea.vmem %s3, 16
        %v1437 = vld [vmem:[%s1436] sm:$0xf]
        %v1438 = vld [vmem:[%s1436 + $0x4] sm:$0xf]
        %v1439 = vld [vmem:[%s1436 + $0x8] sm:$0xf]
        %v1440 = vld [vmem:[%s1436 + $0xc] sm:$0xf]
        %v1445 = vunpack.c.l.b16 %v1437
        %v1446 = vunpack.c.l.b16 %v1438
        %v1447 = vunpack.c.l.b16 %v1439
        %v1448 = vunpack.c.l.b16 %v1440
        %v1449 = vpack.c.b16 %v1446, %v1445
        %v1450 = vpack.c.b16 %v1448, %v1447
        %v1454 = vsel %vm1372, %v1432, 0
        %v1457 = vsel %vm1372, %v1433, 0
        %v1460 = vsel %vm1372, %v1434, 0
        %v1463 = vsel %vm1372, %v1435, 0
        %1465 = vmatprep.subr.bf16.mxu0 0
        %1466 = vmatpush1.bf16.msra.mxu0 %v1449
        %1467 = vmatprep.subr.bf16.mxu0 0
        %1468 = vmatpush1.bf16.msra.mxu0 %v1450
        %1469 = vmatprep.subr.bf16.mxu0 0
        %1470 = vmatpush1.bf16.msra.mxu0 0
        %1471 = vmatprep.subr.bf16.mxu0 0
        %1472 = vmatpush1.bf16.msra.mxu0 0
        %1473 = vmatprep.subr.bf16.mxu0 0
        %1474 = vmatpush1.bf16.msra.mxu0 0
        %1475 = vmatprep.subr.bf16.mxu0 0
        %1476 = vmatpush1.bf16.msra.mxu0 0
        %1477 = vmatprep.subr.bf16.mxu0 0
        %1478 = vmatpush1.bf16.msra.mxu0 0
        %1479 = vmatprep.subr.bf16.mxu0 0
        %1480 = vmatpush1.bf16.msra.mxu0 0
        %1481 = vmatprep.subr.bf16.mxu0 0
        %1482 = vmatpush1.bf16.msra.mxu0 0
        %1483 = vmatprep.subr.bf16.mxu0 0
        %1484 = vmatpush1.bf16.msra.mxu0 0
        %1485 = vmatprep.subr.bf16.mxu0 0
        %1486 = vmatpush1.bf16.msra.mxu0 0
        %1487 = vmatprep.subr.bf16.mxu0 0
        %1488 = vmatpush1.bf16.msra.mxu0 0
        %1489 = vmatprep.subr.bf16.mxu0 0
        %1490 = vmatpush1.bf16.msra.mxu0 0
        %1491 = vmatprep.subr.bf16.mxu0 0
        %1492 = vmatpush1.bf16.msra.mxu0 0
        %1493 = vmatprep.subr.bf16.mxu0 0
        %1494 = vmatpush1.bf16.msra.mxu0 0
        %1495 = vmatprep.subr.bf16.mxu0 0
        %1496 = vmatpush1.bf16.msra.mxu0 0
        %1497 = vmatprep.mubr.bf16.mxu0 0
        %1498 = vmatmul.mubr.bf16.gmra.mrb[0].mxu0 %v1454
        %v1499 = vpop.f32.mrb[0].mxu0
        %v1500 = vadd.f32 0.0, %v1499
        %v1501 = vpop.f32.mrb[0].mxu0
        %v1502 = vpop.f32.mrb[0].mxu0
        %v1503 = vadd.f32 0.0, %v1502
        %v1504 = vpop.f32.mrb[0].mxu0
        %1505 = vmatprep.mubr.bf16.mxu0 0
        %1506 = vmatmul.mubr.bf16.gmra.mrb[0].mxu0 %v1457
        %v1507 = vpop.f32.mrb[0].mxu0
        %v1508 = vadd.f32 0.0, %v1507
        %v1509 = vpop.f32.mrb[0].mxu0
        %v1510 = vpop.f32.mrb[0].mxu0
        %v1511 = vadd.f32 0.0, %v1510
        %v1512 = vpop.f32.mrb[0].mxu0
        %1513 = vmatprep.mubr.bf16.mxu0 0
        %1514 = vmatmul.mubr.bf16.gmra.mrb[0].mxu0 %v1460
        %v1515 = vpop.f32.mrb[0].mxu0
        %v1516 = vadd.f32 0.0, %v1515
        %v1517 = vpop.f32.mrb[0].mxu0
        %v1518 = vpop.f32.mrb[0].mxu0
        %v1519 = vadd.f32 0.0, %v1518
        %v1520 = vpop.f32.mrb[0].mxu0
        %1521 = vmatprep.mubr.bf16.mxu0 0
        %1522 = vmatmul.mubr.bf16.gmra.mrb[0].mxu0 %v1463
        %v1523 = vpop.f32.mrb[0].mxu0
        %v1524 = vadd.f32 0.0, %v1523
        %v1525 = vpop.f32.mrb[0].mxu0
        %v1526 = vpop.f32.mrb[0].mxu0
        %v1527 = vadd.f32 0.0, %v1526
        %v1528 = vpop.f32.mrb[0].mxu0
        %1529 = vdwg.mxu0
        %v1534 = vunpack.c.l.b16 %v1420
        %v1535 = vunpack.c.l.b16 %v1421
        %v1536 = vunpack.c.l.b16 %v1422
        %v1537 = vunpack.c.l.b16 %v1423
        %v1538 = vpack.c.b16 %v1535, %v1534
        %v1539 = vpack.c.b16 %v1537, %v1536
        %v1543 = vsel %vm1372, %v1416, 0
        %v1546 = vsel %vm1372, %v1417, 0
        %v1549 = vsel %vm1372, %v1418, 0
        %v1552 = vsel %vm1372, %v1419, 0
        %1554 = vmatprep.subr.bf16.mxu0 0
        %1555 = vmatpush1.bf16.msra.mxu0 %v1538
        %1556 = vmatprep.subr.bf16.mxu0 0
        %1557 = vmatpush1.bf16.msra.mxu0 %v1539
        %1558 = vmatprep.subr.bf16.mxu0 0
        %1559 = vmatpush1.bf16.msra.mxu0 0
        %1560 = vmatprep.subr.bf16.mxu0 0
        %1561 = vmatpush1.bf16.msra.mxu0 0
        %1562 = vmatprep.subr.bf16.mxu0 0
        %1563 = vmatpush1.bf16.msra.mxu0 0
        %1564 = vmatprep.subr.bf16.mxu0 0
        %1565 = vmatpush1.bf16.msra.mxu0 0
        %1566 = vmatprep.subr.bf16.mxu0 0
        %1567 = vmatpush1.bf16.msra.mxu0 0
        %1568 = vmatprep.subr.bf16.mxu0 0
        %1569 = vmatpush1.bf16.msra.mxu0 0
        %1570 = vmatprep.subr.bf16.mxu0 0
        %1571 = vmatpush1.bf16.msra.mxu0 0
        %1572 = vmatprep.subr.bf16.mxu0 0
        %1573 = vmatpush1.bf16.msra.mxu0 0
        %1574 = vmatprep.subr.bf16.mxu0 0
        %1575 = vmatpush1.bf16.msra.mxu0 0
        %1576 = vmatprep.subr.bf16.mxu0 0
        %1577 = vmatpush1.bf16.msra.mxu0 0
        %1578 = vmatprep.subr.bf16.mxu0 0
        %1579 = vmatpush1.bf16.msra.mxu0 0
        %1580 = vmatprep.subr.bf16.mxu0 0
        %1581 = vmatpush1.bf16.msra.mxu0 0
        %1582 = vmatprep.subr.bf16.mxu0 0
        %1583 = vmatpush1.bf16.msra.mxu0 0
        %1584 = vmatprep.subr.bf16.mxu0 0
        %1585 = vmatpush1.bf16.msra.mxu0 0
        %1586 = vmatprep.mubr.bf16.mxu0 0
        %1587 = vmatmul.mubr.bf16.gmra.mrb[0].mxu0 %v1543
        %v1588 = vpop.f32.mrb[0].mxu0
        %v1589 = vadd.f32 %v1500, %v1588
        %v1590 = vpop.f32.mrb[0].mxu0
        %v1591 = vpop.f32.mrb[0].mxu0
        %v1592 = vadd.f32 %v1503, %v1591
        %v1593 = vpop.f32.mrb[0].mxu0
        %1594 = vmatprep.mubr.bf16.mxu0 0
        %1595 = vmatmul.mubr.bf16.gmra.mrb[0].mxu0 %v1546
        %v1596 = vpop.f32.mrb[0].mxu0
        %v1597 = vadd.f32 %v1508, %v1596
        %v1598 = vpop.f32.mrb[0].mxu0
        %v1599 = vpop.f32.mrb[0].mxu0
        %v1600 = vadd.f32 %v1511, %v1599
        %v1601 = vpop.f32.mrb[0].mxu0
        %1602 = vmatprep.mubr.bf16.mxu0 0
        %1603 = vmatmul.mubr.bf16.gmra.mrb[0].mxu0 %v1549
        %v1604 = vpop.f32.mrb[0].mxu0
        %v1605 = vadd.f32 %v1516, %v1604
        %v1606 = vpop.f32.mrb[0].mxu0
        %v1607 = vpop.f32.mrb[0].mxu0
        %v1608 = vadd.f32 %v1519, %v1607
        %v1609 = vpop.f32.mrb[0].mxu0
        %1610 = vmatprep.mubr.bf16.mxu0 0
        %1611 = vmatmul.mubr.bf16.gmra.mrb[0].mxu0 %v1552
        %v1612 = vpop.f32.mrb[0].mxu0
        %v1613 = vadd.f32 %v1524, %v1612
        %v1614 = vpop.f32.mrb[0].mxu0
        %v1615 = vpop.f32.mrb[0].mxu0
        %v1616 = vadd.f32 %v1527, %v1615
        %v1617 = vpop.f32.mrb[0].mxu0
        %1618 = vdwg.mxu0
        %v1619 = vld [vmem:[#allocation2 + $0x2] sm:$0xff]
        %v1620 = vld [vmem:[#allocation2 + $0x12] sm:$0xff]
        %v1621 = vld [vmem:[#allocation2 + $0x22] sm:$0xff]
        %v1622 = vld [vmem:[#allocation2 + $0x32] sm:$0xff]
        %v1623 = vld [vmem:[#allocation2 + $0x42] sm:$0xff]
        %v1624 = vld [vmem:[#allocation2 + $0x52] sm:$0xff]
        %v1625 = vld [vmem:[#allocation2 + $0x62] sm:$0xff]
        %v1626 = vld [vmem:[#allocation2 + $0x72] sm:$0xff]
        %v1627 = vpack.c.bf16 %v1620, %v1619
        %v1628 = vpack.c.bf16 %v1622, %v1621
        %v1629 = vpack.c.bf16 %v1624, %v1623
        %v1630 = vpack.c.bf16 %v1626, %v1625
        %s1631 = scalar_lea.vmem %s3, 32
        %v1632 = vld [vmem:[%s1631] sm:$0xf]
        %v1633 = vld [vmem:[%s1631 + $0x4] sm:$0xf]
        %v1634 = vld [vmem:[%s1631 + $0x8] sm:$0xf]
        %v1635 = vld [vmem:[%s1631 + $0xc] sm:$0xf]
        %v1640 = vunpack.c.l.b16 %v1632
        %v1641 = vunpack.c.l.b16 %v1633
        %v1642 = vunpack.c.l.b16 %v1634
        %v1643 = vunpack.c.l.b16 %v1635
        %v1644 = vpack.c.b16 %v1641, %v1640
        %v1645 = vpack.c.b16 %v1643, %v1642
        %v1649 = vsel %vm1372, %v1627, 0
        %v1652 = vsel %vm1372, %v1628, 0
        %v1655 = vsel %vm1372, %v1629, 0
        %v1658 = vsel %vm1372, %v1630, 0
        %1660 = vmatprep.subr.bf16.mxu0 0
        %1661 = vmatpush1.bf16.msra.mxu0 %v1644
        %1662 = vmatprep.subr.bf16.mxu0 0
        %1663 = vmatpush1.bf16.msra.mxu0 %v1645
        %1664 = vmatprep.subr.bf16.mxu0 0
        %1665 = vmatpush1.bf16.msra.mxu0 0
        %1666 = vmatprep.subr.bf16.mxu0 0
        %1667 = vmatpush1.bf16.msra.mxu0 0
        %1668 = vmatprep.subr.bf16.mxu0 0
        %1669 = vmatpush1.bf16.msra.mxu0 0
        %1670 = vmatprep.subr.bf16.mxu0 0
        %1671 = vmatpush1.bf16.msra.mxu0 0
        %1672 = vmatprep.subr.bf16.mxu0 0
        %1673 = vmatpush1.bf16.msra.mxu0 0
        %1674 = vmatprep.subr.bf16.mxu0 0
        %1675 = vmatpush1.bf16.msra.mxu0 0
        %1676 = vmatprep.subr.bf16.mxu0 0
        %1677 = vmatpush1.bf16.msra.mxu0 0
        %1678 = vmatprep.subr.bf16.mxu0 0
        %1679 = vmatpush1.bf16.msra.mxu0 0
        %1680 = vmatprep.subr.bf16.mxu0 0
        %1681 = vmatpush1.bf16.msra.mxu0 0
        %1682 = vmatprep.subr.bf16.mxu0 0
        %1683 = vmatpush1.bf16.msra.mxu0 0
        %1684 = vmatprep.subr.bf16.mxu0 0
        %1685 = vmatpush1.bf16.msra.mxu0 0
        %1686 = vmatprep.subr.bf16.mxu0 0
        %1687 = vmatpush1.bf16.msra.mxu0 0
        %1688 = vmatprep.subr.bf16.mxu0 0
        %1689 = vmatpush1.bf16.msra.mxu0 0
        %1690 = vmatprep.subr.bf16.mxu0 0
        %1691 = vmatpush1.bf16.msra.mxu0 0
        %1692 = vmatprep.mubr.bf16.mxu0 0
        %1693 = vmatmul.mubr.bf16.gmra.mrb[0].mxu0 %v1649
        %v1694 = vpop.f32.mrb[0].mxu0
        %v1695 = vadd.f32 0.0, %v1694
        %v1696 = vpop.f32.mrb[0].mxu0
        %v1697 = vpop.f32.mrb[0].mxu0
        %v1698 = vadd.f32 0.0, %v1697
        %v1699 = vpop.f32.mrb[0].mxu0
        %1700 = vmatprep.mubr.bf16.mxu0 0
        %1701 = vmatmul.mubr.bf16.gmra.mrb[0].mxu0 %v1652
        %v1702 = vpop.f32.mrb[0].mxu0
        %v1703 = vadd.f32 0.0, %v1702
        %v1704 = vpop.f32.mrb[0].mxu0
        %v1705 = vpop.f32.mrb[0].mxu0
        %v1706 = vadd.f32 0.0, %v1705
        %v1707 = vpop.f32.mrb[0].mxu0
        %1708 = vmatprep.mubr.bf16.mxu0 0
        %1709 = vmatmul.mubr.bf16.gmra.mrb[0].mxu0 %v1655
        %v1710 = vpop.f32.mrb[0].mxu0
        %v1711 = vadd.f32 0.0, %v1710
        %v1712 = vpop.f32.mrb[0].mxu0
        %v1713 = vpop.f32.mrb[0].mxu0
        %v1714 = vadd.f32 0.0, %v1713
        %v1715 = vpop.f32.mrb[0].mxu0
        %1716 = vmatprep.mubr.bf16.mxu0 0
        %1717 = vmatmul.mubr.bf16.gmra.mrb[0].mxu0 %v1658
        %v1718 = vpop.f32.mrb[0].mxu0
        %v1719 = vadd.f32 0.0, %v1718
        %v1720 = vpop.f32.mrb[0].mxu0
        %v1721 = vpop.f32.mrb[0].mxu0
        %v1722 = vadd.f32 0.0, %v1721
        %v1723 = vpop.f32.mrb[0].mxu0
        %1724 = vdwg.mxu0
        %v1725 = vadd.f32 %v1589, %v1695
        %v1726 = vadd.f32 %v1592, %v1698
        %v1727 = vadd.f32 %v1597, %v1703
        %v1728 = vadd.f32 %v1600, %v1706
        %v1729 = vadd.f32 %v1605, %v1711
        %v1730 = vadd.f32 %v1608, %v1714
        %v1731 = vadd.f32 %v1613, %v1719
        %v1732 = vadd.f32 %v1616, %v1722
        %v1733 = vld [vmem:[#allocation2 + $0x3] sm:$0xff]
        %v1734 = vld [vmem:[#allocation2 + $0x13] sm:$0xff]
        %v1735 = vld [vmem:[#allocation2 + $0x23] sm:$0xff]
        %v1736 = vld [vmem:[#allocation2 + $0x33] sm:$0xff]
        %v1737 = vld [vmem:[#allocation2 + $0x43] sm:$0xff]
        %v1738 = vld [vmem:[#allocation2 + $0x53] sm:$0xff]
        %v1739 = vld [vmem:[#allocation2 + $0x63] sm:$0xff]
        %v1740 = vld [vmem:[#allocation2 + $0x73] sm:$0xff]
        %v1741 = vpack.c.bf16 %v1734, %v1733
        %v1742 = vpack.c.bf16 %v1736, %v1735
        %v1743 = vpack.c.bf16 %v1738, %v1737
        %v1744 = vpack.c.bf16 %v1740, %v1739
        %s1745 = scalar_lea.vmem %s3, 48
        %v1746 = vld [vmem:[%s1745] sm:$0xf]
        %v1747 = vld [vmem:[%s1745 + $0x4] sm:$0xf]
        %v1748 = vld [vmem:[%s1745 + $0x8] sm:$0xf]
        %v1749 = vld [vmem:[%s1745 + $0xc] sm:$0xf]
        %v1754 = vunpack.c.l.b16 %v1746
        %v1755 = vunpack.c.l.b16 %v1747
        %v1756 = vunpack.c.l.b16 %v1748
        %v1757 = vunpack.c.l.b16 %v1749
        %v1758 = vpack.c.b16 %v1755, %v1754
        %v1759 = vpack.c.b16 %v1757, %v1756
        %v1763 = vsel %vm1372, %v1741, 0
        %v1766 = vsel %vm1372, %v1742, 0
        %v1769 = vsel %vm1372, %v1743, 0
        %v1772 = vsel %vm1372, %v1744, 0
        %1774 = vmatprep.subr.bf16.mxu0 0
        %1775 = vmatpush1.bf16.msra.mxu0 %v1758
        %1776 = vmatprep.subr.bf16.mxu0 0
        %1777 = vmatpush1.bf16.msra.mxu0 %v1759
        %1778 = vmatprep.subr.bf16.mxu0 0
        %1779 = vmatpush1.bf16.msra.mxu0 0
        %1780 = vmatprep.subr.bf16.mxu0 0
        %1781 = vmatpush1.bf16.msra.mxu0 0
        %1782 = vmatprep.subr.bf16.mxu0 0
        %1783 = vmatpush1.bf16.msra.mxu0 0
        %1784 = vmatprep.subr.bf16.mxu0 0
        %1785 = vmatpush1.bf16.msra.mxu0 0
        %1786 = vmatprep.subr.bf16.mxu0 0
        %1787 = vmatpush1.bf16.msra.mxu0 0
        %1788 = vmatprep.subr.bf16.mxu0 0
        %1789 = vmatpush1.bf16.msra.mxu0 0
        %1790 = vmatprep.subr.bf16.mxu0 0
        %1791 = vmatpush1.bf16.msra.mxu0 0
        %1792 = vmatprep.subr.bf16.mxu0 0
        %1793 = vmatpush1.bf16.msra.mxu0 0
        %1794 = vmatprep.subr.bf16.mxu0 0
        %1795 = vmatpush1.bf16.msra.mxu0 0
        %1796 = vmatprep.subr.bf16.mxu0 0
        %1797 = vmatpush1.bf16.msra.mxu0 0
        %1798 = vmatprep.subr.bf16.mxu0 0
        %1799 = vmatpush1.bf16.msra.mxu0 0
        %1800 = vmatprep.subr.bf16.mxu0 0
        %1801 = vmatpush1.bf16.msra.mxu0 0
        %1802 = vmatprep.subr.bf16.mxu0 0
        %1803 = vmatpush1.bf16.msra.mxu0 0
        %1804 = vmatprep.subr.bf16.mxu0 0
        %1805 = vmatpush1.bf16.msra.mxu0 0
        %1806 = vmatprep.mubr.bf16.mxu0 0
        %1807 = vmatmul.mubr.bf16.gmra.mrb[0].mxu0 %v1763
        %v1808 = vpop.f32.mrb[0].mxu0
        %v1809 = vadd.f32 0.0, %v1808
        %v1810 = vpop.f32.mrb[0].mxu0
        %v1811 = vpop.f32.mrb[0].mxu0
        %v1812 = vadd.f32 0.0, %v1811
        %v1813 = vpop.f32.mrb[0].mxu0
        %1814 = vmatprep.mubr.bf16.mxu0 0
        %1815 = vmatmul.mubr.bf16.gmra.mrb[0].mxu0 %v1766
        %v1816 = vpop.f32.mrb[0].mxu0
        %v1817 = vadd.f32 0.0, %v1816
        %v1818 = vpop.f32.mrb[0].mxu0
        %v1819 = vpop.f32.mrb[0].mxu0
        %v1820 = vadd.f32 0.0, %v1819
        %v1821 = vpop.f32.mrb[0].mxu0
        %1822 = vmatprep.mubr.bf16.mxu0 0
        %1823 = vmatmul.mubr.bf16.gmra.mrb[0].mxu0 %v1769
        %v1824 = vpop.f32.mrb[0].mxu0
        %v1825 = vadd.f32 0.0, %v1824
        %v1826 = vpop.f32.mrb[0].mxu0
        %v1827 = vpop.f32.mrb[0].mxu0
        %v1828 = vadd.f32 0.0, %v1827
        %v1829 = vpop.f32.mrb[0].mxu0
        %1830 = vmatprep.mubr.bf16.mxu0 0
        %1831 = vmatmul.mubr.bf16.gmra.mrb[0].mxu0 %v1772
        %v1832 = vpop.f32.mrb[0].mxu0
        %v1833 = vadd.f32 0.0, %v1832
        %v1834 = vpop.f32.mrb[0].mxu0
        %v1835 = vpop.f32.mrb[0].mxu0
        %v1836 = vadd.f32 0.0, %v1835
        %v1837 = vpop.f32.mrb[0].mxu0
        %1838 = vdwg.mxu0
        %v1839 = vadd.f32 %v1725, %v1809
        %v1840 = vadd.f32 %v1726, %v1812
        %v1841 = vadd.f32 %v1727, %v1817
        %v1842 = vadd.f32 %v1728, %v1820
        %v1843 = vadd.f32 %v1729, %v1825
        %v1844 = vadd.f32 %v1730, %v1828
        %v1845 = vadd.f32 %v1731, %v1833
        %v1846 = vadd.f32 %v1732, %v1836
        %v1847 = vld [vmem:[#allocation2 + $0x4] sm:$0xff]
        %v1848 = vld [vmem:[#allocation2 + $0x14] sm:$0xff]
        %v1849 = vld [vmem:[#allocation2 + $0x24] sm:$0xff]
        %v1850 = vld [vmem:[#allocation2 + $0x34] sm:$0xff]
        %v1851 = vld [vmem:[#allocation2 + $0x44] sm:$0xff]
        %v1852 = vld [vmem:[#allocation2 + $0x54] sm:$0xff]
        %v1853 = vld [vmem:[#allocation2 + $0x64] sm:$0xff]
        %v1854 = vld [vmem:[#allocation2 + $0x74] sm:$0xff]
        %v1855 = vpack.c.bf16 %v1848, %v1847
        %v1856 = vpack.c.bf16 %v1850, %v1849
        %v1857 = vpack.c.bf16 %v1852, %v1851
        %v1858 = vpack.c.bf16 %v1854, %v1853
        %s1859 = scalar_lea.vmem %s3, 64
        %v1860 = vld [vmem:[%s1859] sm:$0xf]
        %v1861 = vld [vmem:[%s1859 + $0x4] sm:$0xf]
        %v1862 = vld [vmem:[%s1859 + $0x8] sm:$0xf]
        %v1863 = vld [vmem:[%s1859 + $0xc] sm:$0xf]
        %v1868 = vunpack.c.l.b16 %v1860
        %v1869 = vunpack.c.l.b16 %v1861
        %v1870 = vunpack.c.l.b16 %v1862
        %v1871 = vunpack.c.l.b16 %v1863
        %v1872 = vpack.c.b16 %v1869, %v1868
        %v1873 = vpack.c.b16 %v1871, %v1870
        %v1877 = vsel %vm1372, %v1855, 0
        %v1880 = vsel %vm1372, %v1856, 0
        %v1883 = vsel %vm1372, %v1857, 0
        %v1886 = vsel %vm1372, %v1858, 0
        %1888 = vmatprep.subr.bf16.mxu0 0
        %1889 = vmatpush1.bf16.msra.mxu0 %v1872
        %1890 = vmatprep.subr.bf16.mxu0 0
        %1891 = vmatpush1.bf16.msra.mxu0 %v1873
        %1892 = vmatprep.subr.bf16.mxu0 0
        %1893 = vmatpush1.bf16.msra.mxu0 0
        %1894 = vmatprep.subr.bf16.mxu0 0
        %1895 = vmatpush1.bf16.msra.mxu0 0
        %1896 = vmatprep.subr.bf16.mxu0 0
        %1897 = vmatpush1.bf16.msra.mxu0 0
        %1898 = vmatprep.subr.bf16.mxu0 0
        %1899 = vmatpush1.bf16.msra.mxu0 0
        %1900 = vmatprep.subr.bf16.mxu0 0
        %1901 = vmatpush1.bf16.msra.mxu0 0
        %1902 = vmatprep.subr.bf16.mxu0 0
        %1903 = vmatpush1.bf16.msra.mxu0 0
        %1904 = vmatprep.subr.bf16.mxu0 0
        %1905 = vmatpush1.bf16.msra.mxu0 0
        %1906 = vmatprep.subr.bf16.mxu0 0
        %1907 = vmatpush1.bf16.msra.mxu0 0
        %1908 = vmatprep.subr.bf16.mxu0 0
        %1909 = vmatpush1.bf16.msra.mxu0 0
        %1910 = vmatprep.subr.bf16.mxu0 0
        %1911 = vmatpush1.bf16.msra.mxu0 0
        %1912 = vmatprep.subr.bf16.mxu0 0
        %1913 = vmatpush1.bf16.msra.mxu0 0
        %1914 = vmatprep.subr.bf16.mxu0 0
        %1915 = vmatpush1.bf16.msra.mxu0 0
        %1916 = vmatprep.subr.bf16.mxu0 0
        %1917 = vmatpush1.bf16.msra.mxu0 0
        %1918 = vmatprep.subr.bf16.mxu0 0
        %1919 = vmatpush1.bf16.msra.mxu0 0
        %1920 = vmatprep.mubr.bf16.mxu0 0
        %1921 = vmatmul.mubr.bf16.gmra.mrb[0].mxu0 %v1877
        %v1922 = vpop.f32.mrb[0].mxu0
        %v1923 = vadd.f32 0.0, %v1922
        %v1924 = vpop.f32.mrb[0].mxu0
        %v1925 = vpop.f32.mrb[0].mxu0
        %v1926 = vadd.f32 0.0, %v1925
        %v1927 = vpop.f32.mrb[0].mxu0
        %1928 = vmatprep.mubr.bf16.mxu0 0
        %1929 = vmatmul.mubr.bf16.gmra.mrb[0].mxu0 %v1880
        %v1930 = vpop.f32.mrb[0].mxu0
        %v1931 = vadd.f32 0.0, %v1930
        %v1932 = vpop.f32.mrb[0].mxu0
        %v1933 = vpop.f32.mrb[0].mxu0
        %v1934 = vadd.f32 0.0, %v1933
        %v1935 = vpop.f32.mrb[0].mxu0
        %1936 = vmatprep.mubr.bf16.mxu0 0
        %1937 = vmatmul.mubr.bf16.gmra.mrb[0].mxu0 %v1883
        %v1938 = vpop.f32.mrb[0].mxu0
        %v1939 = vadd.f32 0.0, %v1938
        %v1940 = vpop.f32.mrb[0].mxu0
        %v1941 = vpop.f32.mrb[0].mxu0
        %v1942 = vadd.f32 0.0, %v1941
        %v1943 = vpop.f32.mrb[0].mxu0
        %1944 = vmatprep.mubr.bf16.mxu0 0
        %1945 = vmatmul.mubr.bf16.gmra.mrb[0].mxu0 %v1886
        %v1946 = vpop.f32.mrb[0].mxu0
        %v1947 = vadd.f32 0.0, %v1946
        %v1948 = vpop.f32.mrb[0].mxu0
        %v1949 = vpop.f32.mrb[0].mxu0
        %v1950 = vadd.f32 0.0, %v1949
        %v1951 = vpop.f32.mrb[0].mxu0
        %1952 = vdwg.mxu0
        %v1953 = vadd.f32 %v1839, %v1923
        %v1954 = vadd.f32 %v1840, %v1926
        %v1955 = vadd.f32 %v1841, %v1931
        %v1956 = vadd.f32 %v1842, %v1934
        %v1957 = vadd.f32 %v1843, %v1939
        %v1958 = vadd.f32 %v1844, %v1942
        %v1959 = vadd.f32 %v1845, %v1947
        %v1960 = vadd.f32 %v1846, %v1950
        %v1961 = vld [vmem:[%s1375] sm:$0xff]
        %v1962 = vld [vmem:[%s1375 + $0x10] sm:$0xff]
        %v1963 = vld [vmem:[%s1375 + $0x20] sm:$0xff]
        %v1964 = vld [vmem:[%s1375 + $0x30] sm:$0xff]
        %v1965 = vld [vmem:[%s1375 + $0x40] sm:$0xff]
        %v1966 = vld [vmem:[%s1375 + $0x50] sm:$0xff]
        %v1967 = vld [vmem:[%s1375 + $0x60] sm:$0xff]
        %v1968 = vld [vmem:[%s1375 + $0x70] sm:$0xff]
        %v1969 = vpack.c.bf16 %v1962, %v1961
        %v1970 = vpack.c.bf16 %v1964, %v1963
        %v1971 = vpack.c.bf16 %v1966, %v1965
        %v1972 = vpack.c.bf16 %v1968, %v1967
        %s1973 = scalar_lea.vmem %s3, 80
        %v1974 = vld [vmem:[%s1973] sm:$0xf]
        %v1975 = vld [vmem:[%s1973 + $0x4] sm:$0xf]
        %v1976 = vld [vmem:[%s1973 + $0x8] sm:$0xf]
        %v1977 = vld [vmem:[%s1973 + $0xc] sm:$0xf]
        %v1982 = vunpack.c.l.b16 %v1974
        %v1983 = vunpack.c.l.b16 %v1975
        %v1984 = vunpack.c.l.b16 %v1976
        %v1985 = vunpack.c.l.b16 %v1977
        %v1986 = vpack.c.b16 %v1983, %v1982
        %v1987 = vpack.c.b16 %v1985, %v1984
        %v1991 = vsel %vm1372, %v1969, 0
        %v1994 = vsel %vm1372, %v1970, 0
        %v1997 = vsel %vm1372, %v1971, 0
        %v2000 = vsel %vm1372, %v1972, 0
        %2002 = vmatprep.subr.bf16.mxu0 0
        %2003 = vmatpush1.bf16.msra.mxu0 %v1986
        %2004 = vmatprep.subr.bf16.mxu0 0
        %2005 = vmatpush1.bf16.msra.mxu0 %v1987
        %2006 = vmatprep.subr.bf16.mxu0 0
        %2007 = vmatpush1.bf16.msra.mxu0 0
        %2008 = vmatprep.subr.bf16.mxu0 0
        %2009 = vmatpush1.bf16.msra.mxu0 0
        %2010 = vmatprep.subr.bf16.mxu0 0
        %2011 = vmatpush1.bf16.msra.mxu0 0
        %2012 = vmatprep.subr.bf16.mxu0 0
        %2013 = vmatpush1.bf16.msra.mxu0 0
        %2014 = vmatprep.subr.bf16.mxu0 0
        %2015 = vmatpush1.bf16.msra.mxu0 0
        %2016 = vmatprep.subr.bf16.mxu0 0
        %2017 = vmatpush1.bf16.msra.mxu0 0
        %2018 = vmatprep.subr.bf16.mxu0 0
        %2019 = vmatpush1.bf16.msra.mxu0 0
        %2020 = vmatprep.subr.bf16.mxu0 0
        %2021 = vmatpush1.bf16.msra.mxu0 0
        %2022 = vmatprep.subr.bf16.mxu0 0
        %2023 = vmatpush1.bf16.msra.mxu0 0
        %2024 = vmatprep.subr.bf16.mxu0 0
        %2025 = vmatpush1.bf16.msra.mxu0 0
        %2026 = vmatprep.subr.bf16.mxu0 0
        %2027 = vmatpush1.bf16.msra.mxu0 0
        %2028 = vmatprep.subr.bf16.mxu0 0
        %2029 = vmatpush1.bf16.msra.mxu0 0
        %2030 = vmatprep.subr.bf16.mxu0 0
        %2031 = vmatpush1.bf16.msra.mxu0 0
        %2032 = vmatprep.subr.bf16.mxu0 0
        %2033 = vmatpush1.bf16.msra.mxu0 0
        %2034 = vmatprep.mubr.bf16.mxu0 0
        %2035 = vmatmul.mubr.bf16.gmra.mrb[0].mxu0 %v1991
        %v2036 = vpop.f32.mrb[0].mxu0
        %v2037 = vadd.f32 0.0, %v2036
        %v2038 = vpop.f32.mrb[0].mxu0
        %v2039 = vpop.f32.mrb[0].mxu0
        %v2040 = vadd.f32 0.0, %v2039
        %v2041 = vpop.f32.mrb[0].mxu0
        %2042 = vmatprep.mubr.bf16.mxu0 0
        %2043 = vmatmul.mubr.bf16.gmra.mrb[0].mxu0 %v1994
        %v2044 = vpop.f32.mrb[0].mxu0
        %v2045 = vadd.f32 0.0, %v2044
        %v2046 = vpop.f32.mrb[0].mxu0
        %v2047 = vpop.f32.mrb[0].mxu0
        %v2048 = vadd.f32 0.0, %v2047
        %v2049 = vpop.f32.mrb[0].mxu0
        %2050 = vmatprep.mubr.bf16.mxu0 0
        %2051 = vmatmul.mubr.bf16.gmra.mrb[0].mxu0 %v1997
        %v2052 = vpop.f32.mrb[0].mxu0
        %v2053 = vadd.f32 0.0, %v2052
        %v2054 = vpop.f32.mrb[0].mxu0
        %v2055 = vpop.f32.mrb[0].mxu0
        %v2056 = vadd.f32 0.0, %v2055
        %v2057 = vpop.f32.mrb[0].mxu0
        %2058 = vmatprep.mubr.bf16.mxu0 0
        %2059 = vmatmul.mubr.bf16.gmra.mrb[0].mxu0 %v2000
        %v2060 = vpop.f32.mrb[0].mxu0
        %v2061 = vadd.f32 0.0, %v2060
        %v2062 = vpop.f32.mrb[0].mxu0
        %v2063 = vpop.f32.mrb[0].mxu0
        %v2064 = vadd.f32 0.0, %v2063
        %v2065 = vpop.f32.mrb[0].mxu0
        %2066 = vdwg.mxu0
        %v2067 = vadd.f32 %v1953, %v2037
        %v2068 = vadd.f32 %v1954, %v2040
        %v2069 = vadd.f32 %v1955, %v2045
        %v2070 = vadd.f32 %v1956, %v2048
        %v2071 = vadd.f32 %v1957, %v2053
        %v2072 = vadd.f32 %v1958, %v2056
        %v2073 = vadd.f32 %v1959, %v2061
        %v2074 = vadd.f32 %v1960, %v2064
        %v2075 = vld [vmem:[%s1375 + $0x1] sm:$0xff]
        %v2076 = vld [vmem:[%s1375 + $0x11] sm:$0xff]
        %v2077 = vld [vmem:[%s1375 + $0x21] sm:$0xff]
        %v2078 = vld [vmem:[%s1375 + $0x31] sm:$0xff]
        %v2079 = vld [vmem:[%s1375 + $0x41] sm:$0xff]
        %v2080 = vld [vmem:[%s1375 + $0x51] sm:$0xff]
        %v2081 = vld [vmem:[%s1375 + $0x61] sm:$0xff]
        %v2082 = vld [vmem:[%s1375 + $0x71] sm:$0xff]
        %v2083 = vpack.c.bf16 %v2076, %v2075
        %v2084 = vpack.c.bf16 %v2078, %v2077
        %v2085 = vpack.c.bf16 %v2080, %v2079
        %v2086 = vpack.c.bf16 %v2082, %v2081
        %s2087 = scalar_lea.vmem %s3, 96
        %v2088 = vld [vmem:[%s2087] sm:$0xf]
        %v2089 = vld [vmem:[%s2087 + $0x4] sm:$0xf]
        %v2090 = vld [vmem:[%s2087 + $0x8] sm:$0xf]
        %v2091 = vld [vmem:[%s2087 + $0xc] sm:$0xf]
        %v2096 = vunpack.c.l.b16 %v2088
        %v2097 = vunpack.c.l.b16 %v2089
        %v2098 = vunpack.c.l.b16 %v2090
        %v2099 = vunpack.c.l.b16 %v2091
        %v2100 = vpack.c.b16 %v2097, %v2096
        %v2101 = vpack.c.b16 %v2099, %v2098
        %v2105 = vsel %vm1372, %v2083, 0
        %v2108 = vsel %vm1372, %v2084, 0
        %v2111 = vsel %vm1372, %v2085, 0
        %v2114 = vsel %vm1372, %v2086, 0
        %2116 = vmatprep.subr.bf16.mxu0 0
        %2117 = vmatpush1.bf16.msra.mxu0 %v2100
        %2118 = vmatprep.subr.bf16.mxu0 0
        %2119 = vmatpush1.bf16.msra.mxu0 %v2101
        %2120 = vmatprep.subr.bf16.mxu0 0
        %2121 = vmatpush1.bf16.msra.mxu0 0
        %2122 = vmatprep.subr.bf16.mxu0 0
        %2123 = vmatpush1.bf16.msra.mxu0 0
        %2124 = vmatprep.subr.bf16.mxu0 0
        %2125 = vmatpush1.bf16.msra.mxu0 0
        %2126 = vmatprep.subr.bf16.mxu0 0
        %2127 = vmatpush1.bf16.msra.mxu0 0
        %2128 = vmatprep.subr.bf16.mxu0 0
        %2129 = vmatpush1.bf16.msra.mxu0 0
        %2130 = vmatprep.subr.bf16.mxu0 0
        %2131 = vmatpush1.bf16.msra.mxu0 0
        %2132 = vmatprep.subr.bf16.mxu0 0
        %2133 = vmatpush1.bf16.msra.mxu0 0
        %2134 = vmatprep.subr.bf16.mxu0 0
        %2135 = vmatpush1.bf16.msra.mxu0 0
        %2136 = vmatprep.subr.bf16.mxu0 0
        %2137 = vmatpush1.bf16.msra.mxu0 0
        %2138 = vmatprep.subr.bf16.mxu0 0
        %2139 = vmatpush1.bf16.msra.mxu0 0
        %2140 = vmatprep.subr.bf16.mxu0 0
        %2141 = vmatpush1.bf16.msra.mxu0 0
        %2142 = vmatprep.subr.bf16.mxu0 0
        %2143 = vmatpush1.bf16.msra.mxu0 0
        %2144 = vmatprep.subr.bf16.mxu0 0
        %2145 = vmatpush1.bf16.msra.mxu0 0
        %2146 = vmatprep.subr.bf16.mxu0 0
        %2147 = vmatpush1.bf16.msra.mxu0 0
        %2148 = vmatprep.mubr.bf16.mxu0 0
        %2149 = vmatmul.mubr.bf16.gmra.mrb[0].mxu0 %v2105
        %v2150 = vpop.f32.mrb[0].mxu0
        %v2151 = vadd.f32 0.0, %v2150
        %v2152 = vpop.f32.mrb[0].mxu0
        %v2153 = vpop.f32.mrb[0].mxu0
        %v2154 = vadd.f32 0.0, %v2153
        %v2155 = vpop.f32.mrb[0].mxu0
        %2156 = vmatprep.mubr.bf16.mxu0 0
        %2157 = vmatmul.mubr.bf16.gmra.mrb[0].mxu0 %v2108
        %v2158 = vpop.f32.mrb[0].mxu0
        %v2159 = vadd.f32 0.0, %v2158
        %v2160 = vpop.f32.mrb[0].mxu0
        %v2161 = vpop.f32.mrb[0].mxu0
        %v2162 = vadd.f32 0.0, %v2161
        %v2163 = vpop.f32.mrb[0].mxu0
        %2164 = vmatprep.mubr.bf16.mxu0 0
        %2165 = vmatmul.mubr.bf16.gmra.mrb[0].mxu0 %v2111
        %v2166 = vpop.f32.mrb[0].mxu0
        %v2167 = vadd.f32 0.0, %v2166
        %v2168 = vpop.f32.mrb[0].mxu0
        %v2169 = vpop.f32.mrb[0].mxu0
        %v2170 = vadd.f32 0.0, %v2169
        %v2171 = vpop.f32.mrb[0].mxu0
        %2172 = vmatprep.mubr.bf16.mxu0 0
        %2173 = vmatmul.mubr.bf16.gmra.mrb[0].mxu0 %v2114
        %v2174 = vpop.f32.mrb[0].mxu0
        %v2175 = vadd.f32 0.0, %v2174
        %v2176 = vpop.f32.mrb[0].mxu0
        %v2177 = vpop.f32.mrb[0].mxu0
        %v2178 = vadd.f32 0.0, %v2177
        %v2179 = vpop.f32.mrb[0].mxu0
        %2180 = vdwg.mxu0
        %v2181 = vadd.f32 %v2067, %v2151
        %v2182 = vadd.f32 %v2068, %v2154
        %v2183 = vadd.f32 %v2069, %v2159
        %v2184 = vadd.f32 %v2070, %v2162
        %v2185 = vadd.f32 %v2071, %v2167
        %v2186 = vadd.f32 %v2072, %v2170
        %v2187 = vadd.f32 %v2073, %v2175
        %v2188 = vadd.f32 %v2074, %v2178
        %v2189 = vld [vmem:[%s1375 + $0x2] sm:$0xff]
        %v2190 = vld [vmem:[%s1375 + $0x12] sm:$0xff]
        %v2191 = vld [vmem:[%s1375 + $0x22] sm:$0xff]
        %v2192 = vld [vmem:[%s1375 + $0x32] sm:$0xff]
        %v2193 = vld [vmem:[%s1375 + $0x42] sm:$0xff]
        %v2194 = vld [vmem:[%s1375 + $0x52] sm:$0xff]
        %v2195 = vld [vmem:[%s1375 + $0x62] sm:$0xff]
        %v2196 = vld [vmem:[%s1375 + $0x72] sm:$0xff]
        %v2197 = vpack.c.bf16 %v2190, %v2189
        %v2198 = vpack.c.bf16 %v2192, %v2191
        %v2199 = vpack.c.bf16 %v2194, %v2193
        %v2200 = vpack.c.bf16 %v2196, %v2195
        %s2201 = scalar_lea.vmem %s3, 112
        %v2202 = vld [vmem:[%s2201] sm:$0xf]
        %v2203 = vld [vmem:[%s2201 + $0x4] sm:$0xf]
        %v2204 = vld [vmem:[%s2201 + $0x8] sm:$0xf]
        %v2205 = vld [vmem:[%s2201 + $0xc] sm:$0xf]
        %v2210 = vunpack.c.l.b16 %v2202
        %v2211 = vunpack.c.l.b16 %v2203
        %v2212 = vunpack.c.l.b16 %v2204
        %v2213 = vunpack.c.l.b16 %v2205
        %v2214 = vpack.c.b16 %v2211, %v2210
        %v2215 = vpack.c.b16 %v2213, %v2212
        %v2219 = vsel %vm1372, %v2197, 0
        %v2222 = vsel %vm1372, %v2198, 0
        %v2225 = vsel %vm1372, %v2199, 0
        %v2228 = vsel %vm1372, %v2200, 0
        %2230 = vmatprep.subr.bf16.mxu0 0
        %2231 = vmatpush1.bf16.msra.mxu0 %v2214
        %2232 = vmatprep.subr.bf16.mxu0 0
        %2233 = vmatpush1.bf16.msra.mxu0 %v2215
        %2234 = vmatprep.subr.bf16.mxu0 0
        %2235 = vmatpush1.bf16.msra.mxu0 0
        %2236 = vmatprep.subr.bf16.mxu0 0
        %2237 = vmatpush1.bf16.msra.mxu0 0
        %2238 = vmatprep.subr.bf16.mxu0 0
        %2239 = vmatpush1.bf16.msra.mxu0 0
        %2240 = vmatprep.subr.bf16.mxu0 0
        %2241 = vmatpush1.bf16.msra.mxu0 0
        %2242 = vmatprep.subr.bf16.mxu0 0
        %2243 = vmatpush1.bf16.msra.mxu0 0
        %2244 = vmatprep.subr.bf16.mxu0 0
        %2245 = vmatpush1.bf16.msra.mxu0 0
        %2246 = vmatprep.subr.bf16.mxu0 0
        %2247 = vmatpush1.bf16.msra.mxu0 0
        %2248 = vmatprep.subr.bf16.mxu0 0
        %2249 = vmatpush1.bf16.msra.mxu0 0
        %2250 = vmatprep.subr.bf16.mxu0 0
        %2251 = vmatpush1.bf16.msra.mxu0 0
        %2252 = vmatprep.subr.bf16.mxu0 0
        %2253 = vmatpush1.bf16.msra.mxu0 0
        %2254 = vmatprep.subr.bf16.mxu0 0
        %2255 = vmatpush1.bf16.msra.mxu0 0
        %2256 = vmatprep.subr.bf16.mxu0 0
        %2257 = vmatpush1.bf16.msra.mxu0 0
        %2258 = vmatprep.subr.bf16.mxu0 0
        %2259 = vmatpush1.bf16.msra.mxu0 0
        %2260 = vmatprep.subr.bf16.mxu0 0
        %2261 = vmatpush1.bf16.msra.mxu0 0
        %2262 = vmatprep.mubr.bf16.mxu0 0
        %2263 = vmatmul.mubr.bf16.gmra.mrb[0].mxu0 %v2219
        %v2264 = vpop.f32.mrb[0].mxu0
        %v2265 = vadd.f32 0.0, %v2264
        %v2266 = vpop.f32.mrb[0].mxu0
        %v2267 = vpop.f32.mrb[0].mxu0
        %v2268 = vadd.f32 0.0, %v2267
        %v2269 = vpop.f32.mrb[0].mxu0
        %2270 = vmatprep.mubr.bf16.mxu0 0
        %2271 = vmatmul.mubr.bf16.gmra.mrb[0].mxu0 %v2222
        %v2272 = vpop.f32.mrb[0].mxu0
        %v2273 = vadd.f32 0.0, %v2272
        %v2274 = vpop.f32.mrb[0].mxu0
        %v2275 = vpop.f32.mrb[0].mxu0
        %v2276 = vadd.f32 0.0, %v2275
        %v2277 = vpop.f32.mrb[0].mxu0
        %2278 = vmatprep.mubr.bf16.mxu0 0
        %2279 = vmatmul.mubr.bf16.gmra.mrb[0].mxu0 %v2225
        %v2280 = vpop.f32.mrb[0].mxu0
        %v2281 = vadd.f32 0.0, %v2280
        %v2282 = vpop.f32.mrb[0].mxu0
        %v2283 = vpop.f32.mrb[0].mxu0
        %v2284 = vadd.f32 0.0, %v2283
        %v2285 = vpop.f32.mrb[0].mxu0
        %2286 = vmatprep.mubr.bf16.mxu0 0
        %2287 = vmatmul.mubr.bf16.gmra.mrb[0].mxu0 %v2228
        %v2288 = vpop.f32.mrb[0].mxu0
        %v2289 = vadd.f32 0.0, %v2288
        %v2290 = vpop.f32.mrb[0].mxu0
        %v2291 = vpop.f32.mrb[0].mxu0
        %v2292 = vadd.f32 0.0, %v2291
        %v2293 = vpop.f32.mrb[0].mxu0
        %2294 = vdwg.mxu0
        %v2295 = vadd.f32 %v2181, %v2265
        %v2296 = vadd.f32 %v2182, %v2268
        %v2297 = vadd.f32 %v2183, %v2273
        %v2298 = vadd.f32 %v2184, %v2276
        %v2299 = vadd.f32 %v2185, %v2281
        %v2300 = vadd.f32 %v2186, %v2284
        %v2301 = vadd.f32 %v2187, %v2289
        %v2302 = vadd.f32 %v2188, %v2292
        %v2303 = vld [vmem:[%s1375 + $0x3] sm:$0xff]
        %v2304 = vld [vmem:[%s1375 + $0x13] sm:$0xff]
        %v2305 = vld [vmem:[%s1375 + $0x23] sm:$0xff]
        %v2306 = vld [vmem:[%s1375 + $0x33] sm:$0xff]
        %v2307 = vld [vmem:[%s1375 + $0x43] sm:$0xff]
        %v2308 = vld [vmem:[%s1375 + $0x53] sm:$0xff]
        %v2309 = vld [vmem:[%s1375 + $0x63] sm:$0xff]
        %v2310 = vld [vmem:[%s1375 + $0x73] sm:$0xff]
        %v2311 = vpack.c.bf16 %v2304, %v2303
        %v2312 = vpack.c.bf16 %v2306, %v2305
        %v2313 = vpack.c.bf16 %v2308, %v2307
        %v2314 = vpack.c.bf16 %v2310, %v2309
        %s2315 = scalar_lea.vmem %s3, 128
        %v2316 = vld [vmem:[%s2315] sm:$0xf]
        %v2317 = vld [vmem:[%s2315 + $0x4] sm:$0xf]
        %v2318 = vld [vmem:[%s2315 + $0x8] sm:$0xf]
        %v2319 = vld [vmem:[%s2315 + $0xc] sm:$0xf]
        %v2324 = vunpack.c.l.b16 %v2316
        %v2325 = vunpack.c.l.b16 %v2317
        %v2326 = vunpack.c.l.b16 %v2318
        %v2327 = vunpack.c.l.b16 %v2319
        %v2328 = vpack.c.b16 %v2325, %v2324
        %v2329 = vpack.c.b16 %v2327, %v2326
        %v2333 = vsel %vm1372, %v2311, 0
        %v2336 = vsel %vm1372, %v2312, 0
        %v2339 = vsel %vm1372, %v2313, 0
        %v2342 = vsel %vm1372, %v2314, 0
        %2344 = vmatprep.subr.bf16.mxu0 0
        %2345 = vmatpush1.bf16.msra.mxu0 %v2328
        %2346 = vmatprep.subr.bf16.mxu0 0
        %2347 = vmatpush1.bf16.msra.mxu0 %v2329
        %2348 = vmatprep.subr.bf16.mxu0 0
        %2349 = vmatpush1.bf16.msra.mxu0 0
        %2350 = vmatprep.subr.bf16.mxu0 0
        %2351 = vmatpush1.bf16.msra.mxu0 0
        %2352 = vmatprep.subr.bf16.mxu0 0
        %2353 = vmatpush1.bf16.msra.mxu0 0
        %2354 = vmatprep.subr.bf16.mxu0 0
        %2355 = vmatpush1.bf16.msra.mxu0 0
        %2356 = vmatprep.subr.bf16.mxu0 0
        %2357 = vmatpush1.bf16.msra.mxu0 0
        %2358 = vmatprep.subr.bf16.mxu0 0
        %2359 = vmatpush1.bf16.msra.mxu0 0
        %2360 = vmatprep.subr.bf16.mxu0 0
        %2361 = vmatpush1.bf16.msra.mxu0 0
        %2362 = vmatprep.subr.bf16.mxu0 0
        %2363 = vmatpush1.bf16.msra.mxu0 0
        %2364 = vmatprep.subr.bf16.mxu0 0
        %2365 = vmatpush1.bf16.msra.mxu0 0
        %2366 = vmatprep.subr.bf16.mxu0 0
        %2367 = vmatpush1.bf16.msra.mxu0 0
        %2368 = vmatprep.subr.bf16.mxu0 0
        %2369 = vmatpush1.bf16.msra.mxu0 0
        %2370 = vmatprep.subr.bf16.mxu0 0
        %2371 = vmatpush1.bf16.msra.mxu0 0
        %2372 = vmatprep.subr.bf16.mxu0 0
        %2373 = vmatpush1.bf16.msra.mxu0 0
        %2374 = vmatprep.subr.bf16.mxu0 0
        %2375 = vmatpush1.bf16.msra.mxu0 0
        %2376 = vmatprep.mubr.bf16.mxu0 0
        %2377 = vmatmul.mubr.bf16.gmra.mrb[0].mxu0 %v2333
        %v2378 = vpop.f32.mrb[0].mxu0
        %v2379 = vadd.f32 0.0, %v2378
        %v2380 = vpop.f32.mrb[0].mxu0
        %v2381 = vpop.f32.mrb[0].mxu0
        %v2382 = vadd.f32 0.0, %v2381
        %v2383 = vpop.f32.mrb[0].mxu0
        %2384 = vmatprep.mubr.bf16.mxu0 0
        %2385 = vmatmul.mubr.bf16.gmra.mrb[0].mxu0 %v2336
        %v2386 = vpop.f32.mrb[0].mxu0
        %v2387 = vadd.f32 0.0, %v2386
        %v2388 = vpop.f32.mrb[0].mxu0
        %v2389 = vpop.f32.mrb[0].mxu0
        %v2390 = vadd.f32 0.0, %v2389
        %v2391 = vpop.f32.mrb[0].mxu0
        %2392 = vmatprep.mubr.bf16.mxu0 0
        %2393 = vmatmul.mubr.bf16.gmra.mrb[0].mxu0 %v2339
        %v2394 = vpop.f32.mrb[0].mxu0
        %v2395 = vadd.f32 0.0, %v2394
        %v2396 = vpop.f32.mrb[0].mxu0
        %v2397 = vpop.f32.mrb[0].mxu0
        %v2398 = vadd.f32 0.0, %v2397
        %v2399 = vpop.f32.mrb[0].mxu0
        %2400 = vmatprep.mubr.bf16.mxu0 0
        %2401 = vmatmul.mubr.bf16.gmra.mrb[0].mxu0 %v2342
        %v2402 = vpop.f32.mrb[0].mxu0
        %v2403 = vadd.f32 0.0, %v2402
        %v2404 = vpop.f32.mrb[0].mxu0
        %v2405 = vpop.f32.mrb[0].mxu0
        %v2406 = vadd.f32 0.0, %v2405
        %v2407 = vpop.f32.mrb[0].mxu0
        %2408 = vdwg.mxu0
        %v2409 = vadd.f32 %v2295, %v2379
        %v2410 = vadd.f32 %v2296, %v2382
        %v2411 = vadd.f32 %v2297, %v2387
        %v2412 = vadd.f32 %v2298, %v2390
        %v2413 = vadd.f32 %v2299, %v2395
        %v2414 = vadd.f32 %v2300, %v2398
        %v2415 = vadd.f32 %v2301, %v2403
        %v2416 = vadd.f32 %v2302, %v2406
        %v2417 = vld [vmem:[%s1375 + $0x4] sm:$0xff]
        %v2418 = vld [vmem:[%s1375 + $0x14] sm:$0xff]
        %v2419 = vld [vmem:[%s1375 + $0x24] sm:$0xff]
        %v2420 = vld [vmem:[%s1375 + $0x34] sm:$0xff]
        %v2421 = vld [vmem:[%s1375 + $0x44] sm:$0xff]
        %v2422 = vld [vmem:[%s1375 + $0x54] sm:$0xff]
        %v2423 = vld [vmem:[%s1375 + $0x64] sm:$0xff]
        %v2424 = vld [vmem:[%s1375 + $0x74] sm:$0xff]
        %v2425 = vpack.c.bf16 %v2418, %v2417
        %v2426 = vpack.c.bf16 %v2420, %v2419
        %v2427 = vpack.c.bf16 %v2422, %v2421
        %v2428 = vpack.c.bf16 %v2424, %v2423
        %s2429 = scalar_lea.vmem %s3, 144
        %v2430 = vld [vmem:[%s2429] sm:$0xf]
        %v2431 = vld [vmem:[%s2429 + $0x4] sm:$0xf]
        %v2432 = vld [vmem:[%s2429 + $0x8] sm:$0xf]
        %v2433 = vld [vmem:[%s2429 + $0xc] sm:$0xf]
        %v2438 = vunpack.c.l.b16 %v2430
        %v2439 = vunpack.c.l.b16 %v2431
        %v2440 = vunpack.c.l.b16 %v2432
        %v2441 = vunpack.c.l.b16 %v2433
        %v2442 = vpack.c.b16 %v2439, %v2438
        %v2443 = vpack.c.b16 %v2441, %v2440
        %v2447 = vsel %vm1372, %v2425, 0
        %v2450 = vsel %vm1372, %v2426, 0
        %v2453 = vsel %vm1372, %v2427, 0
        %v2456 = vsel %vm1372, %v2428, 0
        %2458 = vmatprep.subr.bf16.mxu0 0
        %2459 = vmatpush1.bf16.msra.mxu0 %v2442
        %2460 = vmatprep.subr.bf16.mxu0 0
        %2461 = vmatpush1.bf16.msra.mxu0 %v2443
        %2462 = vmatprep.subr.bf16.mxu0 0
        %2463 = vmatpush1.bf16.msra.mxu0 0
        %2464 = vmatprep.subr.bf16.mxu0 0
        %2465 = vmatpush1.bf16.msra.mxu0 0
        %2466 = vmatprep.subr.bf16.mxu0 0
        %2467 = vmatpush1.bf16.msra.mxu0 0
        %2468 = vmatprep.subr.bf16.mxu0 0
        %2469 = vmatpush1.bf16.msra.mxu0 0
        %2470 = vmatprep.subr.bf16.mxu0 0
        %2471 = vmatpush1.bf16.msra.mxu0 0
        %2472 = vmatprep.subr.bf16.mxu0 0
        %2473 = vmatpush1.bf16.msra.mxu0 0
        %2474 = vmatprep.subr.bf16.mxu0 0
        %2475 = vmatpush1.bf16.msra.mxu0 0
        %2476 = vmatprep.subr.bf16.mxu0 0
        %2477 = vmatpush1.bf16.msra.mxu0 0
        %2478 = vmatprep.subr.bf16.mxu0 0
        %2479 = vmatpush1.bf16.msra.mxu0 0
        %2480 = vmatprep.subr.bf16.mxu0 0
        %2481 = vmatpush1.bf16.msra.mxu0 0
        %2482 = vmatprep.subr.bf16.mxu0 0
        %2483 = vmatpush1.bf16.msra.mxu0 0
        %2484 = vmatprep.subr.bf16.mxu0 0
        %2485 = vmatpush1.bf16.msra.mxu0 0
        %2486 = vmatprep.subr.bf16.mxu0 0
        %2487 = vmatpush1.bf16.msra.mxu0 0
        %2488 = vmatprep.subr.bf16.mxu0 0
        %2489 = vmatpush1.bf16.msra.mxu0 0
        %2490 = vmatprep.mubr.bf16.mxu0 0
        %2491 = vmatmul.mubr.bf16.gmra.mrb[0].mxu0 %v2447
        %v2492 = vpop.f32.mrb[0].mxu0
        %v2493 = vadd.f32 0.0, %v2492
        %v2494 = vpop.f32.mrb[0].mxu0
        %v2495 = vpop.f32.mrb[0].mxu0
        %v2496 = vadd.f32 0.0, %v2495
        %v2497 = vpop.f32.mrb[0].mxu0
        %2498 = vmatprep.mubr.bf16.mxu0 0
        %2499 = vmatmul.mubr.bf16.gmra.mrb[0].mxu0 %v2450
        %v2500 = vpop.f32.mrb[0].mxu0
        %v2501 = vadd.f32 0.0, %v2500
        %v2502 = vpop.f32.mrb[0].mxu0
        %v2503 = vpop.f32.mrb[0].mxu0
        %v2504 = vadd.f32 0.0, %v2503
        %v2505 = vpop.f32.mrb[0].mxu0
        %2506 = vmatprep.mubr.bf16.mxu0 0
        %2507 = vmatmul.mubr.bf16.gmra.mrb[0].mxu0 %v2453
        %v2508 = vpop.f32.mrb[0].mxu0
        %v2509 = vadd.f32 0.0, %v2508
        %v2510 = vpop.f32.mrb[0].mxu0
        %v2511 = vpop.f32.mrb[0].mxu0
        %v2512 = vadd.f32 0.0, %v2511
        %v2513 = vpop.f32.mrb[0].mxu0
        %2514 = vmatprep.mubr.bf16.mxu0 0
        %2515 = vmatmul.mubr.bf16.gmra.mrb[0].mxu0 %v2456
        %v2516 = vpop.f32.mrb[0].mxu0
        %v2517 = vadd.f32 0.0, %v2516
        %v2518 = vpop.f32.mrb[0].mxu0
        %v2519 = vpop.f32.mrb[0].mxu0
        %v2520 = vadd.f32 0.0, %v2519
        %v2521 = vpop.f32.mrb[0].mxu0
        %2522 = vdwg.mxu0
        %v2523 = vadd.f32 %v2409, %v2493
        %v2524 = vadd.f32 %v2410, %v2496
        %v2525 = vadd.f32 %v2411, %v2501
        %v2526 = vadd.f32 %v2412, %v2504
        %v2527 = vadd.f32 %v2413, %v2509
        %v2528 = vadd.f32 %v2414, %v2512
        %v2529 = vadd.f32 %v2415, %v2517
        %v2530 = vadd.f32 %v2416, %v2520
        %v2531 = vld [vmem:[%s1378] sm:$0xff]
        %v2532 = vld [vmem:[%s1378 + $0x10] sm:$0xff]
        %v2533 = vld [vmem:[%s1378 + $0x20] sm:$0xff]
        %v2534 = vld [vmem:[%s1378 + $0x30] sm:$0xff]
        %v2535 = vld [vmem:[%s1378 + $0x40] sm:$0xff]
        %v2536 = vld [vmem:[%s1378 + $0x50] sm:$0xff]
        %v2537 = vld [vmem:[%s1378 + $0x60] sm:$0xff]
        %v2538 = vld [vmem:[%s1378 + $0x70] sm:$0xff]
        %v2539 = vpack.c.bf16 %v2532, %v2531
        %v2540 = vpack.c.bf16 %v2534, %v2533
        %v2541 = vpack.c.bf16 %v2536, %v2535
        %v2542 = vpack.c.bf16 %v2538, %v2537
        %s2543 = scalar_lea.vmem %s3, 160
        %v2544 = vld [vmem:[%s2543] sm:$0xf]
        %v2545 = vld [vmem:[%s2543 + $0x4] sm:$0xf]
        %v2546 = vld [vmem:[%s2543 + $0x8] sm:$0xf]
        %v2547 = vld [vmem:[%s2543 + $0xc] sm:$0xf]
        %v2552 = vunpack.c.l.b16 %v2544
        %v2553 = vunpack.c.l.b16 %v2545
        %v2554 = vunpack.c.l.b16 %v2546
        %v2555 = vunpack.c.l.b16 %v2547
        %v2556 = vpack.c.b16 %v2553, %v2552
        %v2557 = vpack.c.b16 %v2555, %v2554
        %v2561 = vsel %vm1372, %v2539, 0
        %v2564 = vsel %vm1372, %v2540, 0
        %v2567 = vsel %vm1372, %v2541, 0
        %v2570 = vsel %vm1372, %v2542, 0
        %2572 = vmatprep.subr.bf16.mxu0 0
        %2573 = vmatpush1.bf16.msra.mxu0 %v2556
        %2574 = vmatprep.subr.bf16.mxu0 0
        %2575 = vmatpush1.bf16.msra.mxu0 %v2557
        %2576 = vmatprep.subr.bf16.mxu0 0
        %2577 = vmatpush1.bf16.msra.mxu0 0
        %2578 = vmatprep.subr.bf16.mxu0 0
        %2579 = vmatpush1.bf16.msra.mxu0 0
        %2580 = vmatprep.subr.bf16.mxu0 0
        %2581 = vmatpush1.bf16.msra.mxu0 0
        %2582 = vmatprep.subr.bf16.mxu0 0
        %2583 = vmatpush1.bf16.msra.mxu0 0
        %2584 = vmatprep.subr.bf16.mxu0 0
        %2585 = vmatpush1.bf16.msra.mxu0 0
        %2586 = vmatprep.subr.bf16.mxu0 0
        %2587 = vmatpush1.bf16.msra.mxu0 0
        %2588 = vmatprep.subr.bf16.mxu0 0
        %2589 = vmatpush1.bf16.msra.mxu0 0
        %2590 = vmatprep.subr.bf16.mxu0 0
        %2591 = vmatpush1.bf16.msra.mxu0 0
        %2592 = vmatprep.subr.bf16.mxu0 0
        %2593 = vmatpush1.bf16.msra.mxu0 0
        %2594 = vmatprep.subr.bf16.mxu0 0
        %2595 = vmatpush1.bf16.msra.mxu0 0
        %2596 = vmatprep.subr.bf16.mxu0 0
        %2597 = vmatpush1.bf16.msra.mxu0 0
        %2598 = vmatprep.subr.bf16.mxu0 0
        %2599 = vmatpush1.bf16.msra.mxu0 0
        %2600 = vmatprep.subr.bf16.mxu0 0
        %2601 = vmatpush1.bf16.msra.mxu0 0
        %2602 = vmatprep.subr.bf16.mxu0 0
        %2603 = vmatpush1.bf16.msra.mxu0 0
        %2604 = vmatprep.mubr.bf16.mxu0 0
        %2605 = vmatmul.mubr.bf16.gmra.mrb[0].mxu0 %v2561
        %v2606 = vpop.f32.mrb[0].mxu0
        %v2607 = vadd.f32 0.0, %v2606
        %v2608 = vpop.f32.mrb[0].mxu0
        %v2609 = vpop.f32.mrb[0].mxu0
        %v2610 = vadd.f32 0.0, %v2609
        %v2611 = vpop.f32.mrb[0].mxu0
        %2612 = vmatprep.mubr.bf16.mxu0 0
        %2613 = vmatmul.mubr.bf16.gmra.mrb[0].mxu0 %v2564
        %v2614 = vpop.f32.mrb[0].mxu0
        %v2615 = vadd.f32 0.0, %v2614
        %v2616 = vpop.f32.mrb[0].mxu0
        %v2617 = vpop.f32.mrb[0].mxu0
        %v2618 = vadd.f32 0.0, %v2617
        %v2619 = vpop.f32.mrb[0].mxu0
        %2620 = vmatprep.mubr.bf16.mxu0 0
        %2621 = vmatmul.mubr.bf16.gmra.mrb[0].mxu0 %v2567
        %v2622 = vpop.f32.mrb[0].mxu0
        %v2623 = vadd.f32 0.0, %v2622
        %v2624 = vpop.f32.mrb[0].mxu0
        %v2625 = vpop.f32.mrb[0].mxu0
        %v2626 = vadd.f32 0.0, %v2625
        %v2627 = vpop.f32.mrb[0].mxu0
        %2628 = vmatprep.mubr.bf16.mxu0 0
        %2629 = vmatmul.mubr.bf16.gmra.mrb[0].mxu0 %v2570
        %v2630 = vpop.f32.mrb[0].mxu0
        %v2631 = vadd.f32 0.0, %v2630
        %v2632 = vpop.f32.mrb[0].mxu0
        %v2633 = vpop.f32.mrb[0].mxu0
        %v2634 = vadd.f32 0.0, %v2633
        %v2635 = vpop.f32.mrb[0].mxu0
        %2636 = vdwg.mxu0
        %v2637 = vadd.f32 %v2523, %v2607
        %v2638 = vadd.f32 %v2524, %v2610
        %v2639 = vadd.f32 %v2525, %v2615
        %v2640 = vadd.f32 %v2526, %v2618
        %v2641 = vadd.f32 %v2527, %v2623
        %v2642 = vadd.f32 %v2528, %v2626
        %v2643 = vadd.f32 %v2529, %v2631
        %v2644 = vadd.f32 %v2530, %v2634
        %v2645 = vld [vmem:[%s1378 + $0x1] sm:$0xff]
        %v2646 = vld [vmem:[%s1378 + $0x11] sm:$0xff]
        %v2647 = vld [vmem:[%s1378 + $0x21] sm:$0xff]
        %v2648 = vld [vmem:[%s1378 + $0x31] sm:$0xff]
        %v2649 = vld [vmem:[%s1378 + $0x41] sm:$0xff]
        %v2650 = vld [vmem:[%s1378 + $0x51] sm:$0xff]
        %v2651 = vld [vmem:[%s1378 + $0x61] sm:$0xff]
        %v2652 = vld [vmem:[%s1378 + $0x71] sm:$0xff]
        %v2653 = vpack.c.bf16 %v2646, %v2645
        %v2654 = vpack.c.bf16 %v2648, %v2647
        %v2655 = vpack.c.bf16 %v2650, %v2649
        %v2656 = vpack.c.bf16 %v2652, %v2651
        %s2657 = scalar_lea.vmem %s3, 176
        %v2658 = vld [vmem:[%s2657] sm:$0xf]
        %v2659 = vld [vmem:[%s2657 + $0x4] sm:$0xf]
        %v2660 = vld [vmem:[%s2657 + $0x8] sm:$0xf]
        %v2661 = vld [vmem:[%s2657 + $0xc] sm:$0xf]
        %v2666 = vunpack.c.l.b16 %v2658
        %v2667 = vunpack.c.l.b16 %v2659
        %v2668 = vunpack.c.l.b16 %v2660
        %v2669 = vunpack.c.l.b16 %v2661
        %v2670 = vpack.c.b16 %v2667, %v2666
        %v2671 = vpack.c.b16 %v2669, %v2668
        %v2675 = vsel %vm1372, %v2653, 0
        %v2678 = vsel %vm1372, %v2654, 0
        %v2681 = vsel %vm1372, %v2655, 0
        %v2684 = vsel %vm1372, %v2656, 0
        %2686 = vmatprep.subr.bf16.mxu0 0
        %2687 = vmatpush1.bf16.msra.mxu0 %v2670
        %2688 = vmatprep.subr.bf16.mxu0 0
        %2689 = vmatpush1.bf16.msra.mxu0 %v2671
        %2690 = vmatprep.subr.bf16.mxu0 0
        %2691 = vmatpush1.bf16.msra.mxu0 0
        %2692 = vmatprep.subr.bf16.mxu0 0
        %2693 = vmatpush1.bf16.msra.mxu0 0
        %2694 = vmatprep.subr.bf16.mxu0 0
        %2695 = vmatpush1.bf16.msra.mxu0 0
        %2696 = vmatprep.subr.bf16.mxu0 0
        %2697 = vmatpush1.bf16.msra.mxu0 0
        %2698 = vmatprep.subr.bf16.mxu0 0
        %2699 = vmatpush1.bf16.msra.mxu0 0
        %2700 = vmatprep.subr.bf16.mxu0 0
        %2701 = vmatpush1.bf16.msra.mxu0 0
        %2702 = vmatprep.subr.bf16.mxu0 0
        %2703 = vmatpush1.bf16.msra.mxu0 0
        %2704 = vmatprep.subr.bf16.mxu0 0
        %2705 = vmatpush1.bf16.msra.mxu0 0
        %2706 = vmatprep.subr.bf16.mxu0 0
        %2707 = vmatpush1.bf16.msra.mxu0 0
        %2708 = vmatprep.subr.bf16.mxu0 0
        %2709 = vmatpush1.bf16.msra.mxu0 0
        %2710 = vmatprep.subr.bf16.mxu0 0
        %2711 = vmatpush1.bf16.msra.mxu0 0
        %2712 = vmatprep.subr.bf16.mxu0 0
        %2713 = vmatpush1.bf16.msra.mxu0 0
        %2714 = vmatprep.subr.bf16.mxu0 0
        %2715 = vmatpush1.bf16.msra.mxu0 0
        %2716 = vmatprep.subr.bf16.mxu0 0
        %2717 = vmatpush1.bf16.msra.mxu0 0
        %2718 = vmatprep.mubr.bf16.mxu0 0
        %2719 = vmatmul.mubr.bf16.gmra.mrb[0].mxu0 %v2675
        %v2720 = vpop.f32.mrb[0].mxu0
        %v2721 = vadd.f32 0.0, %v2720
        %v2722 = vpop.f32.mrb[0].mxu0
        %v2723 = vpop.f32.mrb[0].mxu0
        %v2724 = vadd.f32 0.0, %v2723
        %v2725 = vpop.f32.mrb[0].mxu0
        %2726 = vmatprep.mubr.bf16.mxu0 0
        %2727 = vmatmul.mubr.bf16.gmra.mrb[0].mxu0 %v2678
        %v2728 = vpop.f32.mrb[0].mxu0
        %v2729 = vadd.f32 0.0, %v2728
        %v2730 = vpop.f32.mrb[0].mxu0
        %v2731 = vpop.f32.mrb[0].mxu0
        %v2732 = vadd.f32 0.0, %v2731
        %v2733 = vpop.f32.mrb[0].mxu0
        %2734 = vmatprep.mubr.bf16.mxu0 0
        %2735 = vmatmul.mubr.bf16.gmra.mrb[0].mxu0 %v2681
        %v2736 = vpop.f32.mrb[0].mxu0
        %v2737 = vadd.f32 0.0, %v2736
        %v2738 = vpop.f32.mrb[0].mxu0
        %v2739 = vpop.f32.mrb[0].mxu0
        %v2740 = vadd.f32 0.0, %v2739
        %v2741 = vpop.f32.mrb[0].mxu0
        %2742 = vmatprep.mubr.bf16.mxu0 0
        %2743 = vmatmul.mubr.bf16.gmra.mrb[0].mxu0 %v2684
        %v2744 = vpop.f32.mrb[0].mxu0
        %v2745 = vadd.f32 0.0, %v2744
        %v2746 = vpop.f32.mrb[0].mxu0
        %v2747 = vpop.f32.mrb[0].mxu0
        %v2748 = vadd.f32 0.0, %v2747
        %v2749 = vpop.f32.mrb[0].mxu0
        %2750 = vdwg.mxu0
        %v2751 = vadd.f32 %v2637, %v2721
        %v2752 = vadd.f32 %v2638, %v2724
        %v2753 = vadd.f32 %v2639, %v2729
        %v2754 = vadd.f32 %v2640, %v2732
        %v2755 = vadd.f32 %v2641, %v2737
        %v2756 = vadd.f32 %v2642, %v2740
        %v2757 = vadd.f32 %v2643, %v2745
        %v2758 = vadd.f32 %v2644, %v2748
        %v2759 = vld [vmem:[%s1378 + $0x2] sm:$0xff]
        %v2760 = vld [vmem:[%s1378 + $0x12] sm:$0xff]
        %v2761 = vld [vmem:[%s1378 + $0x22] sm:$0xff]
        %v2762 = vld [vmem:[%s1378 + $0x32] sm:$0xff]
        %v2763 = vld [vmem:[%s1378 + $0x42] sm:$0xff]
        %v2764 = vld [vmem:[%s1378 + $0x52] sm:$0xff]
        %v2765 = vld [vmem:[%s1378 + $0x62] sm:$0xff]
        %v2766 = vld [vmem:[%s1378 + $0x72] sm:$0xff]
        %v2767 = vpack.c.bf16 %v2760, %v2759
        %v2768 = vpack.c.bf16 %v2762, %v2761
        %v2769 = vpack.c.bf16 %v2764, %v2763
        %v2770 = vpack.c.bf16 %v2766, %v2765
        %s2771 = scalar_lea.vmem %s3, 192
        %v2772 = vld [vmem:[%s2771] sm:$0xf]
        %v2773 = vld [vmem:[%s2771 + $0x4] sm:$0xf]
        %v2774 = vld [vmem:[%s2771 + $0x8] sm:$0xf]
        %v2775 = vld [vmem:[%s2771 + $0xc] sm:$0xf]
        %v2780 = vunpack.c.l.b16 %v2772
        %v2781 = vunpack.c.l.b16 %v2773
        %v2782 = vunpack.c.l.b16 %v2774
        %v2783 = vunpack.c.l.b16 %v2775
        %v2784 = vpack.c.b16 %v2781, %v2780
        %v2785 = vpack.c.b16 %v2783, %v2782
        %v2789 = vsel %vm1372, %v2767, 0
        %v2792 = vsel %vm1372, %v2768, 0
        %v2795 = vsel %vm1372, %v2769, 0
        %v2798 = vsel %vm1372, %v2770, 0
        %2800 = vmatprep.subr.bf16.mxu0 0
        %2801 = vmatpush1.bf16.msra.mxu0 %v2784
        %2802 = vmatprep.subr.bf16.mxu0 0
        %2803 = vmatpush1.bf16.msra.mxu0 %v2785
        %2804 = vmatprep.subr.bf16.mxu0 0
        %2805 = vmatpush1.bf16.msra.mxu0 0
        %2806 = vmatprep.subr.bf16.mxu0 0
        %2807 = vmatpush1.bf16.msra.mxu0 0
        %2808 = vmatprep.subr.bf16.mxu0 0
        %2809 = vmatpush1.bf16.msra.mxu0 0
        %2810 = vmatprep.subr.bf16.mxu0 0
        %2811 = vmatpush1.bf16.msra.mxu0 0
        %2812 = vmatprep.subr.bf16.mxu0 0
        %2813 = vmatpush1.bf16.msra.mxu0 0
        %2814 = vmatprep.subr.bf16.mxu0 0
        %2815 = vmatpush1.bf16.msra.mxu0 0
        %2816 = vmatprep.subr.bf16.mxu0 0
        %2817 = vmatpush1.bf16.msra.mxu0 0
        %2818 = vmatprep.subr.bf16.mxu0 0
        %2819 = vmatpush1.bf16.msra.mxu0 0
        %2820 = vmatprep.subr.bf16.mxu0 0
        %2821 = vmatpush1.bf16.msra.mxu0 0
        %2822 = vmatprep.subr.bf16.mxu0 0
        %2823 = vmatpush1.bf16.msra.mxu0 0
        %2824 = vmatprep.subr.bf16.mxu0 0
        %2825 = vmatpush1.bf16.msra.mxu0 0
        %2826 = vmatprep.subr.bf16.mxu0 0
        %2827 = vmatpush1.bf16.msra.mxu0 0
        %2828 = vmatprep.subr.bf16.mxu0 0
        %2829 = vmatpush1.bf16.msra.mxu0 0
        %2830 = vmatprep.subr.bf16.mxu0 0
        %2831 = vmatpush1.bf16.msra.mxu0 0
        %2832 = vmatprep.mubr.bf16.mxu0 0
        %2833 = vmatmul.mubr.bf16.gmra.mrb[0].mxu0 %v2789
        %v2834 = vpop.f32.mrb[0].mxu0
        %v2835 = vadd.f32 0.0, %v2834
        %v2836 = vpop.f32.mrb[0].mxu0
        %v2837 = vpop.f32.mrb[0].mxu0
        %v2838 = vadd.f32 0.0, %v2837
        %v2839 = vpop.f32.mrb[0].mxu0
        %2840 = vmatprep.mubr.bf16.mxu0 0
        %2841 = vmatmul.mubr.bf16.gmra.mrb[0].mxu0 %v2792
        %v2842 = vpop.f32.mrb[0].mxu0
        %v2843 = vadd.f32 0.0, %v2842
        %v2844 = vpop.f32.mrb[0].mxu0
        %v2845 = vpop.f32.mrb[0].mxu0
        %v2846 = vadd.f32 0.0, %v2845
        %v2847 = vpop.f32.mrb[0].mxu0
        %2848 = vmatprep.mubr.bf16.mxu0 0
        %2849 = vmatmul.mubr.bf16.gmra.mrb[0].mxu0 %v2795
        %v2850 = vpop.f32.mrb[0].mxu0
        %v2851 = vadd.f32 0.0, %v2850
        %v2852 = vpop.f32.mrb[0].mxu0
        %v2853 = vpop.f32.mrb[0].mxu0
        %v2854 = vadd.f32 0.0, %v2853
        %v2855 = vpop.f32.mrb[0].mxu0
        %2856 = vmatprep.mubr.bf16.mxu0 0
        %2857 = vmatmul.mubr.bf16.gmra.mrb[0].mxu0 %v2798
        %v2858 = vpop.f32.mrb[0].mxu0
        %v2859 = vadd.f32 0.0, %v2858
        %v2860 = vpop.f32.mrb[0].mxu0
        %v2861 = vpop.f32.mrb[0].mxu0
        %v2862 = vadd.f32 0.0, %v2861
        %v2863 = vpop.f32.mrb[0].mxu0
        %2864 = vdwg.mxu0
        %v2865 = vadd.f32 %v2751, %v2835
        %v2866 = vadd.f32 %v2752, %v2838
        %v2867 = vadd.f32 %v2753, %v2843
        %v2868 = vadd.f32 %v2754, %v2846
        %v2869 = vadd.f32 %v2755, %v2851
        %v2870 = vadd.f32 %v2756, %v2854
        %v2871 = vadd.f32 %v2757, %v2859
        %v2872 = vadd.f32 %v2758, %v2862
        %v2873 = vld [vmem:[%s1378 + $0x3] sm:$0xff]
        %v2874 = vld [vmem:[%s1378 + $0x13] sm:$0xff]
        %v2875 = vld [vmem:[%s1378 + $0x23] sm:$0xff]
        %v2876 = vld [vmem:[%s1378 + $0x33] sm:$0xff]
        %v2877 = vld [vmem:[%s1378 + $0x43] sm:$0xff]
        %v2878 = vld [vmem:[%s1378 + $0x53] sm:$0xff]
        %v2879 = vld [vmem:[%s1378 + $0x63] sm:$0xff]
        %v2880 = vld [vmem:[%s1378 + $0x73] sm:$0xff]
        %v2881 = vpack.c.bf16 %v2874, %v2873
        %v2882 = vpack.c.bf16 %v2876, %v2875
        %v2883 = vpack.c.bf16 %v2878, %v2877
        %v2884 = vpack.c.bf16 %v2880, %v2879
        %s2885 = scalar_lea.vmem %s3, 208
        %v2886 = vld [vmem:[%s2885] sm:$0xf]
        %v2887 = vld [vmem:[%s2885 + $0x4] sm:$0xf]
        %v2888 = vld [vmem:[%s2885 + $0x8] sm:$0xf]
        %v2889 = vld [vmem:[%s2885 + $0xc] sm:$0xf]
        %v2894 = vunpack.c.l.b16 %v2886
        %v2895 = vunpack.c.l.b16 %v2887
        %v2896 = vunpack.c.l.b16 %v2888
        %v2897 = vunpack.c.l.b16 %v2889
        %v2898 = vpack.c.b16 %v2895, %v2894
        %v2899 = vpack.c.b16 %v2897, %v2896
        %v2903 = vsel %vm1372, %v2881, 0
        %v2906 = vsel %vm1372, %v2882, 0
        %v2909 = vsel %vm1372, %v2883, 0
        %v2912 = vsel %vm1372, %v2884, 0
        %2914 = vmatprep.subr.bf16.mxu0 0
        %2915 = vmatpush1.bf16.msra.mxu0 %v2898
        %2916 = vmatprep.subr.bf16.mxu0 0
        %2917 = vmatpush1.bf16.msra.mxu0 %v2899
        %2918 = vmatprep.subr.bf16.mxu0 0
        %2919 = vmatpush1.bf16.msra.mxu0 0
        %2920 = vmatprep.subr.bf16.mxu0 0
        %2921 = vmatpush1.bf16.msra.mxu0 0
        %2922 = vmatprep.subr.bf16.mxu0 0
        %2923 = vmatpush1.bf16.msra.mxu0 0
        %2924 = vmatprep.subr.bf16.mxu0 0
        %2925 = vmatpush1.bf16.msra.mxu0 0
        %2926 = vmatprep.subr.bf16.mxu0 0
        %2927 = vmatpush1.bf16.msra.mxu0 0
        %2928 = vmatprep.subr.bf16.mxu0 0
        %2929 = vmatpush1.bf16.msra.mxu0 0
        %2930 = vmatprep.subr.bf16.mxu0 0
        %2931 = vmatpush1.bf16.msra.mxu0 0
        %2932 = vmatprep.subr.bf16.mxu0 0
        %2933 = vmatpush1.bf16.msra.mxu0 0
        %2934 = vmatprep.subr.bf16.mxu0 0
        %2935 = vmatpush1.bf16.msra.mxu0 0
        %2936 = vmatprep.subr.bf16.mxu0 0
        %2937 = vmatpush1.bf16.msra.mxu0 0
        %2938 = vmatprep.subr.bf16.mxu0 0
        %2939 = vmatpush1.bf16.msra.mxu0 0
        %2940 = vmatprep.subr.bf16.mxu0 0
        %2941 = vmatpush1.bf16.msra.mxu0 0
        %2942 = vmatprep.subr.bf16.mxu0 0
        %2943 = vmatpush1.bf16.msra.mxu0 0
        %2944 = vmatprep.subr.bf16.mxu0 0
        %2945 = vmatpush1.bf16.msra.mxu0 0
        %2946 = vmatprep.mubr.bf16.mxu0 0
        %2947 = vmatmul.mubr.bf16.gmra.mrb[0].mxu0 %v2903
        %v2948 = vpop.f32.mrb[0].mxu0
        %v2949 = vadd.f32 0.0, %v2948
        %v2950 = vpop.f32.mrb[0].mxu0
        %v2951 = vpop.f32.mrb[0].mxu0
        %v2952 = vadd.f32 0.0, %v2951
        %v2953 = vpop.f32.mrb[0].mxu0
        %2954 = vmatprep.mubr.bf16.mxu0 0
        %2955 = vmatmul.mubr.bf16.gmra.mrb[0].mxu0 %v2906
        %v2956 = vpop.f32.mrb[0].mxu0
        %v2957 = vadd.f32 0.0, %v2956
        %v2958 = vpop.f32.mrb[0].mxu0
        %v2959 = vpop.f32.mrb[0].mxu0
        %v2960 = vadd.f32 0.0, %v2959
        %v2961 = vpop.f32.mrb[0].mxu0
        %2962 = vmatprep.mubr.bf16.mxu0 0
        %2963 = vmatmul.mubr.bf16.gmra.mrb[0].mxu0 %v2909
        %v2964 = vpop.f32.mrb[0].mxu0
        %v2965 = vadd.f32 0.0, %v2964
        %v2966 = vpop.f32.mrb[0].mxu0
        %v2967 = vpop.f32.mrb[0].mxu0
        %v2968 = vadd.f32 0.0, %v2967
        %v2969 = vpop.f32.mrb[0].mxu0
        %2970 = vmatprep.mubr.bf16.mxu0 0
        %2971 = vmatmul.mubr.bf16.gmra.mrb[0].mxu0 %v2912
        %v2972 = vpop.f32.mrb[0].mxu0
        %v2973 = vadd.f32 0.0, %v2972
        %v2974 = vpop.f32.mrb[0].mxu0
        %v2975 = vpop.f32.mrb[0].mxu0
        %v2976 = vadd.f32 0.0, %v2975
        %v2977 = vpop.f32.mrb[0].mxu0
        %2978 = vdwg.mxu0
        %v2979 = vadd.f32 %v2865, %v2949
        %v2980 = vadd.f32 %v2866, %v2952
        %v2981 = vadd.f32 %v2867, %v2957
        %v2982 = vadd.f32 %v2868, %v2960
        %v2983 = vadd.f32 %v2869, %v2965
        %v2984 = vadd.f32 %v2870, %v2968
        %v2985 = vadd.f32 %v2871, %v2973
        %v2986 = vadd.f32 %v2872, %v2976
        %v2987 = vld [vmem:[%s1378 + $0x4] sm:$0xff]
        %v2988 = vld [vmem:[%s1378 + $0x14] sm:$0xff]
        %v2989 = vld [vmem:[%s1378 + $0x24] sm:$0xff]
        %v2990 = vld [vmem:[%s1378 + $0x34] sm:$0xff]
        %v2991 = vld [vmem:[%s1378 + $0x44] sm:$0xff]
        %v2992 = vld [vmem:[%s1378 + $0x54] sm:$0xff]
        %v2993 = vld [vmem:[%s1378 + $0x64] sm:$0xff]
        %v2994 = vld [vmem:[%s1378 + $0x74] sm:$0xff]
        %v2995 = vpack.c.bf16 %v2988, %v2987
        %v2996 = vpack.c.bf16 %v2990, %v2989
        %v2997 = vpack.c.bf16 %v2992, %v2991
        %v2998 = vpack.c.bf16 %v2994, %v2993
        %s2999 = scalar_lea.vmem %s3, 224
        %v3000 = vld [vmem:[%s2999] sm:$0xf]
        %v3001 = vld [vmem:[%s2999 + $0x4] sm:$0xf]
        %v3002 = vld [vmem:[%s2999 + $0x8] sm:$0xf]
        %v3003 = vld [vmem:[%s2999 + $0xc] sm:$0xf]
        %v3008 = vunpack.c.l.b16 %v3000
        %v3009 = vunpack.c.l.b16 %v3001
        %v3010 = vunpack.c.l.b16 %v3002
        %v3011 = vunpack.c.l.b16 %v3003
        %v3012 = vpack.c.b16 %v3009, %v3008
        %v3013 = vpack.c.b16 %v3011, %v3010
        %v3017 = vsel %vm1372, %v2995, 0
        %v3020 = vsel %vm1372, %v2996, 0
        %v3023 = vsel %vm1372, %v2997, 0
        %v3026 = vsel %vm1372, %v2998, 0
        %3028 = vmatprep.subr.bf16.mxu0 0
        %3029 = vmatpush1.bf16.msra.mxu0 %v3012
        %3030 = vmatprep.subr.bf16.mxu0 0
        %3031 = vmatpush1.bf16.msra.mxu0 %v3013
        %3032 = vmatprep.subr.bf16.mxu0 0
        %3033 = vmatpush1.bf16.msra.mxu0 0
        %3034 = vmatprep.subr.bf16.mxu0 0
        %3035 = vmatpush1.bf16.msra.mxu0 0
        %3036 = vmatprep.subr.bf16.mxu0 0
        %3037 = vmatpush1.bf16.msra.mxu0 0
        %3038 = vmatprep.subr.bf16.mxu0 0
        %3039 = vmatpush1.bf16.msra.mxu0 0
        %3040 = vmatprep.subr.bf16.mxu0 0
        %3041 = vmatpush1.bf16.msra.mxu0 0
        %3042 = vmatprep.subr.bf16.mxu0 0
        %3043 = vmatpush1.bf16.msra.mxu0 0
        %3044 = vmatprep.subr.bf16.mxu0 0
        %3045 = vmatpush1.bf16.msra.mxu0 0
        %3046 = vmatprep.subr.bf16.mxu0 0
        %3047 = vmatpush1.bf16.msra.mxu0 0
        %3048 = vmatprep.subr.bf16.mxu0 0
        %3049 = vmatpush1.bf16.msra.mxu0 0
        %3050 = vmatprep.subr.bf16.mxu0 0
        %3051 = vmatpush1.bf16.msra.mxu0 0
        %3052 = vmatprep.subr.bf16.mxu0 0
        %3053 = vmatpush1.bf16.msra.mxu0 0
        %3054 = vmatprep.subr.bf16.mxu0 0
        %3055 = vmatpush1.bf16.msra.mxu0 0
        %3056 = vmatprep.subr.bf16.mxu0 0
        %3057 = vmatpush1.bf16.msra.mxu0 0
        %3058 = vmatprep.subr.bf16.mxu0 0
        %3059 = vmatpush1.bf16.msra.mxu0 0
        %3060 = vmatprep.mubr.bf16.mxu0 0
        %3061 = vmatmul.mubr.bf16.gmra.mrb[0].mxu0 %v3017
        %v3062 = vpop.f32.mrb[0].mxu0
        %v3063 = vadd.f32 0.0, %v3062
        %v3064 = vpop.f32.mrb[0].mxu0
        %v3065 = vpop.f32.mrb[0].mxu0
        %v3066 = vadd.f32 0.0, %v3065
        %v3067 = vpop.f32.mrb[0].mxu0
        %3068 = vmatprep.mubr.bf16.mxu0 0
        %3069 = vmatmul.mubr.bf16.gmra.mrb[0].mxu0 %v3020
        %v3070 = vpop.f32.mrb[0].mxu0
        %v3071 = vadd.f32 0.0, %v3070
        %v3072 = vpop.f32.mrb[0].mxu0
        %v3073 = vpop.f32.mrb[0].mxu0
        %v3074 = vadd.f32 0.0, %v3073
        %v3075 = vpop.f32.mrb[0].mxu0
        %3076 = vmatprep.mubr.bf16.mxu0 0
        %3077 = vmatmul.mubr.bf16.gmra.mrb[0].mxu0 %v3023
        %v3078 = vpop.f32.mrb[0].mxu0
        %v3079 = vadd.f32 0.0, %v3078
        %v3080 = vpop.f32.mrb[0].mxu0
        %v3081 = vpop.f32.mrb[0].mxu0
        %v3082 = vadd.f32 0.0, %v3081
        %v3083 = vpop.f32.mrb[0].mxu0
        %3084 = vmatprep.mubr.bf16.mxu0 0
        %3085 = vmatmul.mubr.bf16.gmra.mrb[0].mxu0 %v3026
        %v3086 = vpop.f32.mrb[0].mxu0
        %v3087 = vadd.f32 0.0, %v3086
        %v3088 = vpop.f32.mrb[0].mxu0
        %v3089 = vpop.f32.mrb[0].mxu0
        %v3090 = vadd.f32 0.0, %v3089
        %v3091 = vpop.f32.mrb[0].mxu0
        %3092 = vdwg.mxu0
        %v3093 = vadd.f32 %v2979, %v3063
        %v3094 = vadd.f32 %v2980, %v3066
        %v3095 = vadd.f32 %v2981, %v3071
        %v3096 = vadd.f32 %v2982, %v3074
        %v3097 = vadd.f32 %v2983, %v3079
        %v3098 = vadd.f32 %v2984, %v3082
        %v3099 = vadd.f32 %v2985, %v3087
        %v3100 = vadd.f32 %v2986, %v3090
        %v3101 = vld [vmem:[%s1381] sm:$0xff]
        %v3102 = vld [vmem:[%s1381 + $0x10] sm:$0xff]
        %v3103 = vld [vmem:[%s1381 + $0x20] sm:$0xff]
        %v3104 = vld [vmem:[%s1381 + $0x30] sm:$0xff]
        %v3105 = vld [vmem:[%s1381 + $0x40] sm:$0xff]
        %v3106 = vld [vmem:[%s1381 + $0x50] sm:$0xff]
        %v3107 = vld [vmem:[%s1381 + $0x60] sm:$0xff]
        %v3108 = vld [vmem:[%s1381 + $0x70] sm:$0xff]
        %v3109 = vpack.c.bf16 %v3102, %v3101
        %v3110 = vpack.c.bf16 %v3104, %v3103
        %v3111 = vpack.c.bf16 %v3106, %v3105
        %v3112 = vpack.c.bf16 %v3108, %v3107
        %s3113 = scalar_lea.vmem %s3, 240
        %v3114 = vld [vmem:[%s3113] sm:$0xf]
        %v3115 = vld [vmem:[%s3113 + $0x4] sm:$0xf]
        %v3116 = vld [vmem:[%s3113 + $0x8] sm:$0xf]
        %v3117 = vld [vmem:[%s3113 + $0xc] sm:$0xf]
        %v3122 = vunpack.c.l.b16 %v3114
        %v3123 = vunpack.c.l.b16 %v3115
        %v3124 = vunpack.c.l.b16 %v3116
        %v3125 = vunpack.c.l.b16 %v3117
        %v3126 = vpack.c.b16 %v3123, %v3122
        %v3127 = vpack.c.b16 %v3125, %v3124
        %v3131 = vsel %vm1372, %v3109, 0
        %v3134 = vsel %vm1372, %v3110, 0
        %v3137 = vsel %vm1372, %v3111, 0
        %v3140 = vsel %vm1372, %v3112, 0
        %3142 = vmatprep.subr.bf16.mxu0 0
        %3143 = vmatpush1.bf16.msra.mxu0 %v3126
        %3144 = vmatprep.subr.bf16.mxu0 0
        %3145 = vmatpush1.bf16.msra.mxu0 %v3127
        %3146 = vmatprep.subr.bf16.mxu0 0
        %3147 = vmatpush1.bf16.msra.mxu0 0
        %3148 = vmatprep.subr.bf16.mxu0 0
        %3149 = vmatpush1.bf16.msra.mxu0 0
        %3150 = vmatprep.subr.bf16.mxu0 0
        %3151 = vmatpush1.bf16.msra.mxu0 0
        %3152 = vmatprep.subr.bf16.mxu0 0
        %3153 = vmatpush1.bf16.msra.mxu0 0
        %3154 = vmatprep.subr.bf16.mxu0 0
        %3155 = vmatpush1.bf16.msra.mxu0 0
        %3156 = vmatprep.subr.bf16.mxu0 0
        %3157 = vmatpush1.bf16.msra.mxu0 0
        %3158 = vmatprep.subr.bf16.mxu0 0
        %3159 = vmatpush1.bf16.msra.mxu0 0
        %3160 = vmatprep.subr.bf16.mxu0 0
        %3161 = vmatpush1.bf16.msra.mxu0 0
        %3162 = vmatprep.subr.bf16.mxu0 0
        %3163 = vmatpush1.bf16.msra.mxu0 0
        %3164 = vmatprep.subr.bf16.mxu0 0
        %3165 = vmatpush1.bf16.msra.mxu0 0
        %3166 = vmatprep.subr.bf16.mxu0 0
        %3167 = vmatpush1.bf16.msra.mxu0 0
        %3168 = vmatprep.subr.bf16.mxu0 0
        %3169 = vmatpush1.bf16.msra.mxu0 0
        %3170 = vmatprep.subr.bf16.mxu0 0
        %3171 = vmatpush1.bf16.msra.mxu0 0
        %3172 = vmatprep.subr.bf16.mxu0 0
        %3173 = vmatpush1.bf16.msra.mxu0 0
        %3174 = vmatprep.mubr.bf16.mxu0 0
        %3175 = vmatmul.mubr.bf16.gmra.mrb[0].mxu0 %v3131
        %v3176 = vpop.f32.mrb[0].mxu0
        %v3177 = vadd.f32 0.0, %v3176
        %v3178 = vpop.f32.mrb[0].mxu0
        %v3179 = vpop.f32.mrb[0].mxu0
        %v3180 = vadd.f32 0.0, %v3179
        %v3181 = vpop.f32.mrb[0].mxu0
        %3182 = vmatprep.mubr.bf16.mxu0 0
        %3183 = vmatmul.mubr.bf16.gmra.mrb[0].mxu0 %v3134
        %v3184 = vpop.f32.mrb[0].mxu0
        %v3185 = vadd.f32 0.0, %v3184
        %v3186 = vpop.f32.mrb[0].mxu0
        %v3187 = vpop.f32.mrb[0].mxu0
        %v3188 = vadd.f32 0.0, %v3187
        %v3189 = vpop.f32.mrb[0].mxu0
        %3190 = vmatprep.mubr.bf16.mxu0 0
        %3191 = vmatmul.mubr.bf16.gmra.mrb[0].mxu0 %v3137
        %v3192 = vpop.f32.mrb[0].mxu0
        %v3193 = vadd.f32 0.0, %v3192
        %v3194 = vpop.f32.mrb[0].mxu0
        %v3195 = vpop.f32.mrb[0].mxu0
        %v3196 = vadd.f32 0.0, %v3195
        %v3197 = vpop.f32.mrb[0].mxu0
        %3198 = vmatprep.mubr.bf16.mxu0 0
        %3199 = vmatmul.mubr.bf16.gmra.mrb[0].mxu0 %v3140
        %v3200 = vpop.f32.mrb[0].mxu0
        %v3201 = vadd.f32 0.0, %v3200
        %v3202 = vpop.f32.mrb[0].mxu0
        %v3203 = vpop.f32.mrb[0].mxu0
        %v3204 = vadd.f32 0.0, %v3203
        %v3205 = vpop.f32.mrb[0].mxu0
        %3206 = vdwg.mxu0
        %v3207 = vadd.f32 %v3093, %v3177
        %v3208 = vadd.f32 %v3094, %v3180
        %v3209 = vadd.f32 %v3095, %v3185
        %v3210 = vadd.f32 %v3096, %v3188
        %v3211 = vadd.f32 %v3097, %v3193
        %v3212 = vadd.f32 %v3098, %v3196
        %v3213 = vadd.f32 %v3099, %v3201
        %v3214 = vadd.f32 %v3100, %v3204
        %v3215 = vld [vmem:[%s1381 + $0x1] sm:$0xff]
        %v3216 = vld [vmem:[%s1381 + $0x11] sm:$0xff]
        %v3217 = vld [vmem:[%s1381 + $0x21] sm:$0xff]
        %v3218 = vld [vmem:[%s1381 + $0x31] sm:$0xff]
        %v3219 = vld [vmem:[%s1381 + $0x41] sm:$0xff]
        %v3220 = vld [vmem:[%s1381 + $0x51] sm:$0xff]
        %v3221 = vld [vmem:[%s1381 + $0x61] sm:$0xff]
        %v3222 = vld [vmem:[%s1381 + $0x71] sm:$0xff]
        %v3223 = vpack.c.bf16 %v3216, %v3215
        %v3224 = vpack.c.bf16 %v3218, %v3217
        %v3225 = vpack.c.bf16 %v3220, %v3219
        %v3226 = vpack.c.bf16 %v3222, %v3221
        %s3227 = scalar_lea.vmem %s3, 256
        %v3228 = vld [vmem:[%s3227] sm:$0xf]
        %v3229 = vld [vmem:[%s3227 + $0x4] sm:$0xf]
        %v3230 = vld [vmem:[%s3227 + $0x8] sm:$0xf]
        %v3231 = vld [vmem:[%s3227 + $0xc] sm:$0xf]
        %v3236 = vunpack.c.l.b16 %v3228
        %v3237 = vunpack.c.l.b16 %v3229
        %v3238 = vunpack.c.l.b16 %v3230
        %v3239 = vunpack.c.l.b16 %v3231
        %v3240 = vpack.c.b16 %v3237, %v3236
        %v3241 = vpack.c.b16 %v3239, %v3238
        %v3245 = vsel %vm1372, %v3223, 0
        %v3248 = vsel %vm1372, %v3224, 0
        %v3251 = vsel %vm1372, %v3225, 0
        %v3254 = vsel %vm1372, %v3226, 0
        %3256 = vmatprep.subr.bf16.mxu0 0
        %3257 = vmatpush1.bf16.msra.mxu0 %v3240
        %3258 = vmatprep.subr.bf16.mxu0 0
        %3259 = vmatpush1.bf16.msra.mxu0 %v3241
        %3260 = vmatprep.subr.bf16.mxu0 0
        %3261 = vmatpush1.bf16.msra.mxu0 0
        %3262 = vmatprep.subr.bf16.mxu0 0
        %3263 = vmatpush1.bf16.msra.mxu0 0
        %3264 = vmatprep.subr.bf16.mxu0 0
        %3265 = vmatpush1.bf16.msra.mxu0 0
        %3266 = vmatprep.subr.bf16.mxu0 0
        %3267 = vmatpush1.bf16.msra.mxu0 0
        %3268 = vmatprep.subr.bf16.mxu0 0
        %3269 = vmatpush1.bf16.msra.mxu0 0
        %3270 = vmatprep.subr.bf16.mxu0 0
        %3271 = vmatpush1.bf16.msra.mxu0 0
        %3272 = vmatprep.subr.bf16.mxu0 0
        %3273 = vmatpush1.bf16.msra.mxu0 0
        %3274 = vmatprep.subr.bf16.mxu0 0
        %3275 = vmatpush1.bf16.msra.mxu0 0
        %3276 = vmatprep.subr.bf16.mxu0 0
        %3277 = vmatpush1.bf16.msra.mxu0 0
        %3278 = vmatprep.subr.bf16.mxu0 0
        %3279 = vmatpush1.bf16.msra.mxu0 0
        %3280 = vmatprep.subr.bf16.mxu0 0
        %3281 = vmatpush1.bf16.msra.mxu0 0
        %3282 = vmatprep.subr.bf16.mxu0 0
        %3283 = vmatpush1.bf16.msra.mxu0 0
        %3284 = vmatprep.subr.bf16.mxu0 0
        %3285 = vmatpush1.bf16.msra.mxu0 0
        %3286 = vmatprep.subr.bf16.mxu0 0
        %3287 = vmatpush1.bf16.msra.mxu0 0
        %3288 = vmatprep.mubr.bf16.mxu0 0
        %3289 = vmatmul.mubr.bf16.gmra.mrb[0].mxu0 %v3245
        %v3290 = vpop.f32.mrb[0].mxu0
        %v3291 = vadd.f32 0.0, %v3290
        %v3292 = vpop.f32.mrb[0].mxu0
        %v3293 = vpop.f32.mrb[0].mxu0
        %v3294 = vadd.f32 0.0, %v3293
        %v3295 = vpop.f32.mrb[0].mxu0
        %3296 = vmatprep.mubr.bf16.mxu0 0
        %3297 = vmatmul.mubr.bf16.gmra.mrb[0].mxu0 %v3248
        %v3298 = vpop.f32.mrb[0].mxu0
        %v3299 = vadd.f32 0.0, %v3298
        %v3300 = vpop.f32.mrb[0].mxu0
        %v3301 = vpop.f32.mrb[0].mxu0
        %v3302 = vadd.f32 0.0, %v3301
        %v3303 = vpop.f32.mrb[0].mxu0
        %3304 = vmatprep.mubr.bf16.mxu0 0
        %3305 = vmatmul.mubr.bf16.gmra.mrb[0].mxu0 %v3251
        %v3306 = vpop.f32.mrb[0].mxu0
        %v3307 = vadd.f32 0.0, %v3306
        %v3308 = vpop.f32.mrb[0].mxu0
        %v3309 = vpop.f32.mrb[0].mxu0
        %v3310 = vadd.f32 0.0, %v3309
        %v3311 = vpop.f32.mrb[0].mxu0
        %3312 = vmatprep.mubr.bf16.mxu0 0
        %3313 = vmatmul.mubr.bf16.gmra.mrb[0].mxu0 %v3254
        %v3314 = vpop.f32.mrb[0].mxu0
        %v3315 = vadd.f32 0.0, %v3314
        %v3316 = vpop.f32.mrb[0].mxu0
        %v3317 = vpop.f32.mrb[0].mxu0
        %v3318 = vadd.f32 0.0, %v3317
        %v3319 = vpop.f32.mrb[0].mxu0
        %3320 = vdwg.mxu0
        %v3321 = vadd.f32 %v3207, %v3291
        %v3322 = vadd.f32 %v3208, %v3294
        %v3323 = vadd.f32 %v3209, %v3299
        %v3324 = vadd.f32 %v3210, %v3302
        %v3325 = vadd.f32 %v3211, %v3307
        %v3326 = vadd.f32 %v3212, %v3310
        %v3327 = vadd.f32 %v3213, %v3315
        %v3328 = vadd.f32 %v3214, %v3318
        %v3329 = vld [vmem:[%s1381 + $0x2] sm:$0xff]
        %v3330 = vld [vmem:[%s1381 + $0x12] sm:$0xff]
        %v3331 = vld [vmem:[%s1381 + $0x22] sm:$0xff]
        %v3332 = vld [vmem:[%s1381 + $0x32] sm:$0xff]
        %v3333 = vld [vmem:[%s1381 + $0x42] sm:$0xff]
        %v3334 = vld [vmem:[%s1381 + $0x52] sm:$0xff]
        %v3335 = vld [vmem:[%s1381 + $0x62] sm:$0xff]
        %v3336 = vld [vmem:[%s1381 + $0x72] sm:$0xff]
        %v3337 = vpack.c.bf16 %v3330, %v3329
        %v3338 = vpack.c.bf16 %v3332, %v3331
        %v3339 = vpack.c.bf16 %v3334, %v3333
        %v3340 = vpack.c.bf16 %v3336, %v3335
        %s3341 = scalar_lea.vmem %s3, 272
        %v3342 = vld [vmem:[%s3341] sm:$0xf]
        %v3343 = vld [vmem:[%s3341 + $0x4] sm:$0xf]
        %v3344 = vld [vmem:[%s3341 + $0x8] sm:$0xf]
        %v3345 = vld [vmem:[%s3341 + $0xc] sm:$0xf]
        %v3350 = vunpack.c.l.b16 %v3342
        %v3351 = vunpack.c.l.b16 %v3343
        %v3352 = vunpack.c.l.b16 %v3344
        %v3353 = vunpack.c.l.b16 %v3345
        %v3354 = vpack.c.b16 %v3351, %v3350
        %v3355 = vpack.c.b16 %v3353, %v3352
        %v3359 = vsel %vm1372, %v3337, 0
        %v3362 = vsel %vm1372, %v3338, 0
        %v3365 = vsel %vm1372, %v3339, 0
        %v3368 = vsel %vm1372, %v3340, 0
        %3370 = vmatprep.subr.bf16.mxu0 0
        %3371 = vmatpush1.bf16.msra.mxu0 %v3354
        %3372 = vmatprep.subr.bf16.mxu0 0
        %3373 = vmatpush1.bf16.msra.mxu0 %v3355
        %3374 = vmatprep.subr.bf16.mxu0 0
        %3375 = vmatpush1.bf16.msra.mxu0 0
        %3376 = vmatprep.subr.bf16.mxu0 0
        %3377 = vmatpush1.bf16.msra.mxu0 0
        %3378 = vmatprep.subr.bf16.mxu0 0
        %3379 = vmatpush1.bf16.msra.mxu0 0
        %3380 = vmatprep.subr.bf16.mxu0 0
        %3381 = vmatpush1.bf16.msra.mxu0 0
        %3382 = vmatprep.subr.bf16.mxu0 0
        %3383 = vmatpush1.bf16.msra.mxu0 0
        %3384 = vmatprep.subr.bf16.mxu0 0
        %3385 = vmatpush1.bf16.msra.mxu0 0
        %3386 = vmatprep.subr.bf16.mxu0 0
        %3387 = vmatpush1.bf16.msra.mxu0 0
        %3388 = vmatprep.subr.bf16.mxu0 0
        %3389 = vmatpush1.bf16.msra.mxu0 0
        %3390 = vmatprep.subr.bf16.mxu0 0
        %3391 = vmatpush1.bf16.msra.mxu0 0
        %3392 = vmatprep.subr.bf16.mxu0 0
        %3393 = vmatpush1.bf16.msra.mxu0 0
        %3394 = vmatprep.subr.bf16.mxu0 0
        %3395 = vmatpush1.bf16.msra.mxu0 0
        %3396 = vmatprep.subr.bf16.mxu0 0
        %3397 = vmatpush1.bf16.msra.mxu0 0
        %3398 = vmatprep.subr.bf16.mxu0 0
        %3399 = vmatpush1.bf16.msra.mxu0 0
        %3400 = vmatprep.subr.bf16.mxu0 0
        %3401 = vmatpush1.bf16.msra.mxu0 0
        %3402 = vmatprep.mubr.bf16.mxu0 0
        %3403 = vmatmul.mubr.bf16.gmra.mrb[0].mxu0 %v3359
        %v3404 = vpop.f32.mrb[0].mxu0
        %v3405 = vadd.f32 0.0, %v3404
        %v3406 = vpop.f32.mrb[0].mxu0
        %v3407 = vpop.f32.mrb[0].mxu0
        %v3408 = vadd.f32 0.0, %v3407
        %v3409 = vpop.f32.mrb[0].mxu0
        %3410 = vmatprep.mubr.bf16.mxu0 0
        %3411 = vmatmul.mubr.bf16.gmra.mrb[0].mxu0 %v3362
        %v3412 = vpop.f32.mrb[0].mxu0
        %v3413 = vadd.f32 0.0, %v3412
        %v3414 = vpop.f32.mrb[0].mxu0
        %v3415 = vpop.f32.mrb[0].mxu0
        %v3416 = vadd.f32 0.0, %v3415
        %v3417 = vpop.f32.mrb[0].mxu0
        %3418 = vmatprep.mubr.bf16.mxu0 0
        %3419 = vmatmul.mubr.bf16.gmra.mrb[0].mxu0 %v3365
        %v3420 = vpop.f32.mrb[0].mxu0
        %v3421 = vadd.f32 0.0, %v3420
        %v3422 = vpop.f32.mrb[0].mxu0
        %v3423 = vpop.f32.mrb[0].mxu0
        %v3424 = vadd.f32 0.0, %v3423
        %v3425 = vpop.f32.mrb[0].mxu0
        %3426 = vmatprep.mubr.bf16.mxu0 0
        %3427 = vmatmul.mubr.bf16.gmra.mrb[0].mxu0 %v3368
        %v3428 = vpop.f32.mrb[0].mxu0
        %v3429 = vadd.f32 0.0, %v3428
        %v3430 = vpop.f32.mrb[0].mxu0
        %v3431 = vpop.f32.mrb[0].mxu0
        %v3432 = vadd.f32 0.0, %v3431
        %v3433 = vpop.f32.mrb[0].mxu0
        %3434 = vdwg.mxu0
        %v3435 = vadd.f32 %v3321, %v3405
        %v3436 = vadd.f32 %v3322, %v3408
        %v3437 = vadd.f32 %v3323, %v3413
        %v3438 = vadd.f32 %v3324, %v3416
        %v3439 = vadd.f32 %v3325, %v3421
        %v3440 = vadd.f32 %v3326, %v3424
        %v3441 = vadd.f32 %v3327, %v3429
        %v3442 = vadd.f32 %v3328, %v3432
        %v3443 = vld [vmem:[%s1381 + $0x3] sm:$0xff]
        %v3444 = vld [vmem:[%s1381 + $0x13] sm:$0xff]
        %v3445 = vld [vmem:[%s1381 + $0x23] sm:$0xff]
        %v3446 = vld [vmem:[%s1381 + $0x33] sm:$0xff]
        %v3447 = vld [vmem:[%s1381 + $0x43] sm:$0xff]
        %v3448 = vld [vmem:[%s1381 + $0x53] sm:$0xff]
        %v3449 = vld [vmem:[%s1381 + $0x63] sm:$0xff]
        %v3450 = vld [vmem:[%s1381 + $0x73] sm:$0xff]
        %v3451 = vpack.c.bf16 %v3444, %v3443
        %v3452 = vpack.c.bf16 %v3446, %v3445
        %v3453 = vpack.c.bf16 %v3448, %v3447
        %v3454 = vpack.c.bf16 %v3450, %v3449
        %s3455 = scalar_lea.vmem %s3, 288
        %v3456 = vld [vmem:[%s3455] sm:$0xf]
        %v3457 = vld [vmem:[%s3455 + $0x4] sm:$0xf]
        %v3458 = vld [vmem:[%s3455 + $0x8] sm:$0xf]
        %v3459 = vld [vmem:[%s3455 + $0xc] sm:$0xf]
        %v3464 = vunpack.c.l.b16 %v3456
        %v3465 = vunpack.c.l.b16 %v3457
        %v3466 = vunpack.c.l.b16 %v3458
        %v3467 = vunpack.c.l.b16 %v3459
        %v3468 = vpack.c.b16 %v3465, %v3464
        %v3469 = vpack.c.b16 %v3467, %v3466
        %v3473 = vsel %vm1372, %v3451, 0
        %v3476 = vsel %vm1372, %v3452, 0
        %v3479 = vsel %vm1372, %v3453, 0
        %v3482 = vsel %vm1372, %v3454, 0
        %3484 = vmatprep.subr.bf16.mxu0 0
        %3485 = vmatpush1.bf16.msra.mxu0 %v3468
        %3486 = vmatprep.subr.bf16.mxu0 0
        %3487 = vmatpush1.bf16.msra.mxu0 %v3469
        %3488 = vmatprep.subr.bf16.mxu0 0
        %3489 = vmatpush1.bf16.msra.mxu0 0
        %3490 = vmatprep.subr.bf16.mxu0 0
        %3491 = vmatpush1.bf16.msra.mxu0 0
        %3492 = vmatprep.subr.bf16.mxu0 0
        %3493 = vmatpush1.bf16.msra.mxu0 0
        %3494 = vmatprep.subr.bf16.mxu0 0
        %3495 = vmatpush1.bf16.msra.mxu0 0
        %3496 = vmatprep.subr.bf16.mxu0 0
        %3497 = vmatpush1.bf16.msra.mxu0 0
        %3498 = vmatprep.subr.bf16.mxu0 0
        %3499 = vmatpush1.bf16.msra.mxu0 0
        %3500 = vmatprep.subr.bf16.mxu0 0
        %3501 = vmatpush1.bf16.msra.mxu0 0
        %3502 = vmatprep.subr.bf16.mxu0 0
        %3503 = vmatpush1.bf16.msra.mxu0 0
        %3504 = vmatprep.subr.bf16.mxu0 0
        %3505 = vmatpush1.bf16.msra.mxu0 0
        %3506 = vmatprep.subr.bf16.mxu0 0
        %3507 = vmatpush1.bf16.msra.mxu0 0
        %3508 = vmatprep.subr.bf16.mxu0 0
        %3509 = vmatpush1.bf16.msra.mxu0 0
        %3510 = vmatprep.subr.bf16.mxu0 0
        %3511 = vmatpush1.bf16.msra.mxu0 0
        %3512 = vmatprep.subr.bf16.mxu0 0
        %3513 = vmatpush1.bf16.msra.mxu0 0
        %3514 = vmatprep.subr.bf16.mxu0 0
        %3515 = vmatpush1.bf16.msra.mxu0 0
        %3516 = vmatprep.mubr.bf16.mxu0 0
        %3517 = vmatmul.mubr.bf16.gmra.mrb[0].mxu0 %v3473
        %v3518 = vpop.f32.mrb[0].mxu0
        %v3519 = vadd.f32 0.0, %v3518
        %v3520 = vpop.f32.mrb[0].mxu0
        %v3521 = vpop.f32.mrb[0].mxu0
        %v3522 = vadd.f32 0.0, %v3521
        %v3523 = vpop.f32.mrb[0].mxu0
        %3524 = vmatprep.mubr.bf16.mxu0 0
        %3525 = vmatmul.mubr.bf16.gmra.mrb[0].mxu0 %v3476
        %v3526 = vpop.f32.mrb[0].mxu0
        %v3527 = vadd.f32 0.0, %v3526
        %v3528 = vpop.f32.mrb[0].mxu0
        %v3529 = vpop.f32.mrb[0].mxu0
        %v3530 = vadd.f32 0.0, %v3529
        %v3531 = vpop.f32.mrb[0].mxu0
        %3532 = vmatprep.mubr.bf16.mxu0 0
        %3533 = vmatmul.mubr.bf16.gmra.mrb[0].mxu0 %v3479
        %v3534 = vpop.f32.mrb[0].mxu0
        %v3535 = vadd.f32 0.0, %v3534
        %v3536 = vpop.f32.mrb[0].mxu0
        %v3537 = vpop.f32.mrb[0].mxu0
        %v3538 = vadd.f32 0.0, %v3537
        %v3539 = vpop.f32.mrb[0].mxu0
        %3540 = vmatprep.mubr.bf16.mxu0 0
        %3541 = vmatmul.mubr.bf16.gmra.mrb[0].mxu0 %v3482
        %v3542 = vpop.f32.mrb[0].mxu0
        %v3543 = vadd.f32 0.0, %v3542
        %v3544 = vpop.f32.mrb[0].mxu0
        %v3545 = vpop.f32.mrb[0].mxu0
        %v3546 = vadd.f32 0.0, %v3545
        %v3547 = vpop.f32.mrb[0].mxu0
        %3548 = vdwg.mxu0
        %v3549 = vadd.f32 %v3435, %v3519
        %v3550 = vadd.f32 %v3436, %v3522
        %v3551 = vadd.f32 %v3437, %v3527
        %v3552 = vadd.f32 %v3438, %v3530
        %v3553 = vadd.f32 %v3439, %v3535
        %v3554 = vadd.f32 %v3440, %v3538
        %v3555 = vadd.f32 %v3441, %v3543
        %v3556 = vadd.f32 %v3442, %v3546
        %v3557 = vld [vmem:[%s1381 + $0x4] sm:$0xff]
        %v3558 = vld [vmem:[%s1381 + $0x14] sm:$0xff]
        %v3559 = vld [vmem:[%s1381 + $0x24] sm:$0xff]
        %v3560 = vld [vmem:[%s1381 + $0x34] sm:$0xff]
        %v3561 = vld [vmem:[%s1381 + $0x44] sm:$0xff]
        %v3562 = vld [vmem:[%s1381 + $0x54] sm:$0xff]
        %v3563 = vld [vmem:[%s1381 + $0x64] sm:$0xff]
        %v3564 = vld [vmem:[%s1381 + $0x74] sm:$0xff]
        %v3565 = vpack.c.bf16 %v3558, %v3557
        %v3566 = vpack.c.bf16 %v3560, %v3559
        %v3567 = vpack.c.bf16 %v3562, %v3561
        %v3568 = vpack.c.bf16 %v3564, %v3563
        %s3569 = scalar_lea.vmem %s3, 304
        %v3570 = vld [vmem:[%s3569] sm:$0xf]
        %v3571 = vld [vmem:[%s3569 + $0x4] sm:$0xf]
        %v3572 = vld [vmem:[%s3569 + $0x8] sm:$0xf]
        %v3573 = vld [vmem:[%s3569 + $0xc] sm:$0xf]
        %v3578 = vunpack.c.l.b16 %v3570
        %v3579 = vunpack.c.l.b16 %v3571
        %v3580 = vunpack.c.l.b16 %v3572
        %v3581 = vunpack.c.l.b16 %v3573
        %v3582 = vpack.c.b16 %v3579, %v3578
        %v3583 = vpack.c.b16 %v3581, %v3580
        %v3587 = vsel %vm1372, %v3565, 0
        %v3590 = vsel %vm1372, %v3566, 0
        %v3593 = vsel %vm1372, %v3567, 0
        %v3596 = vsel %vm1372, %v3568, 0
        %3598 = vmatprep.subr.bf16.mxu0 0
        %3599 = vmatpush1.bf16.msra.mxu0 %v3582
        %3600 = vmatprep.subr.bf16.mxu0 0
        %3601 = vmatpush1.bf16.msra.mxu0 %v3583
        %3602 = vmatprep.subr.bf16.mxu0 0
        %3603 = vmatpush1.bf16.msra.mxu0 0
        %3604 = vmatprep.subr.bf16.mxu0 0
        %3605 = vmatpush1.bf16.msra.mxu0 0
        %3606 = vmatprep.subr.bf16.mxu0 0
        %3607 = vmatpush1.bf16.msra.mxu0 0
        %3608 = vmatprep.subr.bf16.mxu0 0
        %3609 = vmatpush1.bf16.msra.mxu0 0
        %3610 = vmatprep.subr.bf16.mxu0 0
        %3611 = vmatpush1.bf16.msra.mxu0 0
        %3612 = vmatprep.subr.bf16.mxu0 0
        %3613 = vmatpush1.bf16.msra.mxu0 0
        %3614 = vmatprep.subr.bf16.mxu0 0
        %3615 = vmatpush1.bf16.msra.mxu0 0
        %3616 = vmatprep.subr.bf16.mxu0 0
        %3617 = vmatpush1.bf16.msra.mxu0 0
        %3618 = vmatprep.subr.bf16.mxu0 0
        %3619 = vmatpush1.bf16.msra.mxu0 0
        %3620 = vmatprep.subr.bf16.mxu0 0
        %3621 = vmatpush1.bf16.msra.mxu0 0
        %3622 = vmatprep.subr.bf16.mxu0 0
        %3623 = vmatpush1.bf16.msra.mxu0 0
        %3624 = vmatprep.subr.bf16.mxu0 0
        %3625 = vmatpush1.bf16.msra.mxu0 0
        %3626 = vmatprep.subr.bf16.mxu0 0
        %3627 = vmatpush1.bf16.msra.mxu0 0
        %3628 = vmatprep.subr.bf16.mxu0 0
        %3629 = vmatpush1.bf16.msra.mxu0 0
        %3630 = vmatprep.mubr.bf16.mxu0 0
        %3631 = vmatmul.mubr.bf16.gmra.mrb[0].mxu0 %v3587
        %v3632 = vpop.f32.mrb[0].mxu0
        %v3633 = vadd.f32 0.0, %v3632
        %v3634 = vpop.f32.mrb[0].mxu0
        %v3635 = vpop.f32.mrb[0].mxu0
        %v3636 = vadd.f32 0.0, %v3635
        %v3637 = vpop.f32.mrb[0].mxu0
        %3638 = vmatprep.mubr.bf16.mxu0 0
        %3639 = vmatmul.mubr.bf16.gmra.mrb[0].mxu0 %v3590
        %v3640 = vpop.f32.mrb[0].mxu0
        %v3641 = vadd.f32 0.0, %v3640
        %v3642 = vpop.f32.mrb[0].mxu0
        %v3643 = vpop.f32.mrb[0].mxu0
        %v3644 = vadd.f32 0.0, %v3643
        %v3645 = vpop.f32.mrb[0].mxu0
        %3646 = vmatprep.mubr.bf16.mxu0 0
        %3647 = vmatmul.mubr.bf16.gmra.mrb[0].mxu0 %v3593
        %v3648 = vpop.f32.mrb[0].mxu0
        %v3649 = vadd.f32 0.0, %v3648
        %v3650 = vpop.f32.mrb[0].mxu0
        %v3651 = vpop.f32.mrb[0].mxu0
        %v3652 = vadd.f32 0.0, %v3651
        %v3653 = vpop.f32.mrb[0].mxu0
        %3654 = vmatprep.mubr.bf16.mxu0 0
        %3655 = vmatmul.mubr.bf16.gmra.mrb[0].mxu0 %v3596
        %v3656 = vpop.f32.mrb[0].mxu0
        %v3657 = vadd.f32 0.0, %v3656
        %v3658 = vpop.f32.mrb[0].mxu0
        %v3659 = vpop.f32.mrb[0].mxu0
        %v3660 = vadd.f32 0.0, %v3659
        %v3661 = vpop.f32.mrb[0].mxu0
        %3662 = vdwg.mxu0
        %v3663 = vadd.f32 %v3549, %v3633
        %v3664 = vadd.f32 %v3550, %v3636
        %v3665 = vadd.f32 %v3551, %v3641
        %v3666 = vadd.f32 %v3552, %v3644
        %v3667 = vadd.f32 %v3553, %v3649
        %v3668 = vadd.f32 %v3554, %v3652
        %v3669 = vadd.f32 %v3555, %v3657
        %v3670 = vadd.f32 %v3556, %v3660
        %v3671 = vld [vmem:[%s1384] sm:$0xff]
        %v3672 = vld [vmem:[%s1384 + $0x10] sm:$0xff]
        %v3673 = vld [vmem:[%s1384 + $0x20] sm:$0xff]
        %v3674 = vld [vmem:[%s1384 + $0x30] sm:$0xff]
        %v3675 = vld [vmem:[%s1384 + $0x40] sm:$0xff]
        %v3676 = vld [vmem:[%s1384 + $0x50] sm:$0xff]
        %v3677 = vld [vmem:[%s1384 + $0x60] sm:$0xff]
        %v3678 = vld [vmem:[%s1384 + $0x70] sm:$0xff]
        %v3679 = vpack.c.bf16 %v3672, %v3671
        %v3680 = vpack.c.bf16 %v3674, %v3673
        %v3681 = vpack.c.bf16 %v3676, %v3675
        %v3682 = vpack.c.bf16 %v3678, %v3677
        %s3683 = scalar_lea.vmem %s3, 320
        %v3684 = vld [vmem:[%s3683] sm:$0xf]
        %v3685 = vld [vmem:[%s3683 + $0x4] sm:$0xf]
        %v3686 = vld [vmem:[%s3683 + $0x8] sm:$0xf]
        %v3687 = vld [vmem:[%s3683 + $0xc] sm:$0xf]
        %v3692 = vunpack.c.l.b16 %v3684
        %v3693 = vunpack.c.l.b16 %v3685
        %v3694 = vunpack.c.l.b16 %v3686
        %v3695 = vunpack.c.l.b16 %v3687
        %v3696 = vpack.c.b16 %v3693, %v3692
        %v3697 = vpack.c.b16 %v3695, %v3694
        %v3701 = vsel %vm1372, %v3679, 0
        %v3704 = vsel %vm1372, %v3680, 0
        %v3707 = vsel %vm1372, %v3681, 0
        %v3710 = vsel %vm1372, %v3682, 0
        %3712 = vmatprep.subr.bf16.mxu0 0
        %3713 = vmatpush1.bf16.msra.mxu0 %v3696
        %3714 = vmatprep.subr.bf16.mxu0 0
        %3715 = vmatpush1.bf16.msra.mxu0 %v3697
        %3716 = vmatprep.subr.bf16.mxu0 0
        %3717 = vmatpush1.bf16.msra.mxu0 0
        %3718 = vmatprep.subr.bf16.mxu0 0
        %3719 = vmatpush1.bf16.msra.mxu0 0
        %3720 = vmatprep.subr.bf16.mxu0 0
        %3721 = vmatpush1.bf16.msra.mxu0 0
        %3722 = vmatprep.subr.bf16.mxu0 0
        %3723 = vmatpush1.bf16.msra.mxu0 0
        %3724 = vmatprep.subr.bf16.mxu0 0
        %3725 = vmatpush1.bf16.msra.mxu0 0
        %3726 = vmatprep.subr.bf16.mxu0 0
        %3727 = vmatpush1.bf16.msra.mxu0 0
        %3728 = vmatprep.subr.bf16.mxu0 0
        %3729 = vmatpush1.bf16.msra.mxu0 0
        %3730 = vmatprep.subr.bf16.mxu0 0
        %3731 = vmatpush1.bf16.msra.mxu0 0
        %3732 = vmatprep.subr.bf16.mxu0 0
        %3733 = vmatpush1.bf16.msra.mxu0 0
        %3734 = vmatprep.subr.bf16.mxu0 0
        %3735 = vmatpush1.bf16.msra.mxu0 0
        %3736 = vmatprep.subr.bf16.mxu0 0
        %3737 = vmatpush1.bf16.msra.mxu0 0
        %3738 = vmatprep.subr.bf16.mxu0 0
        %3739 = vmatpush1.bf16.msra.mxu0 0
        %3740 = vmatprep.subr.bf16.mxu0 0
        %3741 = vmatpush1.bf16.msra.mxu0 0
        %3742 = vmatprep.subr.bf16.mxu0 0
        %3743 = vmatpush1.bf16.msra.mxu0 0
        %3744 = vmatprep.mubr.bf16.mxu0 0
        %3745 = vmatmul.mubr.bf16.gmra.mrb[0].mxu0 %v3701
        %v3746 = vpop.f32.mrb[0].mxu0
        %v3747 = vadd.f32 0.0, %v3746
        %v3748 = vpop.f32.mrb[0].mxu0
        %v3749 = vpop.f32.mrb[0].mxu0
        %v3750 = vadd.f32 0.0, %v3749
        %v3751 = vpop.f32.mrb[0].mxu0
        %3752 = vmatprep.mubr.bf16.mxu0 0
        %3753 = vmatmul.mubr.bf16.gmra.mrb[0].mxu0 %v3704
        %v3754 = vpop.f32.mrb[0].mxu0
        %v3755 = vadd.f32 0.0, %v3754
        %v3756 = vpop.f32.mrb[0].mxu0
        %v3757 = vpop.f32.mrb[0].mxu0
        %v3758 = vadd.f32 0.0, %v3757
        %v3759 = vpop.f32.mrb[0].mxu0
        %3760 = vmatprep.mubr.bf16.mxu0 0
        %3761 = vmatmul.mubr.bf16.gmra.mrb[0].mxu0 %v3707
        %v3762 = vpop.f32.mrb[0].mxu0
        %v3763 = vadd.f32 0.0, %v3762
        %v3764 = vpop.f32.mrb[0].mxu0
        %v3765 = vpop.f32.mrb[0].mxu0
        %v3766 = vadd.f32 0.0, %v3765
        %v3767 = vpop.f32.mrb[0].mxu0
        %3768 = vmatprep.mubr.bf16.mxu0 0
        %3769 = vmatmul.mubr.bf16.gmra.mrb[0].mxu0 %v3710
        %v3770 = vpop.f32.mrb[0].mxu0
        %v3771 = vadd.f32 0.0, %v3770
        %v3772 = vpop.f32.mrb[0].mxu0
        %v3773 = vpop.f32.mrb[0].mxu0
        %v3774 = vadd.f32 0.0, %v3773
        %v3775 = vpop.f32.mrb[0].mxu0
        %3776 = vdwg.mxu0
        %v3777 = vadd.f32 %v3663, %v3747
        %v3778 = vadd.f32 %v3664, %v3750
        %v3779 = vadd.f32 %v3665, %v3755
        %v3780 = vadd.f32 %v3666, %v3758
        %v3781 = vadd.f32 %v3667, %v3763
        %v3782 = vadd.f32 %v3668, %v3766
        %v3783 = vadd.f32 %v3669, %v3771
        %v3784 = vadd.f32 %v3670, %v3774
        %v3785 = vld [vmem:[%s1384 + $0x1] sm:$0xff]
        %v3786 = vld [vmem:[%s1384 + $0x11] sm:$0xff]
        %v3787 = vld [vmem:[%s1384 + $0x21] sm:$0xff]
        %v3788 = vld [vmem:[%s1384 + $0x31] sm:$0xff]
        %v3789 = vld [vmem:[%s1384 + $0x41] sm:$0xff]
        %v3790 = vld [vmem:[%s1384 + $0x51] sm:$0xff]
        %v3791 = vld [vmem:[%s1384 + $0x61] sm:$0xff]
        %v3792 = vld [vmem:[%s1384 + $0x71] sm:$0xff]
        %v3793 = vpack.c.bf16 %v3786, %v3785
        %v3794 = vpack.c.bf16 %v3788, %v3787
        %v3795 = vpack.c.bf16 %v3790, %v3789
        %v3796 = vpack.c.bf16 %v3792, %v3791
        %s3797 = scalar_lea.vmem %s3, 336
        %v3798 = vld [vmem:[%s3797] sm:$0xf]
        %v3799 = vld [vmem:[%s3797 + $0x4] sm:$0xf]
        %v3800 = vld [vmem:[%s3797 + $0x8] sm:$0xf]
        %v3801 = vld [vmem:[%s3797 + $0xc] sm:$0xf]
        %v3806 = vunpack.c.l.b16 %v3798
        %v3807 = vunpack.c.l.b16 %v3799
        %v3808 = vunpack.c.l.b16 %v3800
        %v3809 = vunpack.c.l.b16 %v3801
        %v3810 = vpack.c.b16 %v3807, %v3806
        %v3811 = vpack.c.b16 %v3809, %v3808
        %v3815 = vsel %vm1372, %v3793, 0
        %v3818 = vsel %vm1372, %v3794, 0
        %v3821 = vsel %vm1372, %v3795, 0
        %v3824 = vsel %vm1372, %v3796, 0
        %3826 = vmatprep.subr.bf16.mxu0 0
        %3827 = vmatpush1.bf16.msra.mxu0 %v3810
        %3828 = vmatprep.subr.bf16.mxu0 0
        %3829 = vmatpush1.bf16.msra.mxu0 %v3811
        %3830 = vmatprep.subr.bf16.mxu0 0
        %3831 = vmatpush1.bf16.msra.mxu0 0
        %3832 = vmatprep.subr.bf16.mxu0 0
        %3833 = vmatpush1.bf16.msra.mxu0 0
        %3834 = vmatprep.subr.bf16.mxu0 0
        %3835 = vmatpush1.bf16.msra.mxu0 0
        %3836 = vmatprep.subr.bf16.mxu0 0
        %3837 = vmatpush1.bf16.msra.mxu0 0
        %3838 = vmatprep.subr.bf16.mxu0 0
        %3839 = vmatpush1.bf16.msra.mxu0 0
        %3840 = vmatprep.subr.bf16.mxu0 0
        %3841 = vmatpush1.bf16.msra.mxu0 0
        %3842 = vmatprep.subr.bf16.mxu0 0
        %3843 = vmatpush1.bf16.msra.mxu0 0
        %3844 = vmatprep.subr.bf16.mxu0 0
        %3845 = vmatpush1.bf16.msra.mxu0 0
        %3846 = vmatprep.subr.bf16.mxu0 0
        %3847 = vmatpush1.bf16.msra.mxu0 0
        %3848 = vmatprep.subr.bf16.mxu0 0
        %3849 = vmatpush1.bf16.msra.mxu0 0
        %3850 = vmatprep.subr.bf16.mxu0 0
        %3851 = vmatpush1.bf16.msra.mxu0 0
        %3852 = vmatprep.subr.bf16.mxu0 0
        %3853 = vmatpush1.bf16.msra.mxu0 0
        %3854 = vmatprep.subr.bf16.mxu0 0
        %3855 = vmatpush1.bf16.msra.mxu0 0
        %3856 = vmatprep.subr.bf16.mxu0 0
        %3857 = vmatpush1.bf16.msra.mxu0 0
        %3858 = vmatprep.mubr.bf16.mxu0 0
        %3859 = vmatmul.mubr.bf16.gmra.mrb[0].mxu0 %v3815
        %v3860 = vpop.f32.mrb[0].mxu0
        %v3861 = vadd.f32 0.0, %v3860
        %v3862 = vpop.f32.mrb[0].mxu0
        %v3863 = vpop.f32.mrb[0].mxu0
        %v3864 = vadd.f32 0.0, %v3863
        %v3865 = vpop.f32.mrb[0].mxu0
        %3866 = vmatprep.mubr.bf16.mxu0 0
        %3867 = vmatmul.mubr.bf16.gmra.mrb[0].mxu0 %v3818
        %v3868 = vpop.f32.mrb[0].mxu0
        %v3869 = vadd.f32 0.0, %v3868
        %v3870 = vpop.f32.mrb[0].mxu0
        %v3871 = vpop.f32.mrb[0].mxu0
        %v3872 = vadd.f32 0.0, %v3871
        %v3873 = vpop.f32.mrb[0].mxu0
        %3874 = vmatprep.mubr.bf16.mxu0 0
        %3875 = vmatmul.mubr.bf16.gmra.mrb[0].mxu0 %v3821
        %v3876 = vpop.f32.mrb[0].mxu0
        %v3877 = vadd.f32 0.0, %v3876
        %v3878 = vpop.f32.mrb[0].mxu0
        %v3879 = vpop.f32.mrb[0].mxu0
        %v3880 = vadd.f32 0.0, %v3879
        %v3881 = vpop.f32.mrb[0].mxu0
        %3882 = vmatprep.mubr.bf16.mxu0 0
        %3883 = vmatmul.mubr.bf16.gmra.mrb[0].mxu0 %v3824
        %v3884 = vpop.f32.mrb[0].mxu0
        %v3885 = vadd.f32 0.0, %v3884
        %v3886 = vpop.f32.mrb[0].mxu0
        %v3887 = vpop.f32.mrb[0].mxu0
        %v3888 = vadd.f32 0.0, %v3887
        %v3889 = vpop.f32.mrb[0].mxu0
        %3890 = vdwg.mxu0
        %v3891 = vadd.f32 %v3777, %v3861
        %v3892 = vadd.f32 %v3778, %v3864
        %v3893 = vadd.f32 %v3779, %v3869
        %v3894 = vadd.f32 %v3780, %v3872
        %v3895 = vadd.f32 %v3781, %v3877
        %v3896 = vadd.f32 %v3782, %v3880
        %v3897 = vadd.f32 %v3783, %v3885
        %v3898 = vadd.f32 %v3784, %v3888
        %v3899 = vld [vmem:[%s1384 + $0x2] sm:$0xff]
        %v3900 = vld [vmem:[%s1384 + $0x12] sm:$0xff]
        %v3901 = vld [vmem:[%s1384 + $0x22] sm:$0xff]
        %v3902 = vld [vmem:[%s1384 + $0x32] sm:$0xff]
        %v3903 = vld [vmem:[%s1384 + $0x42] sm:$0xff]
        %v3904 = vld [vmem:[%s1384 + $0x52] sm:$0xff]
        %v3905 = vld [vmem:[%s1384 + $0x62] sm:$0xff]
        %v3906 = vld [vmem:[%s1384 + $0x72] sm:$0xff]
        %v3907 = vpack.c.bf16 %v3900, %v3899
        %v3908 = vpack.c.bf16 %v3902, %v3901
        %v3909 = vpack.c.bf16 %v3904, %v3903
        %v3910 = vpack.c.bf16 %v3906, %v3905
        %s3911 = scalar_lea.vmem %s3, 352
        %v3912 = vld [vmem:[%s3911] sm:$0xf]
        %v3913 = vld [vmem:[%s3911 + $0x4] sm:$0xf]
        %v3914 = vld [vmem:[%s3911 + $0x8] sm:$0xf]
        %v3915 = vld [vmem:[%s3911 + $0xc] sm:$0xf]
        %v3920 = vunpack.c.l.b16 %v3912
        %v3921 = vunpack.c.l.b16 %v3913
        %v3922 = vunpack.c.l.b16 %v3914
        %v3923 = vunpack.c.l.b16 %v3915
        %v3924 = vpack.c.b16 %v3921, %v3920
        %v3925 = vpack.c.b16 %v3923, %v3922
        %v3929 = vsel %vm1372, %v3907, 0
        %v3932 = vsel %vm1372, %v3908, 0
        %v3935 = vsel %vm1372, %v3909, 0
        %v3938 = vsel %vm1372, %v3910, 0
        %3940 = vmatprep.subr.bf16.mxu0 0
        %3941 = vmatpush1.bf16.msra.mxu0 %v3924
        %3942 = vmatprep.subr.bf16.mxu0 0
        %3943 = vmatpush1.bf16.msra.mxu0 %v3925
        %3944 = vmatprep.subr.bf16.mxu0 0
        %3945 = vmatpush1.bf16.msra.mxu0 0
        %3946 = vmatprep.subr.bf16.mxu0 0
        %3947 = vmatpush1.bf16.msra.mxu0 0
        %3948 = vmatprep.subr.bf16.mxu0 0
        %3949 = vmatpush1.bf16.msra.mxu0 0
        %3950 = vmatprep.subr.bf16.mxu0 0
        %3951 = vmatpush1.bf16.msra.mxu0 0
        %3952 = vmatprep.subr.bf16.mxu0 0
        %3953 = vmatpush1.bf16.msra.mxu0 0
        %3954 = vmatprep.subr.bf16.mxu0 0
        %3955 = vmatpush1.bf16.msra.mxu0 0
        %3956 = vmatprep.subr.bf16.mxu0 0
        %3957 = vmatpush1.bf16.msra.mxu0 0
        %3958 = vmatprep.subr.bf16.mxu0 0
        %3959 = vmatpush1.bf16.msra.mxu0 0
        %3960 = vmatprep.subr.bf16.mxu0 0
        %3961 = vmatpush1.bf16.msra.mxu0 0
        %3962 = vmatprep.subr.bf16.mxu0 0
        %3963 = vmatpush1.bf16.msra.mxu0 0
        %3964 = vmatprep.subr.bf16.mxu0 0
        %3965 = vmatpush1.bf16.msra.mxu0 0
        %3966 = vmatprep.subr.bf16.mxu0 0
        %3967 = vmatpush1.bf16.msra.mxu0 0
        %3968 = vmatprep.subr.bf16.mxu0 0
        %3969 = vmatpush1.bf16.msra.mxu0 0
        %3970 = vmatprep.subr.bf16.mxu0 0
        %3971 = vmatpush1.bf16.msra.mxu0 0
        %3972 = vmatprep.mubr.bf16.mxu0 0
        %3973 = vmatmul.mubr.bf16.gmra.mrb[0].mxu0 %v3929
        %v3974 = vpop.f32.mrb[0].mxu0
        %v3975 = vadd.f32 0.0, %v3974
        %v3976 = vpop.f32.mrb[0].mxu0
        %v3977 = vpop.f32.mrb[0].mxu0
        %v3978 = vadd.f32 0.0, %v3977
        %v3979 = vpop.f32.mrb[0].mxu0
        %3980 = vmatprep.mubr.bf16.mxu0 0
        %3981 = vmatmul.mubr.bf16.gmra.mrb[0].mxu0 %v3932
        %v3982 = vpop.f32.mrb[0].mxu0
        %v3983 = vadd.f32 0.0, %v3982
        %v3984 = vpop.f32.mrb[0].mxu0
        %v3985 = vpop.f32.mrb[0].mxu0
        %v3986 = vadd.f32 0.0, %v3985
        %v3987 = vpop.f32.mrb[0].mxu0
        %3988 = vmatprep.mubr.bf16.mxu0 0
        %3989 = vmatmul.mubr.bf16.gmra.mrb[0].mxu0 %v3935
        %v3990 = vpop.f32.mrb[0].mxu0
        %v3991 = vadd.f32 0.0, %v3990
        %v3992 = vpop.f32.mrb[0].mxu0
        %v3993 = vpop.f32.mrb[0].mxu0
        %v3994 = vadd.f32 0.0, %v3993
        %v3995 = vpop.f32.mrb[0].mxu0
        %3996 = vmatprep.mubr.bf16.mxu0 0
        %3997 = vmatmul.mubr.bf16.gmra.mrb[0].mxu0 %v3938
        %v3998 = vpop.f32.mrb[0].mxu0
        %v3999 = vadd.f32 0.0, %v3998
        %v4000 = vpop.f32.mrb[0].mxu0
        %v4001 = vpop.f32.mrb[0].mxu0
        %v4002 = vadd.f32 0.0, %v4001
        %v4003 = vpop.f32.mrb[0].mxu0
        %4004 = vdwg.mxu0
        %v4005 = vadd.f32 %v3891, %v3975
        %v4006 = vadd.f32 %v3892, %v3978
        %v4007 = vadd.f32 %v3893, %v3983
        %v4008 = vadd.f32 %v3894, %v3986
        %v4009 = vadd.f32 %v3895, %v3991
        %v4010 = vadd.f32 %v3896, %v3994
        %v4011 = vadd.f32 %v3897, %v3999
        %v4012 = vadd.f32 %v3898, %v4002
        %v4013 = vld [vmem:[%s1384 + $0x3] sm:$0xff]
        %v4014 = vld [vmem:[%s1384 + $0x13] sm:$0xff]
        %v4015 = vld [vmem:[%s1384 + $0x23] sm:$0xff]
        %v4016 = vld [vmem:[%s1384 + $0x33] sm:$0xff]
        %v4017 = vld [vmem:[%s1384 + $0x43] sm:$0xff]
        %v4018 = vld [vmem:[%s1384 + $0x53] sm:$0xff]
        %v4019 = vld [vmem:[%s1384 + $0x63] sm:$0xff]
        %v4020 = vld [vmem:[%s1384 + $0x73] sm:$0xff]
        %v4021 = vpack.c.bf16 %v4014, %v4013
        %v4022 = vpack.c.bf16 %v4016, %v4015
        %v4023 = vpack.c.bf16 %v4018, %v4017
        %v4024 = vpack.c.bf16 %v4020, %v4019
        %s4025 = scalar_lea.vmem %s3, 368
        %v4026 = vld [vmem:[%s4025] sm:$0xf]
        %v4027 = vld [vmem:[%s4025 + $0x4] sm:$0xf]
        %v4028 = vld [vmem:[%s4025 + $0x8] sm:$0xf]
        %v4029 = vld [vmem:[%s4025 + $0xc] sm:$0xf]
        %v4034 = vunpack.c.l.b16 %v4026
        %v4035 = vunpack.c.l.b16 %v4027
        %v4036 = vunpack.c.l.b16 %v4028
        %v4037 = vunpack.c.l.b16 %v4029
        %v4038 = vpack.c.b16 %v4035, %v4034
        %v4039 = vpack.c.b16 %v4037, %v4036
        %v4043 = vsel %vm1372, %v4021, 0
        %v4046 = vsel %vm1372, %v4022, 0
        %v4049 = vsel %vm1372, %v4023, 0
        %v4052 = vsel %vm1372, %v4024, 0
        %4054 = vmatprep.subr.bf16.mxu0 0
        %4055 = vmatpush1.bf16.msra.mxu0 %v4038
        %4056 = vmatprep.subr.bf16.mxu0 0
        %4057 = vmatpush1.bf16.msra.mxu0 %v4039
        %4058 = vmatprep.subr.bf16.mxu0 0
        %4059 = vmatpush1.bf16.msra.mxu0 0
        %4060 = vmatprep.subr.bf16.mxu0 0
        %4061 = vmatpush1.bf16.msra.mxu0 0
        %4062 = vmatprep.subr.bf16.mxu0 0
        %4063 = vmatpush1.bf16.msra.mxu0 0
        %4064 = vmatprep.subr.bf16.mxu0 0
        %4065 = vmatpush1.bf16.msra.mxu0 0
        %4066 = vmatprep.subr.bf16.mxu0 0
        %4067 = vmatpush1.bf16.msra.mxu0 0
        %4068 = vmatprep.subr.bf16.mxu0 0
        %4069 = vmatpush1.bf16.msra.mxu0 0
        %4070 = vmatprep.subr.bf16.mxu0 0
        %4071 = vmatpush1.bf16.msra.mxu0 0
        %4072 = vmatprep.subr.bf16.mxu0 0
        %4073 = vmatpush1.bf16.msra.mxu0 0
        %4074 = vmatprep.subr.bf16.mxu0 0
        %4075 = vmatpush1.bf16.msra.mxu0 0
        %4076 = vmatprep.subr.bf16.mxu0 0
        %4077 = vmatpush1.bf16.msra.mxu0 0
        %4078 = vmatprep.subr.bf16.mxu0 0
        %4079 = vmatpush1.bf16.msra.mxu0 0
        %4080 = vmatprep.subr.bf16.mxu0 0
        %4081 = vmatpush1.bf16.msra.mxu0 0
        %4082 = vmatprep.subr.bf16.mxu0 0
        %4083 = vmatpush1.bf16.msra.mxu0 0
        %4084 = vmatprep.subr.bf16.mxu0 0
        %4085 = vmatpush1.bf16.msra.mxu0 0
        %4086 = vmatprep.mubr.bf16.mxu0 0
        %4087 = vmatmul.mubr.bf16.gmra.mrb[0].mxu0 %v4043
        %v4088 = vpop.f32.mrb[0].mxu0
        %v4089 = vadd.f32 0.0, %v4088
        %v4090 = vpop.f32.mrb[0].mxu0
        %v4091 = vpop.f32.mrb[0].mxu0
        %v4092 = vadd.f32 0.0, %v4091
        %v4093 = vpop.f32.mrb[0].mxu0
        %4094 = vmatprep.mubr.bf16.mxu0 0
        %4095 = vmatmul.mubr.bf16.gmra.mrb[0].mxu0 %v4046
        %v4096 = vpop.f32.mrb[0].mxu0
        %v4097 = vadd.f32 0.0, %v4096
        %v4098 = vpop.f32.mrb[0].mxu0
        %v4099 = vpop.f32.mrb[0].mxu0
        %v4100 = vadd.f32 0.0, %v4099
        %v4101 = vpop.f32.mrb[0].mxu0
        %4102 = vmatprep.mubr.bf16.mxu0 0
        %4103 = vmatmul.mubr.bf16.gmra.mrb[0].mxu0 %v4049
        %v4104 = vpop.f32.mrb[0].mxu0
        %v4105 = vadd.f32 0.0, %v4104
        %v4106 = vpop.f32.mrb[0].mxu0
        %v4107 = vpop.f32.mrb[0].mxu0
        %v4108 = vadd.f32 0.0, %v4107
        %v4109 = vpop.f32.mrb[0].mxu0
        %4110 = vmatprep.mubr.bf16.mxu0 0
        %4111 = vmatmul.mubr.bf16.gmra.mrb[0].mxu0 %v4052
        %v4112 = vpop.f32.mrb[0].mxu0
        %v4113 = vadd.f32 0.0, %v4112
        %v4114 = vpop.f32.mrb[0].mxu0
        %v4115 = vpop.f32.mrb[0].mxu0
        %v4116 = vadd.f32 0.0, %v4115
        %v4117 = vpop.f32.mrb[0].mxu0
        %4118 = vdwg.mxu0
        %v4119 = vadd.f32 %v4005, %v4089
        %v4120 = vadd.f32 %v4006, %v4092
        %v4121 = vadd.f32 %v4007, %v4097
        %v4122 = vadd.f32 %v4008, %v4100
        %v4123 = vadd.f32 %v4009, %v4105
        %v4124 = vadd.f32 %v4010, %v4108
        %v4125 = vadd.f32 %v4011, %v4113
        %v4126 = vadd.f32 %v4012, %v4116
        %v4127 = vld [vmem:[%s1384 + $0x4] sm:$0xff]
        %v4128 = vld [vmem:[%s1384 + $0x14] sm:$0xff]
        %v4129 = vld [vmem:[%s1384 + $0x24] sm:$0xff]
        %v4130 = vld [vmem:[%s1384 + $0x34] sm:$0xff]
        %v4131 = vld [vmem:[%s1384 + $0x44] sm:$0xff]
        %v4132 = vld [vmem:[%s1384 + $0x54] sm:$0xff]
        %v4133 = vld [vmem:[%s1384 + $0x64] sm:$0xff]
        %v4134 = vld [vmem:[%s1384 + $0x74] sm:$0xff]
        %v4135 = vpack.c.bf16 %v4128, %v4127
        %v4136 = vpack.c.bf16 %v4130, %v4129
        %v4137 = vpack.c.bf16 %v4132, %v4131
        %v4138 = vpack.c.bf16 %v4134, %v4133
        %s4139 = scalar_lea.vmem %s3, 384
        %v4140 = vld [vmem:[%s4139] sm:$0xf]
        %v4141 = vld [vmem:[%s4139 + $0x4] sm:$0xf]
        %v4142 = vld [vmem:[%s4139 + $0x8] sm:$0xf]
        %v4143 = vld [vmem:[%s4139 + $0xc] sm:$0xf]
        %v4148 = vunpack.c.l.b16 %v4140
        %v4149 = vunpack.c.l.b16 %v4141
        %v4150 = vunpack.c.l.b16 %v4142
        %v4151 = vunpack.c.l.b16 %v4143
        %v4152 = vpack.c.b16 %v4149, %v4148
        %v4153 = vpack.c.b16 %v4151, %v4150
        %v4157 = vsel %vm1372, %v4135, 0
        %v4160 = vsel %vm1372, %v4136, 0
        %v4163 = vsel %vm1372, %v4137, 0
        %v4166 = vsel %vm1372, %v4138, 0
        %4168 = vmatprep.subr.bf16.mxu0 0
        %4169 = vmatpush1.bf16.msra.mxu0 %v4152
        %4170 = vmatprep.subr.bf16.mxu0 0
        %4171 = vmatpush1.bf16.msra.mxu0 %v4153
        %4172 = vmatprep.subr.bf16.mxu0 0
        %4173 = vmatpush1.bf16.msra.mxu0 0
        %4174 = vmatprep.subr.bf16.mxu0 0
        %4175 = vmatpush1.bf16.msra.mxu0 0
        %4176 = vmatprep.subr.bf16.mxu0 0
        %4177 = vmatpush1.bf16.msra.mxu0 0
        %4178 = vmatprep.subr.bf16.mxu0 0
        %4179 = vmatpush1.bf16.msra.mxu0 0
        %4180 = vmatprep.subr.bf16.mxu0 0
        %4181 = vmatpush1.bf16.msra.mxu0 0
        %4182 = vmatprep.subr.bf16.mxu0 0
        %4183 = vmatpush1.bf16.msra.mxu0 0
        %4184 = vmatprep.subr.bf16.mxu0 0
        %4185 = vmatpush1.bf16.msra.mxu0 0
        %4186 = vmatprep.subr.bf16.mxu0 0
        %4187 = vmatpush1.bf16.msra.mxu0 0
        %4188 = vmatprep.subr.bf16.mxu0 0
        %4189 = vmatpush1.bf16.msra.mxu0 0
        %4190 = vmatprep.subr.bf16.mxu0 0
        %4191 = vmatpush1.bf16.msra.mxu0 0
        %4192 = vmatprep.subr.bf16.mxu0 0
        %4193 = vmatpush1.bf16.msra.mxu0 0
        %4194 = vmatprep.subr.bf16.mxu0 0
        %4195 = vmatpush1.bf16.msra.mxu0 0
        %4196 = vmatprep.subr.bf16.mxu0 0
        %4197 = vmatpush1.bf16.msra.mxu0 0
        %4198 = vmatprep.subr.bf16.mxu0 0
        %4199 = vmatpush1.bf16.msra.mxu0 0
        %4200 = vmatprep.mubr.bf16.mxu0 0
        %4201 = vmatmul.mubr.bf16.gmra.mrb[0].mxu0 %v4157
        %v4202 = vpop.f32.mrb[0].mxu0
        %v4203 = vadd.f32 0.0, %v4202
        %v4204 = vpop.f32.mrb[0].mxu0
        %v4205 = vpop.f32.mrb[0].mxu0
        %v4206 = vadd.f32 0.0, %v4205
        %v4207 = vpop.f32.mrb[0].mxu0
        %4208 = vmatprep.mubr.bf16.mxu0 0
        %4209 = vmatmul.mubr.bf16.gmra.mrb[0].mxu0 %v4160
        %v4210 = vpop.f32.mrb[0].mxu0
        %v4211 = vadd.f32 0.0, %v4210
        %v4212 = vpop.f32.mrb[0].mxu0
        %v4213 = vpop.f32.mrb[0].mxu0
        %v4214 = vadd.f32 0.0, %v4213
        %v4215 = vpop.f32.mrb[0].mxu0
        %4216 = vmatprep.mubr.bf16.mxu0 0
        %4217 = vmatmul.mubr.bf16.gmra.mrb[0].mxu0 %v4163
        %v4218 = vpop.f32.mrb[0].mxu0
        %v4219 = vadd.f32 0.0, %v4218
        %v4220 = vpop.f32.mrb[0].mxu0
        %v4221 = vpop.f32.mrb[0].mxu0
        %v4222 = vadd.f32 0.0, %v4221
        %v4223 = vpop.f32.mrb[0].mxu0
        %4224 = vmatprep.mubr.bf16.mxu0 0
        %4225 = vmatmul.mubr.bf16.gmra.mrb[0].mxu0 %v4166
        %v4226 = vpop.f32.mrb[0].mxu0
        %v4227 = vadd.f32 0.0, %v4226
        %v4228 = vpop.f32.mrb[0].mxu0
        %v4229 = vpop.f32.mrb[0].mxu0
        %v4230 = vadd.f32 0.0, %v4229
        %v4231 = vpop.f32.mrb[0].mxu0
        %4232 = vdwg.mxu0
        %v4233 = vadd.f32 %v4119, %v4203
        %v4234 = vadd.f32 %v4120, %v4206
        %v4235 = vadd.f32 %v4121, %v4211
        %v4236 = vadd.f32 %v4122, %v4214
        %v4237 = vadd.f32 %v4123, %v4219
        %v4238 = vadd.f32 %v4124, %v4222
        %v4239 = vadd.f32 %v4125, %v4227
        %v4240 = vadd.f32 %v4126, %v4230
        %v4241 = vld [vmem:[%s4] sm:$0x1]
        %v4243 = vlaneseq
        %v4244 = vshrl.u32 %v4243, 7
        %v4245 = vsub.s32 0, %v4244
        %v4246 = vrot.slane %v4241, %v4245
        %v4248 = vadd.f32 %v4233, %v4246
        %v4249 = vadd.f32 %v4234, %v4246
        %v4250 = vadd.f32 %v4235, %v4246
        %v4251 = vadd.f32 %v4236, %v4246
        %v4252 = vadd.f32 %v4237, %v4246
        %v4253 = vadd.f32 %v4238, %v4246
        %v4254 = vadd.f32 %v4239, %v4246
        %v4255 = vadd.f32 %v4240, %v4246
        %v4256 = vmax.f32 %v4248, 0.0
        %v4257 = vmax.f32 %v4249, 0.0
        %v4258 = vmax.f32 %v4250, 0.0
        %v4259 = vmax.f32 %v4251, 0.0
        %v4260 = vmax.f32 %v4252, 0.0
        %v4261 = vmax.f32 %v4253, 0.0
        %v4262 = vmax.f32 %v4254, 0.0
        %v4263 = vmax.f32 %v4255, 0.0
        %v4264 = vmax.f32 %v4256, %v4257
        %v4266 = vrot.slane %v4264, 1
        %v4268 = vmax.f32 %v4264, %v4266
        %v4269 = vpack.c.bf16 %v4268, %v4268
        %v4270 = vld [vmem:[%s5] sm:$0xf]
        %v4271 = vld [vmem:[%s5 + $0x4] sm:$0xf]
        %v4272 = vld [vmem:[%s5 + $0x8] sm:$0xf]
        %v4273 = vld [vmem:[%s5 + $0xc] sm:$0xf]
        %v4274 = vld [vmem:[%s5 + $0x10] sm:$0xf]
        %v4275 = vld [vmem:[%s5 + $0x14] sm:$0xf]
        %v4276 = vld [vmem:[%s5 + $0x18] sm:$0xf]
        %v4277 = vld [vmem:[%s5 + $0x1c] sm:$0xf]
        %s4278 = scalar_lea.vmem %s5, 32
        %v4279 = vld [vmem:[%s4278] sm:$0xf]
        %v4280 = vld [vmem:[%s4278 + $0x4] sm:$0xf]
        %v4281 = vld [vmem:[%s4278 + $0x8] sm:$0xf]
        %v4282 = vld [vmem:[%s4278 + $0xc] sm:$0xf]
        %v4283 = vld [vmem:[%s4278 + $0x10] sm:$0xf]
        %v4284 = vld [vmem:[%s4278 + $0x14] sm:$0xf]
        %v4285 = vld [vmem:[%s4278 + $0x18] sm:$0xf]
        %v4286 = vld [vmem:[%s4278 + $0x1c] sm:$0xf]
        %v4288 = vrot.slane %v4269, 1
        %v4297 = vunpack.c.l.b16 %v4279
        %v4298 = vunpack.c.l.b16 %v4280
        %v4299 = vunpack.c.l.b16 %v4281
        %v4300 = vunpack.c.l.b16 %v4282
        %v4301 = vunpack.c.l.b16 %v4283
        %v4302 = vunpack.c.l.b16 %v4284
        %v4303 = vunpack.c.l.b16 %v4285
        %v4304 = vunpack.c.l.b16 %v4286
        %v4305 = vpack.c.b16 %v4298, %v4297
        %v4306 = vpack.c.b16 %v4300, %v4299
        %v4307 = vpack.c.b16 %v4302, %v4301
        %v4308 = vpack.c.b16 %v4304, %v4303
        %vm4313 = vcmask 523264
        %v4315 = vsel %vm4313, %v4288, 0
        %4317 = vmatprep.subr.bf16.mxu0 0
        %4318 = vmatpush1.bf16.msra.mxu0 %v4305
        %4319 = vmatprep.subr.bf16.mxu0 0
        %4320 = vmatpush1.bf16.msra.mxu0 %v4306
        %4321 = vmatprep.subr.bf16.mxu0 0
        %4322 = vmatpush1.bf16.msra.mxu0 %v4307
        %4323 = vmatprep.subr.bf16.mxu0 0
        %4324 = vmatpush1.bf16.msra.mxu0 %v4308
        %4325 = vmatprep.subr.bf16.mxu0 0
        %4326 = vmatpush1.bf16.msra.mxu0 0
        %4327 = vmatprep.subr.bf16.mxu0 0
        %4328 = vmatpush1.bf16.msra.mxu0 0
        %4329 = vmatprep.subr.bf16.mxu0 0
        %4330 = vmatpush1.bf16.msra.mxu0 0
        %4331 = vmatprep.subr.bf16.mxu0 0
        %4332 = vmatpush1.bf16.msra.mxu0 0
        %4333 = vmatprep.subr.bf16.mxu0 0
        %4334 = vmatpush1.bf16.msra.mxu0 0
        %4335 = vmatprep.subr.bf16.mxu0 0
        %4336 = vmatpush1.bf16.msra.mxu0 0
        %4337 = vmatprep.subr.bf16.mxu0 0
        %4338 = vmatpush1.bf16.msra.mxu0 0
        %4339 = vmatprep.subr.bf16.mxu0 0
        %4340 = vmatpush1.bf16.msra.mxu0 0
        %4341 = vmatprep.subr.bf16.mxu0 0
        %4342 = vmatpush1.bf16.msra.mxu0 0
        %4343 = vmatprep.subr.bf16.mxu0 0
        %4344 = vmatpush1.bf16.msra.mxu0 0
        %4345 = vmatprep.subr.bf16.mxu0 0
        %4346 = vmatpush1.bf16.msra.mxu0 0
        %4347 = vmatprep.subr.bf16.mxu0 0
        %4348 = vmatpush1.bf16.msra.mxu0 0
        %4349 = vmatprep.mubr.bf16.mxu0 0
        %4350 = vmatmul.mubr.bf16.gmra.mrb[0].mxu0 %v4315
        %v4351 = vpop.f32.mrb[0].mxu0
        %v4352 = vadd.f32 0.0, %v4351
        %v4353 = vpop.f32.mrb[0].mxu0
        %v4354 = vpop.f32.mrb[0].mxu0
        %v4355 = vpop.f32.mrb[0].mxu0
        %4356 = vdwg.mxu0
        %v4365 = vunpack.c.l.b16 %v4270
        %v4366 = vunpack.c.l.b16 %v4271
        %v4367 = vunpack.c.l.b16 %v4272
        %v4368 = vunpack.c.l.b16 %v4273
        %v4369 = vunpack.c.l.b16 %v4274
        %v4370 = vunpack.c.l.b16 %v4275
        %v4371 = vunpack.c.l.b16 %v4276
        %v4372 = vunpack.c.l.b16 %v4277
        %v4373 = vpack.c.b16 %v4366, %v4365
        %v4374 = vpack.c.b16 %v4368, %v4367
        %v4375 = vpack.c.b16 %v4370, %v4369
        %v4376 = vpack.c.b16 %v4372, %v4371
        %v4382 = vsel %vm4313, %v4269, 0
        %4384 = vmatprep.subr.bf16.mxu0 0
        %4385 = vmatpush1.bf16.msra.mxu0 %v4373
        %4386 = vmatprep.subr.bf16.mxu0 0
        %4387 = vmatpush1.bf16.msra.mxu0 %v4374
        %4388 = vmatprep.subr.bf16.mxu0 0
        %4389 = vmatpush1.bf16.msra.mxu0 %v4375
        %4390 = vmatprep.subr.bf16.mxu0 0
        %4391 = vmatpush1.bf16.msra.mxu0 %v4376
        %4392 = vmatprep.subr.bf16.mxu0 0
        %4393 = vmatpush1.bf16.msra.mxu0 0
        %4394 = vmatprep.subr.bf16.mxu0 0
        %4395 = vmatpush1.bf16.msra.mxu0 0
        %4396 = vmatprep.subr.bf16.mxu0 0
        %4397 = vmatpush1.bf16.msra.mxu0 0
        %4398 = vmatprep.subr.bf16.mxu0 0
        %4399 = vmatpush1.bf16.msra.mxu0 0
        %4400 = vmatprep.subr.bf16.mxu0 0
        %4401 = vmatpush1.bf16.msra.mxu0 0
        %4402 = vmatprep.subr.bf16.mxu0 0
        %4403 = vmatpush1.bf16.msra.mxu0 0
        %4404 = vmatprep.subr.bf16.mxu0 0
        %4405 = vmatpush1.bf16.msra.mxu0 0
        %4406 = vmatprep.subr.bf16.mxu0 0
        %4407 = vmatpush1.bf16.msra.mxu0 0
        %4408 = vmatprep.subr.bf16.mxu0 0
        %4409 = vmatpush1.bf16.msra.mxu0 0
        %4410 = vmatprep.subr.bf16.mxu0 0
        %4411 = vmatpush1.bf16.msra.mxu0 0
        %4412 = vmatprep.subr.bf16.mxu0 0
        %4413 = vmatpush1.bf16.msra.mxu0 0
        %4414 = vmatprep.subr.bf16.mxu0 0
        %4415 = vmatpush1.bf16.msra.mxu0 0
        %4416 = vmatprep.mubr.bf16.mxu0 0
        %4417 = vmatmul.mubr.bf16.gmra.mrb[0].mxu0 %v4382
        %v4418 = vpop.f32.mrb[0].mxu0
        %v4419 = vadd.f32 %v4352, %v4418
        %v4420 = vpop.f32.mrb[0].mxu0
        %v4421 = vpop.f32.mrb[0].mxu0
        %v4422 = vpop.f32.mrb[0].mxu0
        %4423 = vdwg.mxu0
        %s4424 = scalar_lea.vmem %s5, 64
        %v4425 = vld [vmem:[%s4424] sm:$0xf]
        %v4426 = vld [vmem:[%s4424 + $0x4] sm:$0xf]
        %v4427 = vld [vmem:[%s4424 + $0x8] sm:$0xf]
        %v4428 = vld [vmem:[%s4424 + $0xc] sm:$0xf]
        %v4429 = vld [vmem:[%s4424 + $0x10] sm:$0xf]
        %v4430 = vld [vmem:[%s4424 + $0x14] sm:$0xf]
        %v4431 = vld [vmem:[%s4424 + $0x18] sm:$0xf]
        %v4432 = vld [vmem:[%s4424 + $0x1c] sm:$0xf]
        %v4433 = vrot.slane %v4269, 2
        %v4442 = vunpack.c.l.b16 %v4425
        %v4443 = vunpack.c.l.b16 %v4426
        %v4444 = vunpack.c.l.b16 %v4427
        %v4445 = vunpack.c.l.b16 %v4428
        %v4446 = vunpack.c.l.b16 %v4429
        %v4447 = vunpack.c.l.b16 %v4430
        %v4448 = vunpack.c.l.b16 %v4431
        %v4449 = vunpack.c.l.b16 %v4432
        %v4450 = vpack.c.b16 %v4443, %v4442
        %v4451 = vpack.c.b16 %v4445, %v4444
        %v4452 = vpack.c.b16 %v4447, %v4446
        %v4453 = vpack.c.b16 %v4449, %v4448
        %v4459 = vsel %vm4313, %v4433, 0
        %4461 = vmatprep.subr.bf16.mxu0 0
        %4462 = vmatpush1.bf16.msra.mxu0 %v4450
        %4463 = vmatprep.subr.bf16.mxu0 0
        %4464 = vmatpush1.bf16.msra.mxu0 %v4451
        %4465 = vmatprep.subr.bf16.mxu0 0
        %4466 = vmatpush1.bf16.msra.mxu0 %v4452
        %4467 = vmatprep.subr.bf16.mxu0 0
        %4468 = vmatpush1.bf16.msra.mxu0 %v4453
        %4469 = vmatprep.subr.bf16.mxu0 0
        %4470 = vmatpush1.bf16.msra.mxu0 0
        %4471 = vmatprep.subr.bf16.mxu0 0
        %4472 = vmatpush1.bf16.msra.mxu0 0
        %4473 = vmatprep.subr.bf16.mxu0 0
        %4474 = vmatpush1.bf16.msra.mxu0 0
        %4475 = vmatprep.subr.bf16.mxu0 0
        %4476 = vmatpush1.bf16.msra.mxu0 0
        %4477 = vmatprep.subr.bf16.mxu0 0
        %4478 = vmatpush1.bf16.msra.mxu0 0
        %4479 = vmatprep.subr.bf16.mxu0 0
        %4480 = vmatpush1.bf16.msra.mxu0 0
        %4481 = vmatprep.subr.bf16.mxu0 0
        %4482 = vmatpush1.bf16.msra.mxu0 0
        %4483 = vmatprep.subr.bf16.mxu0 0
        %4484 = vmatpush1.bf16.msra.mxu0 0
        %4485 = vmatprep.subr.bf16.mxu0 0
        %4486 = vmatpush1.bf16.msra.mxu0 0
        %4487 = vmatprep.subr.bf16.mxu0 0
        %4488 = vmatpush1.bf16.msra.mxu0 0
        %4489 = vmatprep.subr.bf16.mxu0 0
        %4490 = vmatpush1.bf16.msra.mxu0 0
        %4491 = vmatprep.subr.bf16.mxu0 0
        %4492 = vmatpush1.bf16.msra.mxu0 0
        %4493 = vmatprep.mubr.bf16.mxu0 0
        %4494 = vmatmul.mubr.bf16.gmra.mrb[0].mxu0 %v4459
        %v4495 = vpop.f32.mrb[0].mxu0
        %v4496 = vadd.f32 0.0, %v4495
        %v4497 = vpop.f32.mrb[0].mxu0
        %v4498 = vpop.f32.mrb[0].mxu0
        %v4499 = vpop.f32.mrb[0].mxu0
        %4500 = vdwg.mxu0
        %v4501 = vadd.f32 %v4419, %v4496
        %s4502 = scalar_lea.vmem %s5, 96
        %v4503 = vld [vmem:[%s4502] sm:$0xf]
        %v4504 = vld [vmem:[%s4502 + $0x4] sm:$0xf]
        %v4505 = vld [vmem:[%s4502 + $0x8] sm:$0xf]
        %v4506 = vld [vmem:[%s4502 + $0xc] sm:$0xf]
        %v4507 = vld [vmem:[%s4502 + $0x10] sm:$0xf]
        %v4508 = vld [vmem:[%s4502 + $0x14] sm:$0xf]
        %v4509 = vld [vmem:[%s4502 + $0x18] sm:$0xf]
        %v4510 = vld [vmem:[%s4502 + $0x1c] sm:$0xf]
        %v4511 = vrot.slane %v4269, 3
        %v4520 = vunpack.c.l.b16 %v4503
        %v4521 = vunpack.c.l.b16 %v4504
        %v4522 = vunpack.c.l.b16 %v4505
        %v4523 = vunpack.c.l.b16 %v4506
        %v4524 = vunpack.c.l.b16 %v4507
        %v4525 = vunpack.c.l.b16 %v4508
        %v4526 = vunpack.c.l.b16 %v4509
        %v4527 = vunpack.c.l.b16 %v4510
        %v4528 = vpack.c.b16 %v4521, %v4520
        %v4529 = vpack.c.b16 %v4523, %v4522
        %v4530 = vpack.c.b16 %v4525, %v4524
        %v4531 = vpack.c.b16 %v4527, %v4526
        %v4537 = vsel %vm4313, %v4511, 0
        %4539 = vmatprep.subr.bf16.mxu0 0
        %4540 = vmatpush1.bf16.msra.mxu0 %v4528
        %4541 = vmatprep.subr.bf16.mxu0 0
        %4542 = vmatpush1.bf16.msra.mxu0 %v4529
        %4543 = vmatprep.subr.bf16.mxu0 0
        %4544 = vmatpush1.bf16.msra.mxu0 %v4530
        %4545 = vmatprep.subr.bf16.mxu0 0
        %4546 = vmatpush1.bf16.msra.mxu0 %v4531
        %4547 = vmatprep.subr.bf16.mxu0 0
        %4548 = vmatpush1.bf16.msra.mxu0 0
        %4549 = vmatprep.subr.bf16.mxu0 0
        %4550 = vmatpush1.bf16.msra.mxu0 0
        %4551 = vmatprep.subr.bf16.mxu0 0
        %4552 = vmatpush1.bf16.msra.mxu0 0
        %4553 = vmatprep.subr.bf16.mxu0 0
        %4554 = vmatpush1.bf16.msra.mxu0 0
        %4555 = vmatprep.subr.bf16.mxu0 0
        %4556 = vmatpush1.bf16.msra.mxu0 0
        %4557 = vmatprep.subr.bf16.mxu0 0
        %4558 = vmatpush1.bf16.msra.mxu0 0
        %4559 = vmatprep.subr.bf16.mxu0 0
        %4560 = vmatpush1.bf16.msra.mxu0 0
        %4561 = vmatprep.subr.bf16.mxu0 0
        %4562 = vmatpush1.bf16.msra.mxu0 0
        %4563 = vmatprep.subr.bf16.mxu0 0
        %4564 = vmatpush1.bf16.msra.mxu0 0
        %4565 = vmatprep.subr.bf16.mxu0 0
        %4566 = vmatpush1.bf16.msra.mxu0 0
        %4567 = vmatprep.subr.bf16.mxu0 0
        %4568 = vmatpush1.bf16.msra.mxu0 0
        %4569 = vmatprep.subr.bf16.mxu0 0
        %4570 = vmatpush1.bf16.msra.mxu0 0
        %4571 = vmatprep.mubr.bf16.mxu0 0
        %4572 = vmatmul.mubr.bf16.gmra.mrb[0].mxu0 %v4537
        %v4573 = vpop.f32.mrb[0].mxu0
        %v4574 = vadd.f32 0.0, %v4573
        %v4575 = vpop.f32.mrb[0].mxu0
        %v4576 = vpop.f32.mrb[0].mxu0
        %v4577 = vpop.f32.mrb[0].mxu0
        %4578 = vdwg.mxu0
        %v4579 = vadd.f32 %v4501, %v4574
        %v4580 = vmax.f32 %v4258, %v4259
        %v4582 = vrot.slane %v4580, 1
        %v4584 = vmax.f32 %v4580, %v4582
        %v4585 = vpack.c.bf16 %v4584, %v4584
        %s4586 = scalar_lea.vmem %s5, 128
        %v4587 = vld [vmem:[%s4586] sm:$0xf]
        %v4588 = vld [vmem:[%s4586 + $0x4] sm:$0xf]
        %v4589 = vld [vmem:[%s4586 + $0x8] sm:$0xf]
        %v4590 = vld [vmem:[%s4586 + $0xc] sm:$0xf]
        %v4591 = vld [vmem:[%s4586 + $0x10] sm:$0xf]
        %v4592 = vld [vmem:[%s4586 + $0x14] sm:$0xf]
        %v4593 = vld [vmem:[%s4586 + $0x18] sm:$0xf]
        %v4594 = vld [vmem:[%s4586 + $0x1c] sm:$0xf]
        %v4603 = vunpack.c.l.b16 %v4587
        %v4604 = vunpack.c.l.b16 %v4588
        %v4605 = vunpack.c.l.b16 %v4589
        %v4606 = vunpack.c.l.b16 %v4590
        %v4607 = vunpack.c.l.b16 %v4591
        %v4608 = vunpack.c.l.b16 %v4592
        %v4609 = vunpack.c.l.b16 %v4593
        %v4610 = vunpack.c.l.b16 %v4594
        %v4611 = vpack.c.b16 %v4604, %v4603
        %v4612 = vpack.c.b16 %v4606, %v4605
        %v4613 = vpack.c.b16 %v4608, %v4607
        %v4614 = vpack.c.b16 %v4610, %v4609
        %v4620 = vsel %vm4313, %v4585, 0
        %4622 = vmatprep.subr.bf16.mxu0 0
        %4623 = vmatpush1.bf16.msra.mxu0 %v4611
        %4624 = vmatprep.subr.bf16.mxu0 0
        %4625 = vmatpush1.bf16.msra.mxu0 %v4612
        %4626 = vmatprep.subr.bf16.mxu0 0
        %4627 = vmatpush1.bf16.msra.mxu0 %v4613
        %4628 = vmatprep.subr.bf16.mxu0 0
        %4629 = vmatpush1.bf16.msra.mxu0 %v4614
        %4630 = vmatprep.subr.bf16.mxu0 0
        %4631 = vmatpush1.bf16.msra.mxu0 0
        %4632 = vmatprep.subr.bf16.mxu0 0
        %4633 = vmatpush1.bf16.msra.mxu0 0
        %4634 = vmatprep.subr.bf16.mxu0 0
        %4635 = vmatpush1.bf16.msra.mxu0 0
        %4636 = vmatprep.subr.bf16.mxu0 0
        %4637 = vmatpush1.bf16.msra.mxu0 0
        %4638 = vmatprep.subr.bf16.mxu0 0
        %4639 = vmatpush1.bf16.msra.mxu0 0
        %4640 = vmatprep.subr.bf16.mxu0 0
        %4641 = vmatpush1.bf16.msra.mxu0 0
        %4642 = vmatprep.subr.bf16.mxu0 0
        %4643 = vmatpush1.bf16.msra.mxu0 0
        %4644 = vmatprep.subr.bf16.mxu0 0
        %4645 = vmatpush1.bf16.msra.mxu0 0
        %4646 = vmatprep.subr.bf16.mxu0 0
        %4647 = vmatpush1.bf16.msra.mxu0 0
        %4648 = vmatprep.subr.bf16.mxu0 0
        %4649 = vmatpush1.bf16.msra.mxu0 0
        %4650 = vmatprep.subr.bf16.mxu0 0
        %4651 = vmatpush1.bf16.msra.mxu0 0
        %4652 = vmatprep.subr.bf16.mxu0 0
        %4653 = vmatpush1.bf16.msra.mxu0 0
        %4654 = vmatprep.mubr.bf16.mxu0 0
        %4655 = vmatmul.mubr.bf16.gmra.mrb[0].mxu0 %v4620
        %v4656 = vpop.f32.mrb[0].mxu0
        %v4657 = vadd.f32 0.0, %v4656
        %v4658 = vpop.f32.mrb[0].mxu0
        %v4659 = vpop.f32.mrb[0].mxu0
        %v4660 = vpop.f32.mrb[0].mxu0
        %4661 = vdwg.mxu0
        %v4662 = vadd.f32 %v4579, %v4657
        %s4663 = scalar_lea.vmem %s5, 160
        %v4664 = vld [vmem:[%s4663] sm:$0xf]
        %v4665 = vld [vmem:[%s4663 + $0x4] sm:$0xf]
        %v4666 = vld [vmem:[%s4663 + $0x8] sm:$0xf]
        %v4667 = vld [vmem:[%s4663 + $0xc] sm:$0xf]
        %v4668 = vld [vmem:[%s4663 + $0x10] sm:$0xf]
        %v4669 = vld [vmem:[%s4663 + $0x14] sm:$0xf]
        %v4670 = vld [vmem:[%s4663 + $0x18] sm:$0xf]
        %v4671 = vld [vmem:[%s4663 + $0x1c] sm:$0xf]
        %v4673 = vrot.slane %v4585, 1
        %v4682 = vunpack.c.l.b16 %v4664
        %v4683 = vunpack.c.l.b16 %v4665
        %v4684 = vunpack.c.l.b16 %v4666
        %v4685 = vunpack.c.l.b16 %v4667
        %v4686 = vunpack.c.l.b16 %v4668
        %v4687 = vunpack.c.l.b16 %v4669
        %v4688 = vunpack.c.l.b16 %v4670
        %v4689 = vunpack.c.l.b16 %v4671
        %v4690 = vpack.c.b16 %v4683, %v4682
        %v4691 = vpack.c.b16 %v4685, %v4684
        %v4692 = vpack.c.b16 %v4687, %v4686
        %v4693 = vpack.c.b16 %v4689, %v4688
        %v4699 = vsel %vm4313, %v4673, 0
        %4701 = vmatprep.subr.bf16.mxu0 0
        %4702 = vmatpush1.bf16.msra.mxu0 %v4690
        %4703 = vmatprep.subr.bf16.mxu0 0
        %4704 = vmatpush1.bf16.msra.mxu0 %v4691
        %4705 = vmatprep.subr.bf16.mxu0 0
        %4706 = vmatpush1.bf16.msra.mxu0 %v4692
        %4707 = vmatprep.subr.bf16.mxu0 0
        %4708 = vmatpush1.bf16.msra.mxu0 %v4693
        %4709 = vmatprep.subr.bf16.mxu0 0
        %4710 = vmatpush1.bf16.msra.mxu0 0
        %4711 = vmatprep.subr.bf16.mxu0 0
        %4712 = vmatpush1.bf16.msra.mxu0 0
        %4713 = vmatprep.subr.bf16.mxu0 0
        %4714 = vmatpush1.bf16.msra.mxu0 0
        %4715 = vmatprep.subr.bf16.mxu0 0
        %4716 = vmatpush1.bf16.msra.mxu0 0
        %4717 = vmatprep.subr.bf16.mxu0 0
        %4718 = vmatpush1.bf16.msra.mxu0 0
        %4719 = vmatprep.subr.bf16.mxu0 0
        %4720 = vmatpush1.bf16.msra.mxu0 0
        %4721 = vmatprep.subr.bf16.mxu0 0
        %4722 = vmatpush1.bf16.msra.mxu0 0
        %4723 = vmatprep.subr.bf16.mxu0 0
        %4724 = vmatpush1.bf16.msra.mxu0 0
        %4725 = vmatprep.subr.bf16.mxu0 0
        %4726 = vmatpush1.bf16.msra.mxu0 0
        %4727 = vmatprep.subr.bf16.mxu0 0
        %4728 = vmatpush1.bf16.msra.mxu0 0
        %4729 = vmatprep.subr.bf16.mxu0 0
        %4730 = vmatpush1.bf16.msra.mxu0 0
        %4731 = vmatprep.subr.bf16.mxu0 0
        %4732 = vmatpush1.bf16.msra.mxu0 0
        %4733 = vmatprep.mubr.bf16.mxu0 0
        %4734 = vmatmul.mubr.bf16.gmra.mrb[0].mxu0 %v4699
        %v4735 = vpop.f32.mrb[0].mxu0
        %v4736 = vadd.f32 0.0, %v4735
        %v4737 = vpop.f32.mrb[0].mxu0
        %v4738 = vpop.f32.mrb[0].mxu0
        %v4739 = vpop.f32.mrb[0].mxu0
        %4740 = vdwg.mxu0
        %v4741 = vadd.f32 %v4662, %v4736
        %s4742 = scalar_lea.vmem %s5, 192
        %v4743 = vld [vmem:[%s4742] sm:$0xf]
        %v4744 = vld [vmem:[%s4742 + $0x4] sm:$0xf]
        %v4745 = vld [vmem:[%s4742 + $0x8] sm:$0xf]
        %v4746 = vld [vmem:[%s4742 + $0xc] sm:$0xf]
        %v4747 = vld [vmem:[%s4742 + $0x10] sm:$0xf]
        %v4748 = vld [vmem:[%s4742 + $0x14] sm:$0xf]
        %v4749 = vld [vmem:[%s4742 + $0x18] sm:$0xf]
        %v4750 = vld [vmem:[%s4742 + $0x1c] sm:$0xf]
        %v4751 = vrot.slane %v4585, 2
        %v4760 = vunpack.c.l.b16 %v4743
        %v4761 = vunpack.c.l.b16 %v4744
        %v4762 = vunpack.c.l.b16 %v4745
        %v4763 = vunpack.c.l.b16 %v4746
        %v4764 = vunpack.c.l.b16 %v4747
        %v4765 = vunpack.c.l.b16 %v4748
        %v4766 = vunpack.c.l.b16 %v4749
        %v4767 = vunpack.c.l.b16 %v4750
        %v4768 = vpack.c.b16 %v4761, %v4760
        %v4769 = vpack.c.b16 %v4763, %v4762
        %v4770 = vpack.c.b16 %v4765, %v4764
        %v4771 = vpack.c.b16 %v4767, %v4766
        %v4777 = vsel %vm4313, %v4751, 0
        %4779 = vmatprep.subr.bf16.mxu0 0
        %4780 = vmatpush1.bf16.msra.mxu0 %v4768
        %4781 = vmatprep.subr.bf16.mxu0 0
        %4782 = vmatpush1.bf16.msra.mxu0 %v4769
        %4783 = vmatprep.subr.bf16.mxu0 0
        %4784 = vmatpush1.bf16.msra.mxu0 %v4770
        %4785 = vmatprep.subr.bf16.mxu0 0
        %4786 = vmatpush1.bf16.msra.mxu0 %v4771
        %4787 = vmatprep.subr.bf16.mxu0 0
        %4788 = vmatpush1.bf16.msra.mxu0 0
        %4789 = vmatprep.subr.bf16.mxu0 0
        %4790 = vmatpush1.bf16.msra.mxu0 0
        %4791 = vmatprep.subr.bf16.mxu0 0
        %4792 = vmatpush1.bf16.msra.mxu0 0
        %4793 = vmatprep.subr.bf16.mxu0 0
        %4794 = vmatpush1.bf16.msra.mxu0 0
        %4795 = vmatprep.subr.bf16.mxu0 0
        %4796 = vmatpush1.bf16.msra.mxu0 0
        %4797 = vmatprep.subr.bf16.mxu0 0
        %4798 = vmatpush1.bf16.msra.mxu0 0
        %4799 = vmatprep.subr.bf16.mxu0 0
        %4800 = vmatpush1.bf16.msra.mxu0 0
        %4801 = vmatprep.subr.bf16.mxu0 0
        %4802 = vmatpush1.bf16.msra.mxu0 0
        %4803 = vmatprep.subr.bf16.mxu0 0
        %4804 = vmatpush1.bf16.msra.mxu0 0
        %4805 = vmatprep.subr.bf16.mxu0 0
        %4806 = vmatpush1.bf16.msra.mxu0 0
        %4807 = vmatprep.subr.bf16.mxu0 0
        %4808 = vmatpush1.bf16.msra.mxu0 0
        %4809 = vmatprep.subr.bf16.mxu0 0
        %4810 = vmatpush1.bf16.msra.mxu0 0
        %4811 = vmatprep.mubr.bf16.mxu0 0
        %4812 = vmatmul.mubr.bf16.gmra.mrb[0].mxu0 %v4777
        %v4813 = vpop.f32.mrb[0].mxu0
        %v4814 = vadd.f32 0.0, %v4813
        %v4815 = vpop.f32.mrb[0].mxu0
        %v4816 = vpop.f32.mrb[0].mxu0
        %v4817 = vpop.f32.mrb[0].mxu0
        %4818 = vdwg.mxu0
        %v4819 = vadd.f32 %v4741, %v4814
        %s4820 = scalar_lea.vmem %s5, 224
        %v4821 = vld [vmem:[%s4820] sm:$0xf]
        %v4822 = vld [vmem:[%s4820 + $0x4] sm:$0xf]
        %v4823 = vld [vmem:[%s4820 + $0x8] sm:$0xf]
        %v4824 = vld [vmem:[%s4820 + $0xc] sm:$0xf]
        %v4825 = vld [vmem:[%s4820 + $0x10] sm:$0xf]
        %v4826 = vld [vmem:[%s4820 + $0x14] sm:$0xf]
        %v4827 = vld [vmem:[%s4820 + $0x18] sm:$0xf]
        %v4828 = vld [vmem:[%s4820 + $0x1c] sm:$0xf]
        %v4829 = vrot.slane %v4585, 3
        %v4838 = vunpack.c.l.b16 %v4821
        %v4839 = vunpack.c.l.b16 %v4822
        %v4840 = vunpack.c.l.b16 %v4823
        %v4841 = vunpack.c.l.b16 %v4824
        %v4842 = vunpack.c.l.b16 %v4825
        %v4843 = vunpack.c.l.b16 %v4826
        %v4844 = vunpack.c.l.b16 %v4827
        %v4845 = vunpack.c.l.b16 %v4828
        %v4846 = vpack.c.b16 %v4839, %v4838
        %v4847 = vpack.c.b16 %v4841, %v4840
        %v4848 = vpack.c.b16 %v4843, %v4842
        %v4849 = vpack.c.b16 %v4845, %v4844
        %v4855 = vsel %vm4313, %v4829, 0
        %4857 = vmatprep.subr.bf16.mxu0 0
        %4858 = vmatpush1.bf16.msra.mxu0 %v4846
        %4859 = vmatprep.subr.bf16.mxu0 0
        %4860 = vmatpush1.bf16.msra.mxu0 %v4847
        %4861 = vmatprep.subr.bf16.mxu0 0
        %4862 = vmatpush1.bf16.msra.mxu0 %v4848
        %4863 = vmatprep.subr.bf16.mxu0 0
        %4864 = vmatpush1.bf16.msra.mxu0 %v4849
        %4865 = vmatprep.subr.bf16.mxu0 0
        %4866 = vmatpush1.bf16.msra.mxu0 0
        %4867 = vmatprep.subr.bf16.mxu0 0
        %4868 = vmatpush1.bf16.msra.mxu0 0
        %4869 = vmatprep.subr.bf16.mxu0 0
        %4870 = vmatpush1.bf16.msra.mxu0 0
        %4871 = vmatprep.subr.bf16.mxu0 0
        %4872 = vmatpush1.bf16.msra.mxu0 0
        %4873 = vmatprep.subr.bf16.mxu0 0
        %4874 = vmatpush1.bf16.msra.mxu0 0
        %4875 = vmatprep.subr.bf16.mxu0 0
        %4876 = vmatpush1.bf16.msra.mxu0 0
        %4877 = vmatprep.subr.bf16.mxu0 0
        %4878 = vmatpush1.bf16.msra.mxu0 0
        %4879 = vmatprep.subr.bf16.mxu0 0
        %4880 = vmatpush1.bf16.msra.mxu0 0
        %4881 = vmatprep.subr.bf16.mxu0 0
        %4882 = vmatpush1.bf16.msra.mxu0 0
        %4883 = vmatprep.subr.bf16.mxu0 0
        %4884 = vmatpush1.bf16.msra.mxu0 0
        %4885 = vmatprep.subr.bf16.mxu0 0
        %4886 = vmatpush1.bf16.msra.mxu0 0
        %4887 = vmatprep.subr.bf16.mxu0 0
        %4888 = vmatpush1.bf16.msra.mxu0 0
        %4889 = vmatprep.mubr.bf16.mxu0 0
        %4890 = vmatmul.mubr.bf16.gmra.mrb[0].mxu0 %v4855
        %v4891 = vpop.f32.mrb[0].mxu0
        %v4892 = vadd.f32 0.0, %v4891
        %v4893 = vpop.f32.mrb[0].mxu0
        %v4894 = vpop.f32.mrb[0].mxu0
        %v4895 = vpop.f32.mrb[0].mxu0
        %4896 = vdwg.mxu0
        %v4897 = vadd.f32 %v4819, %v4892
        %v4898 = vmax.f32 %v4260, %v4261
        %v4900 = vrot.slane %v4898, 1
        %v4902 = vmax.f32 %v4898, %v4900
        %v4903 = vpack.c.bf16 %v4902, %v4902
        %s4904 = scalar_lea.vmem %s5, 256
        %v4905 = vld [vmem:[%s4904] sm:$0xf]
        %v4906 = vld [vmem:[%s4904 + $0x4] sm:$0xf]
        %v4907 = vld [vmem:[%s4904 + $0x8] sm:$0xf]
        %v4908 = vld [vmem:[%s4904 + $0xc] sm:$0xf]
        %v4909 = vld [vmem:[%s4904 + $0x10] sm:$0xf]
        %v4910 = vld [vmem:[%s4904 + $0x14] sm:$0xf]
        %v4911 = vld [vmem:[%s4904 + $0x18] sm:$0xf]
        %v4912 = vld [vmem:[%s4904 + $0x1c] sm:$0xf]
        %v4921 = vunpack.c.l.b16 %v4905
        %v4922 = vunpack.c.l.b16 %v4906
        %v4923 = vunpack.c.l.b16 %v4907
        %v4924 = vunpack.c.l.b16 %v4908
        %v4925 = vunpack.c.l.b16 %v4909
        %v4926 = vunpack.c.l.b16 %v4910
        %v4927 = vunpack.c.l.b16 %v4911
        %v4928 = vunpack.c.l.b16 %v4912
        %v4929 = vpack.c.b16 %v4922, %v4921
        %v4930 = vpack.c.b16 %v4924, %v4923
        %v4931 = vpack.c.b16 %v4926, %v4925
        %v4932 = vpack.c.b16 %v4928, %v4927
        %v4938 = vsel %vm4313, %v4903, 0
        %4940 = vmatprep.subr.bf16.mxu0 0
        %4941 = vmatpush1.bf16.msra.mxu0 %v4929
        %4942 = vmatprep.subr.bf16.mxu0 0
        %4943 = vmatpush1.bf16.msra.mxu0 %v4930
        %4944 = vmatprep.subr.bf16.mxu0 0
        %4945 = vmatpush1.bf16.msra.mxu0 %v4931
        %4946 = vmatprep.subr.bf16.mxu0 0
        %4947 = vmatpush1.bf16.msra.mxu0 %v4932
        %4948 = vmatprep.subr.bf16.mxu0 0
        %4949 = vmatpush1.bf16.msra.mxu0 0
        %4950 = vmatprep.subr.bf16.mxu0 0
        %4951 = vmatpush1.bf16.msra.mxu0 0
        %4952 = vmatprep.subr.bf16.mxu0 0
        %4953 = vmatpush1.bf16.msra.mxu0 0
        %4954 = vmatprep.subr.bf16.mxu0 0
        %4955 = vmatpush1.bf16.msra.mxu0 0
        %4956 = vmatprep.subr.bf16.mxu0 0
        %4957 = vmatpush1.bf16.msra.mxu0 0
        %4958 = vmatprep.subr.bf16.mxu0 0
        %4959 = vmatpush1.bf16.msra.mxu0 0
        %4960 = vmatprep.subr.bf16.mxu0 0
        %4961 = vmatpush1.bf16.msra.mxu0 0
        %4962 = vmatprep.subr.bf16.mxu0 0
        %4963 = vmatpush1.bf16.msra.mxu0 0
        %4964 = vmatprep.subr.bf16.mxu0 0
        %4965 = vmatpush1.bf16.msra.mxu0 0
        %4966 = vmatprep.subr.bf16.mxu0 0
        %4967 = vmatpush1.bf16.msra.mxu0 0
        %4968 = vmatprep.subr.bf16.mxu0 0
        %4969 = vmatpush1.bf16.msra.mxu0 0
        %4970 = vmatprep.subr.bf16.mxu0 0
        %4971 = vmatpush1.bf16.msra.mxu0 0
        %4972 = vmatprep.mubr.bf16.mxu0 0
        %4973 = vmatmul.mubr.bf16.gmra.mrb[0].mxu0 %v4938
        %v4974 = vpop.f32.mrb[0].mxu0
        %v4975 = vadd.f32 0.0, %v4974
        %v4976 = vpop.f32.mrb[0].mxu0
        %v4977 = vpop.f32.mrb[0].mxu0
        %v4978 = vpop.f32.mrb[0].mxu0
        %4979 = vdwg.mxu0
        %v4980 = vadd.f32 %v4897, %v4975
        %s4981 = scalar_lea.vmem %s5, 288
        %v4982 = vld [vmem:[%s4981] sm:$0xf]
        %v4983 = vld [vmem:[%s4981 + $0x4] sm:$0xf]
        %v4984 = vld [vmem:[%s4981 + $0x8] sm:$0xf]
        %v4985 = vld [vmem:[%s4981 + $0xc] sm:$0xf]
        %v4986 = vld [vmem:[%s4981 + $0x10] sm:$0xf]
        %v4987 = vld [vmem:[%s4981 + $0x14] sm:$0xf]
        %v4988 = vld [vmem:[%s4981 + $0x18] sm:$0xf]
        %v4989 = vld [vmem:[%s4981 + $0x1c] sm:$0xf]
        %v4991 = vrot.slane %v4903, 1
        %v5000 = vunpack.c.l.b16 %v4982
        %v5001 = vunpack.c.l.b16 %v4983
        %v5002 = vunpack.c.l.b16 %v4984
        %v5003 = vunpack.c.l.b16 %v4985
        %v5004 = vunpack.c.l.b16 %v4986
        %v5005 = vunpack.c.l.b16 %v4987
        %v5006 = vunpack.c.l.b16 %v4988
        %v5007 = vunpack.c.l.b16 %v4989
        %v5008 = vpack.c.b16 %v5001, %v5000
        %v5009 = vpack.c.b16 %v5003, %v5002
        %v5010 = vpack.c.b16 %v5005, %v5004
        %v5011 = vpack.c.b16 %v5007, %v5006
        %v5017 = vsel %vm4313, %v4991, 0
        %5019 = vmatprep.subr.bf16.mxu0 0
        %5020 = vmatpush1.bf16.msra.mxu0 %v5008
        %5021 = vmatprep.subr.bf16.mxu0 0
        %5022 = vmatpush1.bf16.msra.mxu0 %v5009
        %5023 = vmatprep.subr.bf16.mxu0 0
        %5024 = vmatpush1.bf16.msra.mxu0 %v5010
        %5025 = vmatprep.subr.bf16.mxu0 0
        %5026 = vmatpush1.bf16.msra.mxu0 %v5011
        %5027 = vmatprep.subr.bf16.mxu0 0
        %5028 = vmatpush1.bf16.msra.mxu0 0
        %5029 = vmatprep.subr.bf16.mxu0 0
        %5030 = vmatpush1.bf16.msra.mxu0 0
        %5031 = vmatprep.subr.bf16.mxu0 0
        %5032 = vmatpush1.bf16.msra.mxu0 0
        %5033 = vmatprep.subr.bf16.mxu0 0
        %5034 = vmatpush1.bf16.msra.mxu0 0
        %5035 = vmatprep.subr.bf16.mxu0 0
        %5036 = vmatpush1.bf16.msra.mxu0 0
        %5037 = vmatprep.subr.bf16.mxu0 0
        %5038 = vmatpush1.bf16.msra.mxu0 0
        %5039 = vmatprep.subr.bf16.mxu0 0
        %5040 = vmatpush1.bf16.msra.mxu0 0
        %5041 = vmatprep.subr.bf16.mxu0 0
        %5042 = vmatpush1.bf16.msra.mxu0 0
        %5043 = vmatprep.subr.bf16.mxu0 0
        %5044 = vmatpush1.bf16.msra.mxu0 0
        %5045 = vmatprep.subr.bf16.mxu0 0
        %5046 = vmatpush1.bf16.msra.mxu0 0
        %5047 = vmatprep.subr.bf16.mxu0 0
        %5048 = vmatpush1.bf16.msra.mxu0 0
        %5049 = vmatprep.subr.bf16.mxu0 0
        %5050 = vmatpush1.bf16.msra.mxu0 0
        %5051 = vmatprep.mubr.bf16.mxu0 0
        %5052 = vmatmul.mubr.bf16.gmra.mrb[0].mxu0 %v5017
        %v5053 = vpop.f32.mrb[0].mxu0
        %v5054 = vadd.f32 0.0, %v5053
        %v5055 = vpop.f32.mrb[0].mxu0
        %v5056 = vpop.f32.mrb[0].mxu0
        %v5057 = vpop.f32.mrb[0].mxu0
        %5058 = vdwg.mxu0
        %v5059 = vadd.f32 %v4980, %v5054
        %s5060 = scalar_lea.vmem %s5, 320
        %v5061 = vld [vmem:[%s5060] sm:$0xf]
        %v5062 = vld [vmem:[%s5060 + $0x4] sm:$0xf]
        %v5063 = vld [vmem:[%s5060 + $0x8] sm:$0xf]
        %v5064 = vld [vmem:[%s5060 + $0xc] sm:$0xf]
        %v5065 = vld [vmem:[%s5060 + $0x10] sm:$0xf]
        %v5066 = vld [vmem:[%s5060 + $0x14] sm:$0xf]
        %v5067 = vld [vmem:[%s5060 + $0x18] sm:$0xf]
        %v5068 = vld [vmem:[%s5060 + $0x1c] sm:$0xf]
        %v5069 = vrot.slane %v4903, 2
        %v5078 = vunpack.c.l.b16 %v5061
        %v5079 = vunpack.c.l.b16 %v5062
        %v5080 = vunpack.c.l.b16 %v5063
        %v5081 = vunpack.c.l.b16 %v5064
        %v5082 = vunpack.c.l.b16 %v5065
        %v5083 = vunpack.c.l.b16 %v5066
        %v5084 = vunpack.c.l.b16 %v5067
        %v5085 = vunpack.c.l.b16 %v5068
        %v5086 = vpack.c.b16 %v5079, %v5078
        %v5087 = vpack.c.b16 %v5081, %v5080
        %v5088 = vpack.c.b16 %v5083, %v5082
        %v5089 = vpack.c.b16 %v5085, %v5084
        %v5095 = vsel %vm4313, %v5069, 0
        %5097 = vmatprep.subr.bf16.mxu0 0
        %5098 = vmatpush1.bf16.msra.mxu0 %v5086
        %5099 = vmatprep.subr.bf16.mxu0 0
        %5100 = vmatpush1.bf16.msra.mxu0 %v5087
        %5101 = vmatprep.subr.bf16.mxu0 0
        %5102 = vmatpush1.bf16.msra.mxu0 %v5088
        %5103 = vmatprep.subr.bf16.mxu0 0
        %5104 = vmatpush1.bf16.msra.mxu0 %v5089
        %5105 = vmatprep.subr.bf16.mxu0 0
        %5106 = vmatpush1.bf16.msra.mxu0 0
        %5107 = vmatprep.subr.bf16.mxu0 0
        %5108 = vmatpush1.bf16.msra.mxu0 0
        %5109 = vmatprep.subr.bf16.mxu0 0
        %5110 = vmatpush1.bf16.msra.mxu0 0
        %5111 = vmatprep.subr.bf16.mxu0 0
        %5112 = vmatpush1.bf16.msra.mxu0 0
        %5113 = vmatprep.subr.bf16.mxu0 0
        %5114 = vmatpush1.bf16.msra.mxu0 0
        %5115 = vmatprep.subr.bf16.mxu0 0
        %5116 = vmatpush1.bf16.msra.mxu0 0
        %5117 = vmatprep.subr.bf16.mxu0 0
        %5118 = vmatpush1.bf16.msra.mxu0 0
        %5119 = vmatprep.subr.bf16.mxu0 0
        %5120 = vmatpush1.bf16.msra.mxu0 0
        %5121 = vmatprep.subr.bf16.mxu0 0
        %5122 = vmatpush1.bf16.msra.mxu0 0
        %5123 = vmatprep.subr.bf16.mxu0 0
        %5124 = vmatpush1.bf16.msra.mxu0 0
        %5125 = vmatprep.subr.bf16.mxu0 0
        %5126 = vmatpush1.bf16.msra.mxu0 0
        %5127 = vmatprep.subr.bf16.mxu0 0
        %5128 = vmatpush1.bf16.msra.mxu0 0
        %5129 = vmatprep.mubr.bf16.mxu0 0
        %5130 = vmatmul.mubr.bf16.gmra.mrb[0].mxu0 %v5095
        %v5131 = vpop.f32.mrb[0].mxu0
        %v5132 = vadd.f32 0.0, %v5131
        %v5133 = vpop.f32.mrb[0].mxu0
        %v5134 = vpop.f32.mrb[0].mxu0
        %v5135 = vpop.f32.mrb[0].mxu0
        %5136 = vdwg.mxu0
        %v5137 = vadd.f32 %v5059, %v5132
        %s5138 = scalar_lea.vmem %s5, 352
        %v5139 = vld [vmem:[%s5138] sm:$0xf]
        %v5140 = vld [vmem:[%s5138 + $0x4] sm:$0xf]
        %v5141 = vld [vmem:[%s5138 + $0x8] sm:$0xf]
        %v5142 = vld [vmem:[%s5138 + $0xc] sm:$0xf]
        %v5143 = vld [vmem:[%s5138 + $0x10] sm:$0xf]
        %v5144 = vld [vmem:[%s5138 + $0x14] sm:$0xf]
        %v5145 = vld [vmem:[%s5138 + $0x18] sm:$0xf]
        %v5146 = vld [vmem:[%s5138 + $0x1c] sm:$0xf]
        %v5147 = vrot.slane %v4903, 3
        %v5156 = vunpack.c.l.b16 %v5139
        %v5157 = vunpack.c.l.b16 %v5140
        %v5158 = vunpack.c.l.b16 %v5141
        %v5159 = vunpack.c.l.b16 %v5142
        %v5160 = vunpack.c.l.b16 %v5143
        %v5161 = vunpack.c.l.b16 %v5144
        %v5162 = vunpack.c.l.b16 %v5145
        %v5163 = vunpack.c.l.b16 %v5146
        %v5164 = vpack.c.b16 %v5157, %v5156
        %v5165 = vpack.c.b16 %v5159, %v5158
        %v5166 = vpack.c.b16 %v5161, %v5160
        %v5167 = vpack.c.b16 %v5163, %v5162
        %v5173 = vsel %vm4313, %v5147, 0
        %5175 = vmatprep.subr.bf16.mxu0 0
        %5176 = vmatpush1.bf16.msra.mxu0 %v5164
        %5177 = vmatprep.subr.bf16.mxu0 0
        %5178 = vmatpush1.bf16.msra.mxu0 %v5165
        %5179 = vmatprep.subr.bf16.mxu0 0
        %5180 = vmatpush1.bf16.msra.mxu0 %v5166
        %5181 = vmatprep.subr.bf16.mxu0 0
        %5182 = vmatpush1.bf16.msra.mxu0 %v5167
        %5183 = vmatprep.subr.bf16.mxu0 0
        %5184 = vmatpush1.bf16.msra.mxu0 0
        %5185 = vmatprep.subr.bf16.mxu0 0
        %5186 = vmatpush1.bf16.msra.mxu0 0
        %5187 = vmatprep.subr.bf16.mxu0 0
        %5188 = vmatpush1.bf16.msra.mxu0 0
        %5189 = vmatprep.subr.bf16.mxu0 0
        %5190 = vmatpush1.bf16.msra.mxu0 0
        %5191 = vmatprep.subr.bf16.mxu0 0
        %5192 = vmatpush1.bf16.msra.mxu0 0
        %5193 = vmatprep.subr.bf16.mxu0 0
        %5194 = vmatpush1.bf16.msra.mxu0 0
        %5195 = vmatprep.subr.bf16.mxu0 0
        %5196 = vmatpush1.bf16.msra.mxu0 0
        %5197 = vmatprep.subr.bf16.mxu0 0
        %5198 = vmatpush1.bf16.msra.mxu0 0
        %5199 = vmatprep.subr.bf16.mxu0 0
        %5200 = vmatpush1.bf16.msra.mxu0 0
        %5201 = vmatprep.subr.bf16.mxu0 0
        %5202 = vmatpush1.bf16.msra.mxu0 0
        %5203 = vmatprep.subr.bf16.mxu0 0
        %5204 = vmatpush1.bf16.msra.mxu0 0
        %5205 = vmatprep.subr.bf16.mxu0 0
        %5206 = vmatpush1.bf16.msra.mxu0 0
        %5207 = vmatprep.mubr.bf16.mxu0 0
        %5208 = vmatmul.mubr.bf16.gmra.mrb[0].mxu0 %v5173
        %v5209 = vpop.f32.mrb[0].mxu0
        %v5210 = vadd.f32 0.0, %v5209
        %v5211 = vpop.f32.mrb[0].mxu0
        %v5212 = vpop.f32.mrb[0].mxu0
        %v5213 = vpop.f32.mrb[0].mxu0
        %5214 = vdwg.mxu0
        %v5215 = vadd.f32 %v5137, %v5210
        %v5216 = vmax.f32 %v4262, %v4263
        %v5218 = vrot.slane %v5216, 1
        %v5220 = vmax.f32 %v5216, %v5218
        %v5221 = vpack.c.bf16 %v5220, %v5220
        %s5222 = scalar_lea.vmem %s5, 384
        %v5223 = vld [vmem:[%s5222] sm:$0xf]
        %v5224 = vld [vmem:[%s5222 + $0x4] sm:$0xf]
        %v5225 = vld [vmem:[%s5222 + $0x8] sm:$0xf]
        %v5226 = vld [vmem:[%s5222 + $0xc] sm:$0xf]
        %v5227 = vld [vmem:[%s5222 + $0x10] sm:$0xf]
        %v5228 = vld [vmem:[%s5222 + $0x14] sm:$0xf]
        %v5229 = vld [vmem:[%s5222 + $0x18] sm:$0xf]
        %v5230 = vld [vmem:[%s5222 + $0x1c] sm:$0xf]
        %v5239 = vunpack.c.l.b16 %v5223
        %v5240 = vunpack.c.l.b16 %v5224
        %v5241 = vunpack.c.l.b16 %v5225
        %v5242 = vunpack.c.l.b16 %v5226
        %v5243 = vunpack.c.l.b16 %v5227
        %v5244 = vunpack.c.l.b16 %v5228
        %v5245 = vunpack.c.l.b16 %v5229
        %v5246 = vunpack.c.l.b16 %v5230
        %v5247 = vpack.c.b16 %v5240, %v5239
        %v5248 = vpack.c.b16 %v5242, %v5241
        %v5249 = vpack.c.b16 %v5244, %v5243
        %v5250 = vpack.c.b16 %v5246, %v5245
        %v5256 = vsel %vm4313, %v5221, 0
        %5258 = vmatprep.subr.bf16.mxu0 0
        %5259 = vmatpush1.bf16.msra.mxu0 %v5247
        %5260 = vmatprep.subr.bf16.mxu0 0
        %5261 = vmatpush1.bf16.msra.mxu0 %v5248
        %5262 = vmatprep.subr.bf16.mxu0 0
        %5263 = vmatpush1.bf16.msra.mxu0 %v5249
        %5264 = vmatprep.subr.bf16.mxu0 0
        %5265 = vmatpush1.bf16.msra.mxu0 %v5250
        %5266 = vmatprep.subr.bf16.mxu0 0
        %5267 = vmatpush1.bf16.msra.mxu0 0
        %5268 = vmatprep.subr.bf16.mxu0 0
        %5269 = vmatpush1.bf16.msra.mxu0 0
        %5270 = vmatprep.subr.bf16.mxu0 0
        %5271 = vmatpush1.bf16.msra.mxu0 0
        %5272 = vmatprep.subr.bf16.mxu0 0
        %5273 = vmatpush1.bf16.msra.mxu0 0
        %5274 = vmatprep.subr.bf16.mxu0 0
        %5275 = vmatpush1.bf16.msra.mxu0 0
        %5276 = vmatprep.subr.bf16.mxu0 0
        %5277 = vmatpush1.bf16.msra.mxu0 0
        %5278 = vmatprep.subr.bf16.mxu0 0
        %5279 = vmatpush1.bf16.msra.mxu0 0
        %5280 = vmatprep.subr.bf16.mxu0 0
        %5281 = vmatpush1.bf16.msra.mxu0 0
        %5282 = vmatprep.subr.bf16.mxu0 0
        %5283 = vmatpush1.bf16.msra.mxu0 0
        %5284 = vmatprep.subr.bf16.mxu0 0
        %5285 = vmatpush1.bf16.msra.mxu0 0
        %5286 = vmatprep.subr.bf16.mxu0 0
        %5287 = vmatpush1.bf16.msra.mxu0 0
        %5288 = vmatprep.subr.bf16.mxu0 0
        %5289 = vmatpush1.bf16.msra.mxu0 0
        %5290 = vmatprep.mubr.bf16.mxu0 0
        %5291 = vmatmul.mubr.bf16.gmra.mrb[0].mxu0 %v5256
        %v5292 = vpop.f32.mrb[0].mxu0
        %v5293 = vadd.f32 0.0, %v5292
        %v5294 = vpop.f32.mrb[0].mxu0
        %v5295 = vpop.f32.mrb[0].mxu0
        %v5296 = vpop.f32.mrb[0].mxu0
        %5297 = vdwg.mxu0
        %v5298 = vadd.f32 %v5215, %v5293
        %s5299 = scalar_lea.vmem %s5, 416
        %v5300 = vld [vmem:[%s5299] sm:$0xf]
        %v5301 = vld [vmem:[%s5299 + $0x4] sm:$0xf]
        %v5302 = vld [vmem:[%s5299 + $0x8] sm:$0xf]
        %v5303 = vld [vmem:[%s5299 + $0xc] sm:$0xf]
        %v5304 = vld [vmem:[%s5299 + $0x10] sm:$0xf]
        %v5305 = vld [vmem:[%s5299 + $0x14] sm:$0xf]
        %v5306 = vld [vmem:[%s5299 + $0x18] sm:$0xf]
        %v5307 = vld [vmem:[%s5299 + $0x1c] sm:$0xf]
        %v5309 = vrot.slane %v5221, 1
        %v5318 = vunpack.c.l.b16 %v5300
        %v5319 = vunpack.c.l.b16 %v5301
        %v5320 = vunpack.c.l.b16 %v5302
        %v5321 = vunpack.c.l.b16 %v5303
        %v5322 = vunpack.c.l.b16 %v5304
        %v5323 = vunpack.c.l.b16 %v5305
        %v5324 = vunpack.c.l.b16 %v5306
        %v5325 = vunpack.c.l.b16 %v5307
        %v5326 = vpack.c.b16 %v5319, %v5318
        %v5327 = vpack.c.b16 %v5321, %v5320
        %v5328 = vpack.c.b16 %v5323, %v5322
        %v5329 = vpack.c.b16 %v5325, %v5324
        %v5335 = vsel %vm4313, %v5309, 0
        %5337 = vmatprep.subr.bf16.mxu0 0
        %5338 = vmatpush1.bf16.msra.mxu0 %v5326
        %5339 = vmatprep.subr.bf16.mxu0 0
        %5340 = vmatpush1.bf16.msra.mxu0 %v5327
        %5341 = vmatprep.subr.bf16.mxu0 0
        %5342 = vmatpush1.bf16.msra.mxu0 %v5328
        %5343 = vmatprep.subr.bf16.mxu0 0
        %5344 = vmatpush1.bf16.msra.mxu0 %v5329
        %5345 = vmatprep.subr.bf16.mxu0 0
        %5346 = vmatpush1.bf16.msra.mxu0 0
        %5347 = vmatprep.subr.bf16.mxu0 0
        %5348 = vmatpush1.bf16.msra.mxu0 0
        %5349 = vmatprep.subr.bf16.mxu0 0
        %5350 = vmatpush1.bf16.msra.mxu0 0
        %5351 = vmatprep.subr.bf16.mxu0 0
        %5352 = vmatpush1.bf16.msra.mxu0 0
        %5353 = vmatprep.subr.bf16.mxu0 0
        %5354 = vmatpush1.bf16.msra.mxu0 0
        %5355 = vmatprep.subr.bf16.mxu0 0
        %5356 = vmatpush1.bf16.msra.mxu0 0
        %5357 = vmatprep.subr.bf16.mxu0 0
        %5358 = vmatpush1.bf16.msra.mxu0 0
        %5359 = vmatprep.subr.bf16.mxu0 0
        %5360 = vmatpush1.bf16.msra.mxu0 0
        %5361 = vmatprep.subr.bf16.mxu0 0
        %5362 = vmatpush1.bf16.msra.mxu0 0
        %5363 = vmatprep.subr.bf16.mxu0 0
        %5364 = vmatpush1.bf16.msra.mxu0 0
        %5365 = vmatprep.subr.bf16.mxu0 0
        %5366 = vmatpush1.bf16.msra.mxu0 0
        %5367 = vmatprep.subr.bf16.mxu0 0
        %5368 = vmatpush1.bf16.msra.mxu0 0
        %5369 = vmatprep.mubr.bf16.mxu0 0
        %5370 = vmatmul.mubr.bf16.gmra.mrb[0].mxu0 %v5335
        %v5371 = vpop.f32.mrb[0].mxu0
        %v5372 = vadd.f32 0.0, %v5371
        %v5373 = vpop.f32.mrb[0].mxu0
        %v5374 = vpop.f32.mrb[0].mxu0
        %v5375 = vpop.f32.mrb[0].mxu0
        %5376 = vdwg.mxu0
        %v5377 = vadd.f32 %v5298, %v5372
        %s5378 = scalar_lea.vmem %s5, 448
        %v5379 = vld [vmem:[%s5378] sm:$0xf]
        %v5380 = vld [vmem:[%s5378 + $0x4] sm:$0xf]
        %v5381 = vld [vmem:[%s5378 + $0x8] sm:$0xf]
        %v5382 = vld [vmem:[%s5378 + $0xc] sm:$0xf]
        %v5383 = vld [vmem:[%s5378 + $0x10] sm:$0xf]
        %v5384 = vld [vmem:[%s5378 + $0x14] sm:$0xf]
        %v5385 = vld [vmem:[%s5378 + $0x18] sm:$0xf]
        %v5386 = vld [vmem:[%s5378 + $0x1c] sm:$0xf]
        %v5387 = vrot.slane %v5221, 2
        %v5396 = vunpack.c.l.b16 %v5379
        %v5397 = vunpack.c.l.b16 %v5380
        %v5398 = vunpack.c.l.b16 %v5381
        %v5399 = vunpack.c.l.b16 %v5382
        %v5400 = vunpack.c.l.b16 %v5383
        %v5401 = vunpack.c.l.b16 %v5384
        %v5402 = vunpack.c.l.b16 %v5385
        %v5403 = vunpack.c.l.b16 %v5386
        %v5404 = vpack.c.b16 %v5397, %v5396
        %v5405 = vpack.c.b16 %v5399, %v5398
        %v5406 = vpack.c.b16 %v5401, %v5400
        %v5407 = vpack.c.b16 %v5403, %v5402
        %v5413 = vsel %vm4313, %v5387, 0
        %5415 = vmatprep.subr.bf16.mxu0 0
        %5416 = vmatpush1.bf16.msra.mxu0 %v5404
        %5417 = vmatprep.subr.bf16.mxu0 0
        %5418 = vmatpush1.bf16.msra.mxu0 %v5405
        %5419 = vmatprep.subr.bf16.mxu0 0
        %5420 = vmatpush1.bf16.msra.mxu0 %v5406
        %5421 = vmatprep.subr.bf16.mxu0 0
        %5422 = vmatpush1.bf16.msra.mxu0 %v5407
        %5423 = vmatprep.subr.bf16.mxu0 0
        %5424 = vmatpush1.bf16.msra.mxu0 0
        %5425 = vmatprep.subr.bf16.mxu0 0
        %5426 = vmatpush1.bf16.msra.mxu0 0
        %5427 = vmatprep.subr.bf16.mxu0 0
        %5428 = vmatpush1.bf16.msra.mxu0 0
        %5429 = vmatprep.subr.bf16.mxu0 0
        %5430 = vmatpush1.bf16.msra.mxu0 0
        %5431 = vmatprep.subr.bf16.mxu0 0
        %5432 = vmatpush1.bf16.msra.mxu0 0
        %5433 = vmatprep.subr.bf16.mxu0 0
        %5434 = vmatpush1.bf16.msra.mxu0 0
        %5435 = vmatprep.subr.bf16.mxu0 0
        %5436 = vmatpush1.bf16.msra.mxu0 0
        %5437 = vmatprep.subr.bf16.mxu0 0
        %5438 = vmatpush1.bf16.msra.mxu0 0
        %5439 = vmatprep.subr.bf16.mxu0 0
        %5440 = vmatpush1.bf16.msra.mxu0 0
        %5441 = vmatprep.subr.bf16.mxu0 0
        %5442 = vmatpush1.bf16.msra.mxu0 0
        %5443 = vmatprep.subr.bf16.mxu0 0
        %5444 = vmatpush1.bf16.msra.mxu0 0
        %5445 = vmatprep.subr.bf16.mxu0 0
        %5446 = vmatpush1.bf16.msra.mxu0 0
        %5447 = vmatprep.mubr.bf16.mxu0 0
        %5448 = vmatmul.mubr.bf16.gmra.mrb[0].mxu0 %v5413
        %v5449 = vpop.f32.mrb[0].mxu0
        %v5450 = vadd.f32 0.0, %v5449
        %v5451 = vpop.f32.mrb[0].mxu0
        %v5452 = vpop.f32.mrb[0].mxu0
        %v5453 = vpop.f32.mrb[0].mxu0
        %5454 = vdwg.mxu0
        %v5455 = vadd.f32 %v5377, %v5450
        %s5456 = scalar_lea.vmem %s5, 480
        %v5457 = vld [vmem:[%s5456] sm:$0xf]
        %v5458 = vld [vmem:[%s5456 + $0x4] sm:$0xf]
        %v5459 = vld [vmem:[%s5456 + $0x8] sm:$0xf]
        %v5460 = vld [vmem:[%s5456 + $0xc] sm:$0xf]
        %v5461 = vld [vmem:[%s5456 + $0x10] sm:$0xf]
        %v5462 = vld [vmem:[%s5456 + $0x14] sm:$0xf]
        %v5463 = vld [vmem:[%s5456 + $0x18] sm:$0xf]
        %v5464 = vld [vmem:[%s5456 + $0x1c] sm:$0xf]
        %v5465 = vrot.slane %v5221, 3
        %v5474 = vunpack.c.l.b16 %v5457
        %v5475 = vunpack.c.l.b16 %v5458
        %v5476 = vunpack.c.l.b16 %v5459
        %v5477 = vunpack.c.l.b16 %v5460
        %v5478 = vunpack.c.l.b16 %v5461
        %v5479 = vunpack.c.l.b16 %v5462
        %v5480 = vunpack.c.l.b16 %v5463
        %v5481 = vunpack.c.l.b16 %v5464
        %v5482 = vpack.c.b16 %v5475, %v5474
        %v5483 = vpack.c.b16 %v5477, %v5476
        %v5484 = vpack.c.b16 %v5479, %v5478
        %v5485 = vpack.c.b16 %v5481, %v5480
        %v5491 = vsel %vm4313, %v5465, 0
        %5493 = vmatprep.subr.bf16.mxu0 0
        %5494 = vmatpush1.bf16.msra.mxu0 %v5482
        %5495 = vmatprep.subr.bf16.mxu0 0
        %5496 = vmatpush1.bf16.msra.mxu0 %v5483
        %5497 = vmatprep.subr.bf16.mxu0 0
        %5498 = vmatpush1.bf16.msra.mxu0 %v5484
        %5499 = vmatprep.subr.bf16.mxu0 0
        %5500 = vmatpush1.bf16.msra.mxu0 %v5485
        %5501 = vmatprep.subr.bf16.mxu0 0
        %5502 = vmatpush1.bf16.msra.mxu0 0
        %5503 = vmatprep.subr.bf16.mxu0 0
        %5504 = vmatpush1.bf16.msra.mxu0 0
        %5505 = vmatprep.subr.bf16.mxu0 0
        %5506 = vmatpush1.bf16.msra.mxu0 0
        %5507 = vmatprep.subr.bf16.mxu0 0
        %5508 = vmatpush1.bf16.msra.mxu0 0
        %5509 = vmatprep.subr.bf16.mxu0 0
        %5510 = vmatpush1.bf16.msra.mxu0 0
        %5511 = vmatprep.subr.bf16.mxu0 0
        %5512 = vmatpush1.bf16.msra.mxu0 0
        %5513 = vmatprep.subr.bf16.mxu0 0
        %5514 = vmatpush1.bf16.msra.mxu0 0
        %5515 = vmatprep.subr.bf16.mxu0 0
        %5516 = vmatpush1.bf16.msra.mxu0 0
        %5517 = vmatprep.subr.bf16.mxu0 0
        %5518 = vmatpush1.bf16.msra.mxu0 0
        %5519 = vmatprep.subr.bf16.mxu0 0
        %5520 = vmatpush1.bf16.msra.mxu0 0
        %5521 = vmatprep.subr.bf16.mxu0 0
        %5522 = vmatpush1.bf16.msra.mxu0 0
        %5523 = vmatprep.subr.bf16.mxu0 0
        %5524 = vmatpush1.bf16.msra.mxu0 0
        %5525 = vmatprep.mubr.bf16.mxu0 0
        %5526 = vmatmul.mubr.bf16.gmra.mrb[0].mxu0 %v5491
        %v5527 = vpop.f32.mrb[0].mxu0
        %v5528 = vadd.f32 0.0, %v5527
        %v5529 = vpop.f32.mrb[0].mxu0
        %v5530 = vpop.f32.mrb[0].mxu0
        %v5531 = vpop.f32.mrb[0].mxu0
        %5532 = vdwg.mxu0
        %v5533 = vadd.f32 %v5455, %v5528
        %v5534 = vld [vmem:[%s6] sm:$0x1]
        %v5535 = vadd.f32 %v5533, %v5534
        %v5536 = vmax.f32 %v5535, 0.0
        %v5537 = vlaneseq
        %v5538 = vand.u32 %v5537, 127
        %vm5539 = vcmp.lt.s32.totalorder %v5538, 10
        %v5540 = vsel %vm5539, %v5536, -1e+30
        %vm5541 = vcmask 1040384
        %v5542 = vsel %vm5541, %v5540, -inf
        %5543 = vmax.xlane.f32.xlu0 %v5542
        %v5544 = vpop.xlane.xlu0 %5543
        %v5545 = vsub.f32 %v5540, %v5544
        %v5546 = vmul.f32 %v5545, 1.442695
        %v5547 = vpow.pop %v5546
        %v5548 = vsel %vm5541, %v5547, 0.0
        %5549 = vadd.xlane.f32.xlu0 %v5548
        %v5550 = vpop.xlane.xlu0 %5549
        %v5551 = vlog2.pop %v5550
        %v5552 = vmul.f32 %v5551, 0.6931472
        %v5553 = vsub.f32 %v5545, %v5552
        %5554 = vst [vmem:[%s270] sm:$0x1] %v5553
        %s5555 = sand.u32 %s181, 1
        %s5556 = scalar_lea.sflag [#allocation4], %s5555
        %s5557 = sand.u32 %s181, 1
        %s5558 = scalar_lea.vmem [#allocation3], %s5557
        // Predicated region
        $region49: #{cnn_forward.1} parent=47 // pred_check
          %p5559 = pneg %p191
        $region50: #{cnn_forward.1} parent=47 // pred_check_branch
          %5561 = sbr.rel (%p5559) target = $region52
        $region51: #{cnn_forward.1} parent=47 // pred_region
          %s5563 = ssub.s32 16, 16
          %5564 = vsyncadd %s5556, %s5563
          %s5565 = smul.addr %s21, 16
          %s5566 = scalar_lea.hbm %s7, %s5565
          %s5568 = sshll.u32 %s5558, 4
          %s5569 = int_to_ptr.vmem [resolvable:$true] %s5568
          %5571 = dma.vmem_to_hbm [thread:$0]  %s5569, 16, %s5566, %s5556
        $region52: #{cnn_forward.1} parent=47 // pred_fallthru
          _
      $region48: #{cnn_forward.1} parent=5 // pred_fallthru
        _
      %p5572 = scmp.le.s32.totalorder 2, %s16
      // Predicated region
      $region53: #{cnn_forward.1} parent=5 // pred_check
        %p5573 = pneg %p5572
      $region54: #{cnn_forward.1} parent=5 // pred_check_branch
        %5575 = sbr.rel (%p5573) target = $region56
      $region55: #{cnn_forward.1} parent=5 // pred_region
        %s5576 = ssub.s32 %s16, 2
        // Predicated region
        $region57: #{cnn_forward.1} parent=55 // pred_check
          %p5577 = pneg %p197
        $region58: #{cnn_forward.1} parent=55 // pred_check_branch
          %5579 = sbr.rel (%p5577) target = $region60
        $region59: #{cnn_forward.1} parent=55 // pred_region
          %s5580 = sand.u32 %s182, 1
          %s5581 = scalar_lea.sflag [#allocation4], %s5580
          %s5582 = sand.u32 %s182, 1
          %s5583 = scalar_lea.vmem [#allocation3], %s5582
          %5584 = dma.done %s5581, 16
        $region60: #{cnn_forward.1} parent=55 // pred_fallthru
          _
      $region56: #{cnn_forward.1} parent=5 // pred_fallthru
        _
    $region6: #{cnn_forward.1} parent=1 // loop_footer
      %s20 = sadd.s32 1, %s16
    $region7: #{cnn_forward.1} parent=1 // loop_footer_branch
      %15 = sbr.rel target = $region3
    $region8: #{cnn_forward.1} parent=1 // loop_exit
      _
    %5585 = vsyncpa [#allocation4], 1
    %s5586 = scalar_lea.sflag [#allocation4], 1
    %5587 = vsyncpa %s5586, 1

</llo_original>
